<compile_context>
chip_gen: v7x
topology: tpu7x:2x2x1
jax: 0.10.0
libtpu: 0.0.40
codegen_flags: <defaults>
</compile_context>

<pallas_src>
import functools

import numpy as np

import jax
import jax.numpy as jnp
from jax.experimental import pallas as pl
from jax.experimental.pallas import tpu as pltpu

_VMEM_LIMIT = 16 * 1024 * 1024  # actual resident footprint is well under 2 MiB


# ----------------------------------------------------------------------------
# Shape helpers
# ----------------------------------------------------------------------------
def conv_out_dim(size, k, s):
    out = (size - k) / s + 1
    assert out == int(out), f"conv output dim not integer: {out}"
    return int(out)


# ----------------------------------------------------------------------------
# Fused whole-network kernel (one grid step == one image)
# ----------------------------------------------------------------------------
def _dqn_fused_kernel(p1_ref, w1_ref, b1_ref,
                      sel2_ref, w2_ref, b2_ref,
                      sel3_ref, w3_ref, b3_ref,
                      wl1_ref, bl1_ref, wl2_ref, bl2_ref,
                      out_ref):
    f32 = jnp.float32
    bf16 = jnp.bfloat16

    # ---- conv1: one GEMM on the prebuilt per-image patch matrix -------------
    p1 = p1_ref[0]                                            # (Ho1*Wo1, k*k*Cin) bf16
    a1 = jnp.dot(p1, w1_ref[...], preferred_element_type=f32) + b1_ref[...]
    a1 = jnp.maximum(a1, 0.0).astype(bf16)                    # (Ho1*Wo1, 32)

    # ---- conv2 / conv3: sum over kernel offsets of selection-GEMM @ W_ij ----
    def conv_layer(a_prev, sel_ref, w_ref, b_ref):
        kk = sel_ref.shape[0]            # k*k kernel offsets
        m_out = sel_ref.shape[1]         # Ho*Wo output positions
        c_out = w_ref.shape[2]
        acc = jnp.zeros((m_out, c_out), f32)
        for t in range(kk):              # static unroll (<= 16)
            # gather the input rows for offset t via an exact one-hot GEMM
            g = jnp.dot(sel_ref[t], a_prev,
                        preferred_element_type=f32).astype(bf16)   # (m_out, Cin)
            acc = acc + jnp.dot(g, w_ref[t], preferred_element_type=f32)
        return jnp.maximum(acc + b_ref[...], 0.0)

    a2 = conv_layer(a1, sel2_ref, w2_ref, b2_ref).astype(bf16)     # (Ho2*Wo2, 64)
    a3 = conv_layer(a2, sel3_ref, w3_ref, b3_ref)                  # (Ho3*Wo3, 64) f32

    # ---- linear1 (+ReLU): sum over spatial positions of single-row GEMMs ----
    nq = wl1_ref.shape[0]                # Ho3*Wo3
    hidden = wl1_ref.shape[2]            # 512
    h = jnp.zeros((1, hidden), f32)
    for q in range(nq):                  # static unroll (<= 49 for 84x84)
        row = a3[q:q + 1, :].astype(bf16)                          # (1, 64)
        h = h + jnp.dot(row, wl1_ref[q], preferred_element_type=f32)
    h = jnp.maximum(h + bl1_ref[...], 0.0).astype(bf16)            # (1, 512)

    # ---- linear2: lane-dense (padded) Q output ------------------------------
    qv = jnp.dot(h, wl2_ref[...], preferred_element_type=f32) + bl2_ref[...]
    out_ref[...] = qv[None]                                        # (1, 1, NP) f32


def _resident_spec(arr):
    """BlockSpec for a weight that stays VMEM-resident across the whole grid."""
    nd = arr.ndim
    return pl.BlockSpec(tuple(arr.shape), lambda b, _nd=nd: (0,) * _nd)


_WEIGHT_ORDER = ["conv1_wt", "conv1_b",
                 "sel2", "conv2_wt", "conv2_b",
                 "sel3", "conv3_wt", "conv3_b",
                 "lin1_wt", "lin1_b",
                 "lin2_wp", "lin2_bp"]


# ----------------------------------------------------------------------------
# Forward
# ----------------------------------------------------------------------------
def dqn_forward(prep, x, *, num_actions):
    """x: (N, frame_stack, H, W) float32, NCHW (same as PyTorch)."""
    N, _, H, W = x.shape
    # Entry layout change (XLA glue, one op).  TODO(synk): fold into the kernel.
    x = x.transpose(0, 2, 3, 1).astype(jnp.bfloat16)          # (N, H, W, C)

    # conv1 im2col (XLA strided slices + concat on the tiny raw input).
    k1, s1 = 8, 4
    C = x.shape[-1]
    Ho1 = conv_out_dim(H, k1, s1)
    Wo1 = conv_out_dim(W, k1, s1)
    cols = []
    for i in range(k1):
        for j in range(k1):
            cols.append(x[:, i:i + s1 * Ho1:s1, j:j + s1 * Wo1:s1, :])
    patches1 = jnp.concatenate(cols, axis=-1)                 # (N, Ho1, Wo1, k*k*C)
    patches1 = patches1.reshape(N, Ho1 * Wo1, k1 * k1 * C)    # (N, M1, K1)

    M1, K1 = Ho1 * Wo1, k1 * k1 * C
    NP = prep["lin2_wp"].shape[1]

    in_specs = [pl.BlockSpec((1, M1, K1), lambda b: (b, 0, 0))]
    in_specs += [_resident_spec(prep[name]) for name in _WEIGHT_ORDER]

    # Cost estimate (per image) from the prepared shapes.
    c1 = prep["conv1_wt"].shape[1]
    kk2, m2, mi2 = prep["sel2"].shape
    ci2, co2 = prep["conv2_wt"].shape[1], prep["conv2_wt"].shape[2]
    kk3, m3, mi3 = prep["sel3"].shape
    ci3, co3 = prep["conv3_wt"].shape[1], prep["conv3_wt"].shape[2]
    nq, cl, hidden = prep["lin1_wt"].shape
    flops_per_img = 2 * (M1 * K1 * c1
                         + kk2 * (m2 * mi2 * ci2 + m2 * ci2 * co2)
                         + kk3 * (m3 * mi3 * ci3 + m3 * ci3 * co3)
                         + nq * cl * hidden
                         + hidden * NP)
    param_bytes = sum(int(prep[n].size) * prep[n].dtype.itemsize
                      for n in _WEIGHT_ORDER)
    bytes_accessed = (int(patches1.size) * patches1.dtype.itemsize
                      + param_bytes + N * NP * 4)

    out = pl.pallas_call(
        _dqn_fused_kernel,
        grid=(N,),
        in_specs=in_specs,
        out_specs=pl.BlockSpec((1, 1, NP), lambda b: (b, 0, 0)),
        out_shape=jax.ShapeDtypeStruct((N, 1, NP), jnp.float32),
        compiler_params=pltpu.CompilerParams(
            dimension_semantics=("parallel",),
            vmem_limit_bytes=_VMEM_LIMIT,
        ),
        cost_estimate=pl.CostEstimate(
            flops=N * flops_per_img,
            transcendentals=0,
            bytes_accessed=bytes_accessed,
        ),
    )(patches1, *[prep[name] for name in _WEIGHT_ORDER])

    return out[:, 0, :num_actions]


# ----------------------------------------------------------------------------
# Parameters (torch layout) + one-time prep into kernel layout
# ----------------------------------------------------------------------------
def init_dqn_params(key, frame_stack, num_actions, input_height, input_width):
    h1, w1 = conv_out_dim(input_height, 8, 4), conv_out_dim(input_width, 8, 4)
    h2, w2 = conv_out_dim(h1, 4, 2), conv_out_dim(w1, 4, 2)
    h3, w3 = conv_out_dim(h2, 3, 1), conv_out_dim(w2, 3, 1)
    flat = h3 * w3 * 64

    ks = jax.random.split(key, 10)

    def init(kw, kb, shape_w, fan_in):
        scale = 1.0 / jnp.sqrt(fan_in)
        w = jax.random.uniform(kw, shape_w, jnp.float32, -scale, scale)
        b = jax.random.uniform(kb, (shape_w[0],), jnp.float32, -scale, scale)
        return w, b

    params = {}
    params["conv1_w"], params["conv1_b"] = init(ks[0], ks[1], (32, frame_stack, 8, 8), frame_stack * 8 * 8)
    params["conv2_w"], params["conv2_b"] = init(ks[2], ks[3], (64, 32, 4, 4), 32 * 4 * 4)
    params["conv3_w"], params["conv3_b"] = init(ks[4], ks[5], (64, 64, 3, 3), 64 * 3 * 3)
    params["lin1_w"], params["lin1_b"] = init(ks[6], ks[7], (512, flat), flat)
    params["lin2_w"], params["lin2_b"] = init(ks[8], ks[9], (num_actions, 512), 512)
    return params


def _make_selection_matrices(hin, win, k, s):
    """One-hot (k*k, Ho*Wo, Hin*Win) matrices: sel[i*k+j] @ A gathers, for every
    output position p=(ho,wo), input row (ho*s+i)*Win + wo*s + j of the
    NHWC-flattened activation A (Hin*Win, C)."""
    ho = (hin - k) // s + 1
    wo = (win - k) // s + 1
    sel = np.zeros((k * k, ho * wo, hin * win), np.float32)
    for i in range(k):
        for j in range(k):
            for p in range(ho * wo):
                r = ((p // wo) * s + i) * win + (p % wo) * s + j
                sel[i * k + j, p, r] = 1.0
    return jnp.asarray(sel, jnp.bfloat16)


def prepare_params(params, num_actions, input_height, input_width):
    """One-time weight layout prep: all transposes/reshapes hoisted out of forward."""
    h1, w1 = conv_out_dim(input_height, 8, 4), conv_out_dim(input_width, 8, 4)
    h2, w2 = conv_out_dim(h1, 4, 2), conv_out_dim(w1, 4, 2)
    h3, w3 = conv_out_dim(h2, 3, 1), conv_out_dim(w2, 3, 1)

    def conv_wt_2d(w):   # (Cout, Cin, k, k) -> (k*k*Cin, Cout), (kh, kw, c) rows
        co, ci, kh, kw = w.shape
        return w.transpose(2, 3, 1, 0).reshape(kh * kw * ci, co).astype(jnp.bfloat16)

    def conv_wt_3d(w):   # (Cout, Cin, k, k) -> (k*k, Cin, Cout)
        co, ci, kh, kw = w.shape
        return w.transpose(2, 3, 1, 0).reshape(kh * kw, ci, co).astype(jnp.bfloat16)

    n_pad = ((num_actions + 127) // 128) * 128       # lane-dense Q output

    # lin1 columns are torch (c, h, w) order -> regroup per spatial position q=(h,w):
    # (H3*W3, 64, 512) so the kernel never has to flatten the conv3 activation.
    lin1_wt = (params["lin1_w"].reshape(512, 64, h3, w3)
               .transpose(2, 3, 1, 0)
               .reshape(h3 * w3, 64, 512)
               .astype(jnp.bfloat16))

    lin2_wp = (jnp.zeros((512, n_pad), jnp.float32)
               .at[:, :num_actions].set(params["lin2_w"].T)
               .astype(jnp.bfloat16))
    lin2_bp = jnp.zeros((1, n_pad), jnp.float32).at[:, :num_actions].set(params["lin2_b"])

    return {
        "conv1_wt": conv_wt_2d(params["conv1_w"]),
        "conv1_b": params["conv1_b"].reshape(1, -1).astype(jnp.float32),
        "sel2": _make_selection_matrices(h1, w1, 4, 2),
        "conv2_wt": conv_wt_3d(params["conv2_w"]),
        "conv2_b": params["conv2_b"].reshape(1, -1).astype(jnp.float32),
        "sel3": _make_selection_matrices(h2, w2, 3, 1),
        "conv3_wt": conv_wt_3d(params["conv3_w"]),
        "conv3_b": params["conv3_b"].reshape(1, -1).astype(jnp.float32),
        "lin1_wt": lin1_wt,
        "lin1_b": params["lin1_b"].reshape(1, -1).astype(jnp.float32),
        "lin2_wp": lin2_wp,
        "lin2_bp": lin2_bp,
    }


# ----------------------------------------------------------------------------
# Pure-JAX f32 reference (for correctness check only)
# ----------------------------------------------------------------------------
def dqn_forward_ref(params, x):
    def conv(x, w, b, s):
        y = jax.lax.conv_general_dilated(
            x, w, (s, s), "VALID",
            dimension_numbers=("NCHW", "OIHW", "NCHW"),
            precision=jax.lax.Precision.HIGHEST,
        )
        return jax.nn.relu(y + b[None, :, None, None])

    x = conv(x, params["conv1_w"], params["conv1_b"], 4)
    x = conv(x, params["conv2_w"], params["conv2_b"], 2)
    x = conv(x, params["conv3_w"], params["conv3_b"], 1)
    x = x.reshape(x.shape[0], -1)
    x = jax.nn.relu(
        jnp.dot(x, params["lin1_w"].T, precision=jax.lax.Precision.HIGHEST)
        + params["lin1_b"]
    )
    return (
        jnp.dot(x, params["lin2_w"].T, precision=jax.lax.Precision.HIGHEST)
        + params["lin2_b"]
    )


if __name__ == "__main__":
    # Small shapes consistent with the module's conv-size constraints:
    # H=W=44 -> conv1: 10x10, conv2: 4x4, conv3: 2x2 -> flat = 2*2*64 = 256.
    batch, frame_stack, H, W = 2, 4, 44, 44
    num_actions = 6

    key = jax.random.PRNGKey(0)
    kp, kx = jax.random.split(key)
    params = init_dqn_params(kp, frame_stack, num_actions, H, W)
    x = jax.random.normal(kx, (batch, frame_stack, H, W), jnp.float32)

    prep = prepare_params(params, num_actions, H, W)    # one-time weight layout prep

    fwd = jax.jit(functools.partial(dqn_forward, num_actions=num_actions))
    q = fwd(prep, x)
    jax.block_until_ready(q)
    assert q.shape == (batch, num_actions)

    q_ref = dqn_forward_ref(params, x)
    max_err = jnp.max(jnp.abs(q - q_ref))
    assert jnp.allclose(q, q_ref, rtol=5e-2, atol=5e-2), (
        f"mismatch: max abs err {max_err}"
    )

    print("KERNEL_OK")
</pallas_src>

<mosaic_0001>
module attributes {stable_mosaic.version = 11 : i64} {
  func.func @_dqn_fused_kernel(%arg0: i32, %arg1: memref<1x100x256xbf16, #tpu.memory_space<vmem>>, %arg2: memref<256x32xbf16, #tpu.memory_space<vmem>>, %arg3: memref<1x32xf32, #tpu.memory_space<vmem>>, %arg4: memref<16x16x100xbf16, #tpu.memory_space<vmem>>, %arg5: memref<16x32x64xbf16, #tpu.memory_space<vmem>>, %arg6: memref<1x64xf32, #tpu.memory_space<vmem>>, %arg7: memref<9x4x16xbf16, #tpu.memory_space<vmem>>, %arg8: memref<9x64x64xbf16, #tpu.memory_space<vmem>>, %arg9: memref<1x64xf32, #tpu.memory_space<vmem>>, %arg10: memref<4x64x512xbf16, #tpu.memory_space<vmem>>, %arg11: memref<1x512xf32, #tpu.memory_space<vmem>>, %arg12: memref<512x128xbf16, #tpu.memory_space<vmem>>, %arg13: memref<1x128xf32, #tpu.memory_space<vmem>>, %arg14: memref<1x1x128xf32, #tpu.memory_space<vmem>>) attributes {dimension_semantics = [#tpu.dimension_semantics<parallel>], iteration_bounds = array<i64: 2>, scalar_prefetch = 0 : i64, scratch_operands = 0 : i64, tpu.core_type = #tpu.core_type<tc>, window_params = [{transform_indices = @transform_0, window_bounds = array<i64: 1, 100, 256>}, {pipeline_mode = #tpu.pipeline_mode<synchronous>, transform_indices = @transform_1, window_bounds = array<i64: 256, 32>}, {pipeline_mode = #tpu.pipeline_mode<synchronous>, transform_indices = @transform_2, window_bounds = array<i64: 1, 32>}, {pipeline_mode = #tpu.pipeline_mode<synchronous>, transform_indices = @transform_3, window_bounds = array<i64: 16, 16, 100>}, {pipeline_mode = #tpu.pipeline_mode<synchronous>, transform_indices = @transform_4, window_bounds = array<i64: 16, 32, 64>}, {pipeline_mode = #tpu.pipeline_mode<synchronous>, transform_indices = @transform_5, window_bounds = array<i64: 1, 64>}, {pipeline_mode = #tpu.pipeline_mode<synchronous>, transform_indices = @transform_6, window_bounds = array<i64: 9, 4, 16>}, {pipeline_mode = #tpu.pipeline_mode<synchronous>, transform_indices = @transform_7, window_bounds = array<i64: 9, 64, 64>}, {pipeline_mode = #tpu.pipeline_mode<synchronous>, transform_indices = @transform_8, window_bounds = array<i64: 1, 64>}, {pipeline_mode = #tpu.pipeline_mode<synchronous>, transform_indices = @transform_9, window_bounds = array<i64: 4, 64, 512>}, {pipeline_mode = #tpu.pipeline_mode<synchronous>, transform_indices = @transform_10, window_bounds = array<i64: 1, 512>}, {pipeline_mode = #tpu.pipeline_mode<synchronous>, transform_indices = @transform_11, window_bounds = array<i64: 512, 128>}, {pipeline_mode = #tpu.pipeline_mode<synchronous>, transform_indices = @transform_12, window_bounds = array<i64: 1, 128>}, {transform_indices = @transform_13, window_bounds = array<i64: 1, 1, 128>}]} {
    %c0 = arith.constant 0 : index
    %c0_0 = arith.constant 0 : index
    %c0_1 = arith.constant 0 : index
    %0 = vector.load %arg1[%c0, %c0_0, %c0_1] : memref<1x100x256xbf16, #tpu.memory_space<vmem>>, vector<1x100x256xbf16>
    %1 = vector.shape_cast %0 : vector<1x100x256xbf16> to vector<100x256xbf16>
    %c0_2 = arith.constant 0 : index
    %c0_3 = arith.constant 0 : index
    %2 = vector.load %arg2[%c0_2, %c0_3] : memref<256x32xbf16, #tpu.memory_space<vmem>>, vector<256x32xbf16>
    %cst = arith.constant dense<0.000000e+00> : vector<100x32xf32>
    %3 = tpu.matmul %1, %2, %cst {dimension_numbers = #tpu.dot_dimension_numbers<[1], [0], [0], [1], [0, 0, 1, 1], [], []>} : vector<100x256xbf16>, vector<256x32xbf16>, vector<100x32xf32> -> vector<100x32xf32>
    %c0_4 = arith.constant 0 : index
    %c0_5 = arith.constant 0 : index
    %4 = vector.load %arg3[%c0_4, %c0_5] : memref<1x32xf32, #tpu.memory_space<vmem>>, vector<1x32xf32>
    %5 = vector.broadcast %4 : vector<1x32xf32> to vector<100x32xf32>
    %6 = arith.addf %3, %5 : vector<100x32xf32>
    %cst_6 = arith.constant 0.000000e+00 : f32
    %7 = vector.broadcast %cst_6 : f32 to vector<100x32xf32>
    %8 = arith.maximumf %6, %7 : vector<100x32xf32>
    %9 = arith.truncf %8 : vector<100x32xf32> to vector<100x32xbf16>
    %cst_7 = arith.constant 0.000000e+00 : f32
    %10 = vector.broadcast %cst_7 : f32 to vector<16x64xf32>
    %c0_8 = arith.constant 0 : index
    %c0_9 = arith.constant 0 : index
    %c0_10 = arith.constant 0 : index
    %11 = vector.load %arg4[%c0_8, %c0_9, %c0_10] : memref<16x16x100xbf16, #tpu.memory_space<vmem>>, vector<1x16x100xbf16>
    %12 = vector.shape_cast %11 : vector<1x16x100xbf16> to vector<16x100xbf16>
    %cst_11 = arith.constant dense<0.000000e+00> : vector<16x32xf32>
    %13 = tpu.matmul %12, %9, %cst_11 {dimension_numbers = #tpu.dot_dimension_numbers<[1], [0], [0], [1], [0, 0, 1, 1], [], []>} : vector<16x100xbf16>, vector<100x32xbf16>, vector<16x32xf32> -> vector<16x32xf32>
    %14 = arith.truncf %13 : vector<16x32xf32> to vector<16x32xbf16>
    %c0_12 = arith.constant 0 : index
    %c0_13 = arith.constant 0 : index
    %c0_14 = arith.constant 0 : index
    %15 = vector.load %arg5[%c0_12, %c0_13, %c0_14] : memref<16x32x64xbf16, #tpu.memory_space<vmem>>, vector<1x32x64xbf16>
    %16 = vector.shape_cast %15 : vector<1x32x64xbf16> to vector<32x64xbf16>
    %cst_15 = arith.constant dense<0.000000e+00> : vector<16x64xf32>
    %17 = tpu.matmul %14, %16, %cst_15 {dimension_numbers = #tpu.dot_dimension_numbers<[1], [0], [0], [1], [0, 0, 1, 1], [], []>} : vector<16x32xbf16>, vector<32x64xbf16>, vector<16x64xf32> -> vector<16x64xf32>
    %18 = arith.addf %10, %17 : vector<16x64xf32>
    %c1 = arith.constant 1 : index
    %c0_16 = arith.constant 0 : index
    %c0_17 = arith.constant 0 : index
    %19 = vector.load %arg4[%c1, %c0_16, %c0_17] : memref<16x16x100xbf16, #tpu.memory_space<vmem>>, vector<1x16x100xbf16>
    %20 = vector.shape_cast %19 : vector<1x16x100xbf16> to vector<16x100xbf16>
    %cst_18 = arith.constant dense<0.000000e+00> : vector<16x32xf32>
    %21 = tpu.matmul %20, %9, %cst_18 {dimension_numbers = #tpu.dot_dimension_numbers<[1], [0], [0], [1], [0, 0, 1, 1], [], []>} : vector<16x100xbf16>, vector<100x32xbf16>, vector<16x32xf32> -> vector<16x32xf32>
    %22 = arith.truncf %21 : vector<16x32xf32> to vector<16x32xbf16>
    %c1_19 = arith.constant 1 : index
    %c0_20 = arith.constant 0 : index
    %c0_21 = arith.constant 0 : index
    %23 = vector.load %arg5[%c1_19, %c0_20, %c0_21] : memref<16x32x64xbf16, #tpu.memory_space<vmem>>, vector<1x32x64xbf16>
    %24 = vector.shape_cast %23 : vector<1x32x64xbf16> to vector<32x64xbf16>
    %cst_22 = arith.constant dense<0.000000e+00> : vector<16x64xf32>
    %25 = tpu.matmul %22, %24, %cst_22 {dimension_numbers = #tpu.dot_dimension_numbers<[1], [0], [0], [1], [0, 0, 1, 1], [], []>} : vector<16x32xbf16>, vector<32x64xbf16>, vector<16x64xf32> -> vector<16x64xf32>
    %26 = arith.addf %18, %25 : vector<16x64xf32>
    %c2 = arith.constant 2 : index
    %c0_23 = arith.constant 0 : index
    %c0_24 = arith.constant 0 : index
    %27 = vector.load %arg4[%c2, %c0_23, %c0_24] : memref<16x16x100xbf16, #tpu.memory_space<vmem>>, vector<1x16x100xbf16>
    %28 = vector.shape_cast %27 : vector<1x16x100xbf16> to vector<16x100xbf16>
    %cst_25 = arith.constant dense<0.000000e+00> : vector<16x32xf32>
    %29 = tpu.matmul %28, %9, %cst_25 {dimension_numbers = #tpu.dot_dimension_numbers<[1], [0], [0], [1], [0, 0, 1, 1], [], []>} : vector<16x100xbf16>, vector<100x32xbf16>, vector<16x32xf32> -> vector<16x32xf32>
    %30 = arith.truncf %29 : vector<16x32xf32> to vector<16x32xbf16>
    %c2_26 = arith.constant 2 : index
    %c0_27 = arith.constant 0 : index
    %c0_28 = arith.constant 0 : index
    %31 = vector.load %arg5[%c2_26, %c0_27, %c0_28] : memref<16x32x64xbf16, #tpu.memory_space<vmem>>, vector<1x32x64xbf16>
    %32 = vector.shape_cast %31 : vector<1x32x64xbf16> to vector<32x64xbf16>
    %cst_29 = arith.constant dense<0.000000e+00> : vector<16x64xf32>
    %33 = tpu.matmul %30, %32, %cst_29 {dimension_numbers = #tpu.dot_dimension_numbers<[1], [0], [0], [1], [0, 0, 1, 1], [], []>} : vector<16x32xbf16>, vector<32x64xbf16>, vector<16x64xf32> -> vector<16x64xf32>
    %34 = arith.addf %26, %33 : vector<16x64xf32>
    %c3 = arith.constant 3 : index
    %c0_30 = arith.constant 0 : index
    %c0_31 = arith.constant 0 : index
    %35 = vector.load %arg4[%c3, %c0_30, %c0_31] : memref<16x16x100xbf16, #tpu.memory_space<vmem>>, vector<1x16x100xbf16>
    %36 = vector.shape_cast %35 : vector<1x16x100xbf16> to vector<16x100xbf16>
    %cst_32 = arith.constant dense<0.000000e+00> : vector<16x32xf32>
    %37 = tpu.matmul %36, %9, %cst_32 {dimension_numbers = #tpu.dot_dimension_numbers<[1], [0], [0], [1], [0, 0, 1, 1], [], []>} : vector<16x100xbf16>, vector<100x32xbf16>, vector<16x32xf32> -> vector<16x32xf32>
    %38 = arith.truncf %37 : vector<16x32xf32> to vector<16x32xbf16>
    %c3_33 = arith.constant 3 : index
    %c0_34 = arith.constant 0 : index
    %c0_35 = arith.constant 0 : index
    %39 = vector.load %arg5[%c3_33, %c0_34, %c0_35] : memref<16x32x64xbf16, #tpu.memory_space<vmem>>, vector<1x32x64xbf16>
    %40 = vector.shape_cast %39 : vector<1x32x64xbf16> to vector<32x64xbf16>
    %cst_36 = arith.constant dense<0.000000e+00> : vector<16x64xf32>
    %41 = tpu.matmul %38, %40, %cst_36 {dimension_numbers = #tpu.dot_dimension_numbers<[1], [0], [0], [1], [0, 0, 1, 1], [], []>} : vector<16x32xbf16>, vector<32x64xbf16>, vector<16x64xf32> -> vector<16x64xf32>
    %42 = arith.addf %34, %41 : vector<16x64xf32>
    %c4 = arith.constant 4 : index
    %c0_37 = arith.constant 0 : index
    %c0_38 = arith.constant 0 : index
    %43 = vector.load %arg4[%c4, %c0_37, %c0_38] : memref<16x16x100xbf16, #tpu.memory_space<vmem>>, vector<1x16x100xbf16>
    %44 = vector.shape_cast %43 : vector<1x16x100xbf16> to vector<16x100xbf16>
    %cst_39 = arith.constant dense<0.000000e+00> : vector<16x32xf32>
    %45 = tpu.matmul %44, %9, %cst_39 {dimension_numbers = #tpu.dot_dimension_numbers<[1], [0], [0], [1], [0, 0, 1, 1], [], []>} : vector<16x100xbf16>, vector<100x32xbf16>, vector<16x32xf32> -> vector<16x32xf32>
    %46 = arith.truncf %45 : vector<16x32xf32> to vector<16x32xbf16>
    %c4_40 = arith.constant 4 : index
    %c0_41 = arith.constant 0 : index
    %c0_42 = arith.constant 0 : index
    %47 = vector.load %arg5[%c4_40, %c0_41, %c0_42] : memref<16x32x64xbf16, #tpu.memory_space<vmem>>, vector<1x32x64xbf16>
    %48 = vector.shape_cast %47 : vector<1x32x64xbf16> to vector<32x64xbf16>
    %cst_43 = arith.constant dense<0.000000e+00> : vector<16x64xf32>
    %49 = tpu.matmul %46, %48, %cst_43 {dimension_numbers = #tpu.dot_dimension_numbers<[1], [0], [0], [1], [0, 0, 1, 1], [], []>} : vector<16x32xbf16>, vector<32x64xbf16>, vector<16x64xf32> -> vector<16x64xf32>
    %50 = arith.addf %42, %49 : vector<16x64xf32>
    %c5 = arith.constant 5 : index
    %c0_44 = arith.constant 0 : index
    %c0_45 = arith.constant 0 : index
    %51 = vector.load %arg4[%c5, %c0_44, %c0_45] : memref<16x16x100xbf16, #tpu.memory_space<vmem>>, vector<1x16x100xbf16>
    %52 = vector.shape_cast %51 : vector<1x16x100xbf16> to vector<16x100xbf16>
    %cst_46 = arith.constant dense<0.000000e+00> : vector<16x32xf32>
    %53 = tpu.matmul %52, %9, %cst_46 {dimension_numbers = #tpu.dot_dimension_numbers<[1], [0], [0], [1], [0, 0, 1, 1], [], []>} : vector<16x100xbf16>, vector<100x32xbf16>, vector<16x32xf32> -> vector<16x32xf32>
    %54 = arith.truncf %53 : vector<16x32xf32> to vector<16x32xbf16>
    %c5_47 = arith.constant 5 : index
    %c0_48 = arith.constant 0 : index
    %c0_49 = arith.constant 0 : index
    %55 = vector.load %arg5[%c5_47, %c0_48, %c0_49] : memref<16x32x64xbf16, #tpu.memory_space<vmem>>, vector<1x32x64xbf16>
    %56 = vector.shape_cast %55 : vector<1x32x64xbf16> to vector<32x64xbf16>
    %cst_50 = arith.constant dense<0.000000e+00> : vector<16x64xf32>
    %57 = tpu.matmul %54, %56, %cst_50 {dimension_numbers = #tpu.dot_dimension_numbers<[1], [0], [0], [1], [0, 0, 1, 1], [], []>} : vector<16x32xbf16>, vector<32x64xbf16>, vector<16x64xf32> -> vector<16x64xf32>
    %58 = arith.addf %50, %57 : vector<16x64xf32>
    %c6 = arith.constant 6 : index
    %c0_51 = arith.constant 0 : index
    %c0_52 = arith.constant 0 : index
    %59 = vector.load %arg4[%c6, %c0_51, %c0_52] : memref<16x16x100xbf16, #tpu.memory_space<vmem>>, vector<1x16x100xbf16>
    %60 = vector.shape_cast %59 : vector<1x16x100xbf16> to vector<16x100xbf16>
    %cst_53 = arith.constant dense<0.000000e+00> : vector<16x32xf32>
    %61 = tpu.matmul %60, %9, %cst_53 {dimension_numbers = #tpu.dot_dimension_numbers<[1], [0], [0], [1], [0, 0, 1, 1], [], []>} : vector<16x100xbf16>, vector<100x32xbf16>, vector<16x32xf32> -> vector<16x32xf32>
    %62 = arith.truncf %61 : vector<16x32xf32> to vector<16x32xbf16>
    %c6_54 = arith.constant 6 : index
    %c0_55 = arith.constant 0 : index
    %c0_56 = arith.constant 0 : index
    %63 = vector.load %arg5[%c6_54, %c0_55, %c0_56] : memref<16x32x64xbf16, #tpu.memory_space<vmem>>, vector<1x32x64xbf16>
    %64 = vector.shape_cast %63 : vector<1x32x64xbf16> to vector<32x64xbf16>
    %cst_57 = arith.constant dense<0.000000e+00> : vector<16x64xf32>
    %65 = tpu.matmul %62, %64, %cst_57 {dimension_numbers = #tpu.dot_dimension_numbers<[1], [0], [0], [1], [0, 0, 1, 1], [], []>} : vector<16x32xbf16>, vector<32x64xbf16>, vector<16x64xf32> -> vector<16x64xf32>
    %66 = arith.addf %58, %65 : vector<16x64xf32>
    %c7 = arith.constant 7 : index
    %c0_58 = arith.constant 0 : index
    %c0_59 = arith.constant 0 : index
    %67 = vector.load %arg4[%c7, %c0_58, %c0_59] : memref<16x16x100xbf16, #tpu.memory_space<vmem>>, vector<1x16x100xbf16>
    %68 = vector.shape_cast %67 : vector<1x16x100xbf16> to vector<16x100xbf16>
    %cst_60 = arith.constant dense<0.000000e+00> : vector<16x32xf32>
    %69 = tpu.matmul %68, %9, %cst_60 {dimension_numbers = #tpu.dot_dimension_numbers<[1], [0], [0], [1], [0, 0, 1, 1], [], []>} : vector<16x100xbf16>, vector<100x32xbf16>, vector<16x32xf32> -> vector<16x32xf32>
    %70 = arith.truncf %69 : vector<16x32xf32> to vector<16x32xbf16>
    %c7_61 = arith.constant 7 : index
    %c0_62 = arith.constant 0 : index
    %c0_63 = arith.constant 0 : index
    %71 = vector.load %arg5[%c7_61, %c0_62, %c0_63] : memref<16x32x64xbf16, #tpu.memory_space<vmem>>, vector<1x32x64xbf16>
    %72 = vector.shape_cast %71 : vector<1x32x64xbf16> to vector<32x64xbf16>
    %cst_64 = arith.constant dense<0.000000e+00> : vector<16x64xf32>
    %73 = tpu.matmul %70, %72, %cst_64 {dimension_numbers = #tpu.dot_dimension_numbers<[1], [0], [0], [1], [0, 0, 1, 1], [], []>} : vector<16x32xbf16>, vector<32x64xbf16>, vector<16x64xf32> -> vector<16x64xf32>
    %74 = arith.addf %66, %73 : vector<16x64xf32>
    %c8 = arith.constant 8 : index
    %c0_65 = arith.constant 0 : index
    %c0_66 = arith.constant 0 : index
    %75 = vector.load %arg4[%c8, %c0_65, %c0_66] : memref<16x16x100xbf16, #tpu.memory_space<vmem>>, vector<1x16x100xbf16>
    %76 = vector.shape_cast %75 : vector<1x16x100xbf16> to vector<16x100xbf16>
    %cst_67 = arith.constant dense<0.000000e+00> : vector<16x32xf32>
    %77 = tpu.matmul %76, %9, %cst_67 {dimension_numbers = #tpu.dot_dimension_numbers<[1], [0], [0], [1], [0, 0, 1, 1], [], []>} : vector<16x100xbf16>, vector<100x32xbf16>, vector<16x32xf32> -> vector<16x32xf32>
    %78 = arith.truncf %77 : vector<16x32xf32> to vector<16x32xbf16>
    %c8_68 = arith.constant 8 : index
    %c0_69 = arith.constant 0 : index
    %c0_70 = arith.constant 0 : index
    %79 = vector.load %arg5[%c8_68, %c0_69, %c0_70] : memref<16x32x64xbf16, #tpu.memory_space<vmem>>, vector<1x32x64xbf16>
    %80 = vector.shape_cast %79 : vector<1x32x64xbf16> to vector<32x64xbf16>
    %cst_71 = arith.constant dense<0.000000e+00> : vector<16x64xf32>
    %81 = tpu.matmul %78, %80, %cst_71 {dimension_numbers = #tpu.dot_dimension_numbers<[1], [0], [0], [1], [0, 0, 1, 1], [], []>} : vector<16x32xbf16>, vector<32x64xbf16>, vector<16x64xf32> -> vector<16x64xf32>
    %82 = arith.addf %74, %81 : vector<16x64xf32>
    %c9 = arith.constant 9 : index
    %c0_72 = arith.constant 0 : index
    %c0_73 = arith.constant 0 : index
    %83 = vector.load %arg4[%c9, %c0_72, %c0_73] : memref<16x16x100xbf16, #tpu.memory_space<vmem>>, vector<1x16x100xbf16>
    %84 = vector.shape_cast %83 : vector<1x16x100xbf16> to vector<16x100xbf16>
    %cst_74 = arith.constant dense<0.000000e+00> : vector<16x32xf32>
    %85 = tpu.matmul %84, %9, %cst_74 {dimension_numbers = #tpu.dot_dimension_numbers<[1], [0], [0], [1], [0, 0, 1, 1], [], []>} : vector<16x100xbf16>, vector<100x32xbf16>, vector<16x32xf32> -> vector<16x32xf32>
    %86 = arith.truncf %85 : vector<16x32xf32> to vector<16x32xbf16>
    %c9_75 = arith.constant 9 : index
    %c0_76 = arith.constant 0 : index
    %c0_77 = arith.constant 0 : index
    %87 = vector.load %arg5[%c9_75, %c0_76, %c0_77] : memref<16x32x64xbf16, #tpu.memory_space<vmem>>, vector<1x32x64xbf16>
    %88 = vector.shape_cast %87 : vector<1x32x64xbf16> to vector<32x64xbf16>
    %cst_78 = arith.constant dense<0.000000e+00> : vector<16x64xf32>
    %89 = tpu.matmul %86, %88, %cst_78 {dimension_numbers = #tpu.dot_dimension_numbers<[1], [0], [0], [1], [0, 0, 1, 1], [], []>} : vector<16x32xbf16>, vector<32x64xbf16>, vector<16x64xf32> -> vector<16x64xf32>
    %90 = arith.addf %82, %89 : vector<16x64xf32>
    %c10 = arith.constant 10 : index
    %c0_79 = arith.constant 0 : index
    %c0_80 = arith.constant 0 : index
    %91 = vector.load %arg4[%c10, %c0_79, %c0_80] : memref<16x16x100xbf16, #tpu.memory_space<vmem>>, vector<1x16x100xbf16>
    %92 = vector.shape_cast %91 : vector<1x16x100xbf16> to vector<16x100xbf16>
    %cst_81 = arith.constant dense<0.000000e+00> : vector<16x32xf32>
    %93 = tpu.matmul %92, %9, %cst_81 {dimension_numbers = #tpu.dot_dimension_numbers<[1], [0], [0], [1], [0, 0, 1, 1], [], []>} : vector<16x100xbf16>, vector<100x32xbf16>, vector<16x32xf32> -> vector<16x32xf32>
    %94 = arith.truncf %93 : vector<16x32xf32> to vector<16x32xbf16>
    %c10_82 = arith.constant 10 : index
    %c0_83 = arith.constant 0 : index
    %c0_84 = arith.constant 0 : index
    %95 = vector.load %arg5[%c10_82, %c0_83, %c0_84] : memref<16x32x64xbf16, #tpu.memory_space<vmem>>, vector<1x32x64xbf16>
    %96 = vector.shape_cast %95 : vector<1x32x64xbf16> to vector<32x64xbf16>
    %cst_85 = arith.constant dense<0.000000e+00> : vector<16x64xf32>
    %97 = tpu.matmul %94, %96, %cst_85 {dimension_numbers = #tpu.dot_dimension_numbers<[1], [0], [0], [1], [0, 0, 1, 1], [], []>} : vector<16x32xbf16>, vector<32x64xbf16>, vector<16x64xf32> -> vector<16x64xf32>
    %98 = arith.addf %90, %97 : vector<16x64xf32>
    %c11 = arith.constant 11 : index
    %c0_86 = arith.constant 0 : index
    %c0_87 = arith.constant 0 : index
    %99 = vector.load %arg4[%c11, %c0_86, %c0_87] : memref<16x16x100xbf16, #tpu.memory_space<vmem>>, vector<1x16x100xbf16>
    %100 = vector.shape_cast %99 : vector<1x16x100xbf16> to vector<16x100xbf16>
    %cst_88 = arith.constant dense<0.000000e+00> : vector<16x32xf32>
    %101 = tpu.matmul %100, %9, %cst_88 {dimension_numbers = #tpu.dot_dimension_numbers<[1], [0], [0], [1], [0, 0, 1, 1], [], []>} : vector<16x100xbf16>, vector<100x32xbf16>, vector<16x32xf32> -> vector<16x32xf32>
    %102 = arith.truncf %101 : vector<16x32xf32> to vector<16x32xbf16>
    %c11_89 = arith.constant 11 : index
    %c0_90 = arith.constant 0 : index
    %c0_91 = arith.constant 0 : index
    %103 = vector.load %arg5[%c11_89, %c0_90, %c0_91] : memref<16x32x64xbf16, #tpu.memory_space<vmem>>, vector<1x32x64xbf16>
    %104 = vector.shape_cast %103 : vector<1x32x64xbf16> to vector<32x64xbf16>
    %cst_92 = arith.constant dense<0.000000e+00> : vector<16x64xf32>
    %105 = tpu.matmul %102, %104, %cst_92 {dimension_numbers = #tpu.dot_dimension_numbers<[1], [0], [0], [1], [0, 0, 1, 1], [], []>} : vector<16x32xbf16>, vector<32x64xbf16>, vector<16x64xf32> -> vector<16x64xf32>
    %106 = arith.addf %98, %105 : vector<16x64xf32>
    %c12 = arith.constant 12 : index
    %c0_93 = arith.constant 0 : index
    %c0_94 = arith.constant 0 : index
    %107 = vector.load %arg4[%c12, %c0_93, %c0_94] : memref<16x16x100xbf16, #tpu.memory_space<vmem>>, vector<1x16x100xbf16>
    %108 = vector.shape_cast %107 : vector<1x16x100xbf16> to vector<16x100xbf16>
    %cst_95 = arith.constant dense<0.000000e+00> : vector<16x32xf32>
    %109 = tpu.matmul %108, %9, %cst_95 {dimension_numbers = #tpu.dot_dimension_numbers<[1], [0], [0], [1], [0, 0, 1, 1], [], []>} : vector<16x100xbf16>, vector<100x32xbf16>, vector<16x32xf32> -> vector<16x32xf32>
    %110 = arith.truncf %109 : vector<16x32xf32> to vector<16x32xbf16>
    %c12_96 = arith.constant 12 : index
    %c0_97 = arith.constant 0 : index
    %c0_98 = arith.constant 0 : index
    %111 = vector.load %arg5[%c12_96, %c0_97, %c0_98] : memref<16x32x64xbf16, #tpu.memory_space<vmem>>, vector<1x32x64xbf16>
    %112 = vector.shape_cast %111 : vector<1x32x64xbf16> to vector<32x64xbf16>
    %cst_99 = arith.constant dense<0.000000e+00> : vector<16x64xf32>
    %113 = tpu.matmul %110, %112, %cst_99 {dimension_numbers = #tpu.dot_dimension_numbers<[1], [0], [0], [1], [0, 0, 1, 1], [], []>} : vector<16x32xbf16>, vector<32x64xbf16>, vector<16x64xf32> -> vector<16x64xf32>
    %114 = arith.addf %106, %113 : vector<16x64xf32>
    %c13 = arith.constant 13 : index
    %c0_100 = arith.constant 0 : index
    %c0_101 = arith.constant 0 : index
    %115 = vector.load %arg4[%c13, %c0_100, %c0_101] : memref<16x16x100xbf16, #tpu.memory_space<vmem>>, vector<1x16x100xbf16>
    %116 = vector.shape_cast %115 : vector<1x16x100xbf16> to vector<16x100xbf16>
    %cst_102 = arith.constant dense<0.000000e+00> : vector<16x32xf32>
    %117 = tpu.matmul %116, %9, %cst_102 {dimension_numbers = #tpu.dot_dimension_numbers<[1], [0], [0], [1], [0, 0, 1, 1], [], []>} : vector<16x100xbf16>, vector<100x32xbf16>, vector<16x32xf32> -> vector<16x32xf32>
    %118 = arith.truncf %117 : vector<16x32xf32> to vector<16x32xbf16>
    %c13_103 = arith.constant 13 : index
    %c0_104 = arith.constant 0 : index
    %c0_105 = arith.constant 0 : index
    %119 = vector.load %arg5[%c13_103, %c0_104, %c0_105] : memref<16x32x64xbf16, #tpu.memory_space<vmem>>, vector<1x32x64xbf16>
    %120 = vector.shape_cast %119 : vector<1x32x64xbf16> to vector<32x64xbf16>
    %cst_106 = arith.constant dense<0.000000e+00> : vector<16x64xf32>
    %121 = tpu.matmul %118, %120, %cst_106 {dimension_numbers = #tpu.dot_dimension_numbers<[1], [0], [0], [1], [0, 0, 1, 1], [], []>} : vector<16x32xbf16>, vector<32x64xbf16>, vector<16x64xf32> -> vector<16x64xf32>
    %122 = arith.addf %114, %121 : vector<16x64xf32>
    %c14 = arith.constant 14 : index
    %c0_107 = arith.constant 0 : index
    %c0_108 = arith.constant 0 : index
    %123 = vector.load %arg4[%c14, %c0_107, %c0_108] : memref<16x16x100xbf16, #tpu.memory_space<vmem>>, vector<1x16x100xbf16>
    %124 = vector.shape_cast %123 : vector<1x16x100xbf16> to vector<16x100xbf16>
    %cst_109 = arith.constant dense<0.000000e+00> : vector<16x32xf32>
    %125 = tpu.matmul %124, %9, %cst_109 {dimension_numbers = #tpu.dot_dimension_numbers<[1], [0], [0], [1], [0, 0, 1, 1], [], []>} : vector<16x100xbf16>, vector<100x32xbf16>, vector<16x32xf32> -> vector<16x32xf32>
    %126 = arith.truncf %125 : vector<16x32xf32> to vector<16x32xbf16>
    %c14_110 = arith.constant 14 : index
    %c0_111 = arith.constant 0 : index
    %c0_112 = arith.constant 0 : index
    %127 = vector.load %arg5[%c14_110, %c0_111, %c0_112] : memref<16x32x64xbf16, #tpu.memory_space<vmem>>, vector<1x32x64xbf16>
    %128 = vector.shape_cast %127 : vector<1x32x64xbf16> to vector<32x64xbf16>
    %cst_113 = arith.constant dense<0.000000e+00> : vector<16x64xf32>
    %129 = tpu.matmul %126, %128, %cst_113 {dimension_numbers = #tpu.dot_dimension_numbers<[1], [0], [0], [1], [0, 0, 1, 1], [], []>} : vector<16x32xbf16>, vector<32x64xbf16>, vector<16x64xf32> -> vector<16x64xf32>
    %130 = arith.addf %122, %129 : vector<16x64xf32>
    %c15 = arith.constant 15 : index
    %c0_114 = arith.constant 0 : index
    %c0_115 = arith.constant 0 : index
    %131 = vector.load %arg4[%c15, %c0_114, %c0_115] : memref<16x16x100xbf16, #tpu.memory_space<vmem>>, vector<1x16x100xbf16>
    %132 = vector.shape_cast %131 : vector<1x16x100xbf16> to vector<16x100xbf16>
    %cst_116 = arith.constant dense<0.000000e+00> : vector<16x32xf32>
    %133 = tpu.matmul %132, %9, %cst_116 {dimension_numbers = #tpu.dot_dimension_numbers<[1], [0], [0], [1], [0, 0, 1, 1], [], []>} : vector<16x100xbf16>, vector<100x32xbf16>, vector<16x32xf32> -> vector<16x32xf32>
    %134 = arith.truncf %133 : vector<16x32xf32> to vector<16x32xbf16>
    %c15_117 = arith.constant 15 : index
    %c0_118 = arith.constant 0 : index
    %c0_119 = arith.constant 0 : index
    %135 = vector.load %arg5[%c15_117, %c0_118, %c0_119] : memref<16x32x64xbf16, #tpu.memory_space<vmem>>, vector<1x32x64xbf16>
    %136 = vector.shape_cast %135 : vector<1x32x64xbf16> to vector<32x64xbf16>
    %cst_120 = arith.constant dense<0.000000e+00> : vector<16x64xf32>
    %137 = tpu.matmul %134, %136, %cst_120 {dimension_numbers = #tpu.dot_dimension_numbers<[1], [0], [0], [1], [0, 0, 1, 1], [], []>} : vector<16x32xbf16>, vector<32x64xbf16>, vector<16x64xf32> -> vector<16x64xf32>
    %138 = arith.addf %130, %137 : vector<16x64xf32>
    %c0_121 = arith.constant 0 : index
    %c0_122 = arith.constant 0 : index
    %139 = vector.load %arg6[%c0_121, %c0_122] : memref<1x64xf32, #tpu.memory_space<vmem>>, vector<1x64xf32>
    %140 = vector.broadcast %139 : vector<1x64xf32> to vector<16x64xf32>
    %141 = arith.addf %138, %140 : vector<16x64xf32>
    %cst_123 = arith.constant 0.000000e+00 : f32
    %142 = vector.broadcast %cst_123 : f32 to vector<16x64xf32>
    %143 = arith.maximumf %141, %142 : vector<16x64xf32>
    %144 = arith.truncf %143 : vector<16x64xf32> to vector<16x64xbf16>
    %cst_124 = arith.constant 0.000000e+00 : f32
    %145 = vector.broadcast %cst_124 : f32 to vector<4x64xf32>
    %c0_125 = arith.constant 0 : index
    %c0_126 = arith.constant 0 : index
    %c0_127 = arith.constant 0 : index
    %146 = vector.load %arg7[%c0_125, %c0_126, %c0_127] : memref<9x4x16xbf16, #tpu.memory_space<vmem>>, vector<1x4x16xbf16>
    %147 = vector.shape_cast %146 : vector<1x4x16xbf16> to vector<4x16xbf16>
    %cst_128 = arith.constant dense<0.000000e+00> : vector<4x64xf32>
    %148 = tpu.matmul %147, %144, %cst_128 {dimension_numbers = #tpu.dot_dimension_numbers<[1], [0], [0], [1], [0, 0, 1, 1], [], []>} : vector<4x16xbf16>, vector<16x64xbf16>, vector<4x64xf32> -> vector<4x64xf32>
    %149 = arith.truncf %148 : vector<4x64xf32> to vector<4x64xbf16>
    %c0_129 = arith.constant 0 : index
    %c0_130 = arith.constant 0 : index
    %c0_131 = arith.constant 0 : index
    %150 = vector.load %arg8[%c0_129, %c0_130, %c0_131] : memref<9x64x64xbf16, #tpu.memory_space<vmem>>, vector<1x64x64xbf16>
    %151 = vector.shape_cast %150 : vector<1x64x64xbf16> to vector<64x64xbf16>
    %cst_132 = arith.constant dense<0.000000e+00> : vector<4x64xf32>
    %152 = tpu.matmul %149, %151, %cst_132 {dimension_numbers = #tpu.dot_dimension_numbers<[1], [0], [0], [1], [0, 0, 1, 1], [], []>} : vector<4x64xbf16>, vector<64x64xbf16>, vector<4x64xf32> -> vector<4x64xf32>
    %153 = arith.addf %145, %152 : vector<4x64xf32>
    %c1_133 = arith.constant 1 : index
    %c0_134 = arith.constant 0 : index
    %c0_135 = arith.constant 0 : index
    %154 = vector.load %arg7[%c1_133, %c0_134, %c0_135] : memref<9x4x16xbf16, #tpu.memory_space<vmem>>, vector<1x4x16xbf16>
    %155 = vector.shape_cast %154 : vector<1x4x16xbf16> to vector<4x16xbf16>
    %cst_136 = arith.constant dense<0.000000e+00> : vector<4x64xf32>
    %156 = tpu.matmul %155, %144, %cst_136 {dimension_numbers = #tpu.dot_dimension_numbers<[1], [0], [0], [1], [0, 0, 1, 1], [], []>} : vector<4x16xbf16>, vector<16x64xbf16>, vector<4x64xf32> -> vector<4x64xf32>
    %157 = arith.truncf %156 : vector<4x64xf32> to vector<4x64xbf16>
    %c1_137 = arith.constant 1 : index
    %c0_138 = arith.constant 0 : index
    %c0_139 = arith.constant 0 : index
    %158 = vector.load %arg8[%c1_137, %c0_138, %c0_139] : memref<9x64x64xbf16, #tpu.memory_space<vmem>>, vector<1x64x64xbf16>
    %159 = vector.shape_cast %158 : vector<1x64x64xbf16> to vector<64x64xbf16>
    %cst_140 = arith.constant dense<0.000000e+00> : vector<4x64xf32>
    %160 = tpu.matmul %157, %159, %cst_140 {dimension_numbers = #tpu.dot_dimension_numbers<[1], [0], [0], [1], [0, 0, 1, 1], [], []>} : vector<4x64xbf16>, vector<64x64xbf16>, vector<4x64xf32> -> vector<4x64xf32>
    %161 = arith.addf %153, %160 : vector<4x64xf32>
    %c2_141 = arith.constant 2 : index
    %c0_142 = arith.constant 0 : index
    %c0_143 = arith.constant 0 : index
    %162 = vector.load %arg7[%c2_141, %c0_142, %c0_143] : memref<9x4x16xbf16, #tpu.memory_space<vmem>>, vector<1x4x16xbf16>
    %163 = vector.shape_cast %162 : vector<1x4x16xbf16> to vector<4x16xbf16>
    %cst_144 = arith.constant dense<0.000000e+00> : vector<4x64xf32>
    %164 = tpu.matmul %163, %144, %cst_144 {dimension_numbers = #tpu.dot_dimension_numbers<[1], [0], [0], [1], [0, 0, 1, 1], [], []>} : vector<4x16xbf16>, vector<16x64xbf16>, vector<4x64xf32> -> vector<4x64xf32>
    %165 = arith.truncf %164 : vector<4x64xf32> to vector<4x64xbf16>
    %c2_145 = arith.constant 2 : index
    %c0_146 = arith.constant 0 : index
    %c0_147 = arith.constant 0 : index
    %166 = vector.load %arg8[%c2_145, %c0_146, %c0_147] : memref<9x64x64xbf16, #tpu.memory_space<vmem>>, vector<1x64x64xbf16>
    %167 = vector.shape_cast %166 : vector<1x64x64xbf16> to vector<64x64xbf16>
    %cst_148 = arith.constant dense<0.000000e+00> : vector<4x64xf32>
    %168 = tpu.matmul %165, %167, %cst_148 {dimension_numbers = #tpu.dot_dimension_numbers<[1], [0], [0], [1], [0, 0, 1, 1], [], []>} : vector<4x64xbf16>, vector<64x64xbf16>, vector<4x64xf32> -> vector<4x64xf32>
    %169 = arith.addf %161, %168 : vector<4x64xf32>
    %c3_149 = arith.constant 3 : index
    %c0_150 = arith.constant 0 : index
    %c0_151 = arith.constant 0 : index
    %170 = vector.load %arg7[%c3_149, %c0_150, %c0_151] : memref<9x4x16xbf16, #tpu.memory_space<vmem>>, vector<1x4x16xbf16>
    %171 = vector.shape_cast %170 : vector<1x4x16xbf16> to vector<4x16xbf16>
    %cst_152 = arith.constant dense<0.000000e+00> : vector<4x64xf32>
    %172 = tpu.matmul %171, %144, %cst_152 {dimension_numbers = #tpu.dot_dimension_numbers<[1], [0], [0], [1], [0, 0, 1, 1], [], []>} : vector<4x16xbf16>, vector<16x64xbf16>, vector<4x64xf32> -> vector<4x64xf32>
    %173 = arith.truncf %172 : vector<4x64xf32> to vector<4x64xbf16>
    %c3_153 = arith.constant 3 : index
    %c0_154 = arith.constant 0 : index
    %c0_155 = arith.constant 0 : index
    %174 = vector.load %arg8[%c3_153, %c0_154, %c0_155] : memref<9x64x64xbf16, #tpu.memory_space<vmem>>, vector<1x64x64xbf16>
    %175 = vector.shape_cast %174 : vector<1x64x64xbf16> to vector<64x64xbf16>
    %cst_156 = arith.constant dense<0.000000e+00> : vector<4x64xf32>
    %176 = tpu.matmul %173, %175, %cst_156 {dimension_numbers = #tpu.dot_dimension_numbers<[1], [0], [0], [1], [0, 0, 1, 1], [], []>} : vector<4x64xbf16>, vector<64x64xbf16>, vector<4x64xf32> -> vector<4x64xf32>
    %177 = arith.addf %169, %176 : vector<4x64xf32>
    %c4_157 = arith.constant 4 : index
    %c0_158 = arith.constant 0 : index
    %c0_159 = arith.constant 0 : index
    %178 = vector.load %arg7[%c4_157, %c0_158, %c0_159] : memref<9x4x16xbf16, #tpu.memory_space<vmem>>, vector<1x4x16xbf16>
    %179 = vector.shape_cast %178 : vector<1x4x16xbf16> to vector<4x16xbf16>
    %cst_160 = arith.constant dense<0.000000e+00> : vector<4x64xf32>
    %180 = tpu.matmul %179, %144, %cst_160 {dimension_numbers = #tpu.dot_dimension_numbers<[1], [0], [0], [1], [0, 0, 1, 1], [], []>} : vector<4x16xbf16>, vector<16x64xbf16>, vector<4x64xf32> -> vector<4x64xf32>
    %181 = arith.truncf %180 : vector<4x64xf32> to vector<4x64xbf16>
    %c4_161 = arith.constant 4 : index
    %c0_162 = arith.constant 0 : index
    %c0_163 = arith.constant 0 : index
    %182 = vector.load %arg8[%c4_161, %c0_162, %c0_163] : memref<9x64x64xbf16, #tpu.memory_space<vmem>>, vector<1x64x64xbf16>
    %183 = vector.shape_cast %182 : vector<1x64x64xbf16> to vector<64x64xbf16>
    %cst_164 = arith.constant dense<0.000000e+00> : vector<4x64xf32>
    %184 = tpu.matmul %181, %183, %cst_164 {dimension_numbers = #tpu.dot_dimension_numbers<[1], [0], [0], [1], [0, 0, 1, 1], [], []>} : vector<4x64xbf16>, vector<64x64xbf16>, vector<4x64xf32> -> vector<4x64xf32>
    %185 = arith.addf %177, %184 : vector<4x64xf32>
    %c5_165 = arith.constant 5 : index
    %c0_166 = arith.constant 0 : index
    %c0_167 = arith.constant 0 : index
    %186 = vector.load %arg7[%c5_165, %c0_166, %c0_167] : memref<9x4x16xbf16, #tpu.memory_space<vmem>>, vector<1x4x16xbf16>
    %187 = vector.shape_cast %186 : vector<1x4x16xbf16> to vector<4x16xbf16>
    %cst_168 = arith.constant dense<0.000000e+00> : vector<4x64xf32>
    %188 = tpu.matmul %187, %144, %cst_168 {dimension_numbers = #tpu.dot_dimension_numbers<[1], [0], [0], [1], [0, 0, 1, 1], [], []>} : vector<4x16xbf16>, vector<16x64xbf16>, vector<4x64xf32> -> vector<4x64xf32>
    %189 = arith.truncf %188 : vector<4x64xf32> to vector<4x64xbf16>
    %c5_169 = arith.constant 5 : index
    %c0_170 = arith.constant 0 : index
    %c0_171 = arith.constant 0 : index
    %190 = vector.load %arg8[%c5_169, %c0_170, %c0_171] : memref<9x64x64xbf16, #tpu.memory_space<vmem>>, vector<1x64x64xbf16>
    %191 = vector.shape_cast %190 : vector<1x64x64xbf16> to vector<64x64xbf16>
    %cst_172 = arith.constant dense<0.000000e+00> : vector<4x64xf32>
    %192 = tpu.matmul %189, %191, %cst_172 {dimension_numbers = #tpu.dot_dimension_numbers<[1], [0], [0], [1], [0, 0, 1, 1], [], []>} : vector<4x64xbf16>, vector<64x64xbf16>, vector<4x64xf32> -> vector<4x64xf32>
    %193 = arith.addf %185, %192 : vector<4x64xf32>
    %c6_173 = arith.constant 6 : index
    %c0_174 = arith.constant 0 : index
    %c0_175 = arith.constant 0 : index
    %194 = vector.load %arg7[%c6_173, %c0_174, %c0_175] : memref<9x4x16xbf16, #tpu.memory_space<vmem>>, vector<1x4x16xbf16>
    %195 = vector.shape_cast %194 : vector<1x4x16xbf16> to vector<4x16xbf16>
    %cst_176 = arith.constant dense<0.000000e+00> : vector<4x64xf32>
    %196 = tpu.matmul %195, %144, %cst_176 {dimension_numbers = #tpu.dot_dimension_numbers<[1], [0], [0], [1], [0, 0, 1, 1], [], []>} : vector<4x16xbf16>, vector<16x64xbf16>, vector<4x64xf32> -> vector<4x64xf32>
    %197 = arith.truncf %196 : vector<4x64xf32> to vector<4x64xbf16>
    %c6_177 = arith.constant 6 : index
    %c0_178 = arith.constant 0 : index
    %c0_179 = arith.constant 0 : index
    %198 = vector.load %arg8[%c6_177, %c0_178, %c0_179] : memref<9x64x64xbf16, #tpu.memory_space<vmem>>, vector<1x64x64xbf16>
    %199 = vector.shape_cast %198 : vector<1x64x64xbf16> to vector<64x64xbf16>
    %cst_180 = arith.constant dense<0.000000e+00> : vector<4x64xf32>
    %200 = tpu.matmul %197, %199, %cst_180 {dimension_numbers = #tpu.dot_dimension_numbers<[1], [0], [0], [1], [0, 0, 1, 1], [], []>} : vector<4x64xbf16>, vector<64x64xbf16>, vector<4x64xf32> -> vector<4x64xf32>
    %201 = arith.addf %193, %200 : vector<4x64xf32>
    %c7_181 = arith.constant 7 : index
    %c0_182 = arith.constant 0 : index
    %c0_183 = arith.constant 0 : index
    %202 = vector.load %arg7[%c7_181, %c0_182, %c0_183] : memref<9x4x16xbf16, #tpu.memory_space<vmem>>, vector<1x4x16xbf16>
    %203 = vector.shape_cast %202 : vector<1x4x16xbf16> to vector<4x16xbf16>
    %cst_184 = arith.constant dense<0.000000e+00> : vector<4x64xf32>
    %204 = tpu.matmul %203, %144, %cst_184 {dimension_numbers = #tpu.dot_dimension_numbers<[1], [0], [0], [1], [0, 0, 1, 1], [], []>} : vector<4x16xbf16>, vector<16x64xbf16>, vector<4x64xf32> -> vector<4x64xf32>
    %205 = arith.truncf %204 : vector<4x64xf32> to vector<4x64xbf16>
    %c7_185 = arith.constant 7 : index
    %c0_186 = arith.constant 0 : index
    %c0_187 = arith.constant 0 : index
    %206 = vector.load %arg8[%c7_185, %c0_186, %c0_187] : memref<9x64x64xbf16, #tpu.memory_space<vmem>>, vector<1x64x64xbf16>
    %207 = vector.shape_cast %206 : vector<1x64x64xbf16> to vector<64x64xbf16>
    %cst_188 = arith.constant dense<0.000000e+00> : vector<4x64xf32>
    %208 = tpu.matmul %205, %207, %cst_188 {dimension_numbers = #tpu.dot_dimension_numbers<[1], [0], [0], [1], [0, 0, 1, 1], [], []>} : vector<4x64xbf16>, vector<64x64xbf16>, vector<4x64xf32> -> vector<4x64xf32>
    %209 = arith.addf %201, %208 : vector<4x64xf32>
    %c8_189 = arith.constant 8 : index
    %c0_190 = arith.constant 0 : index
    %c0_191 = arith.constant 0 : index
    %210 = vector.load %arg7[%c8_189, %c0_190, %c0_191] : memref<9x4x16xbf16, #tpu.memory_space<vmem>>, vector<1x4x16xbf16>
    %211 = vector.shape_cast %210 : vector<1x4x16xbf16> to vector<4x16xbf16>
    %cst_192 = arith.constant dense<0.000000e+00> : vector<4x64xf32>
    %212 = tpu.matmul %211, %144, %cst_192 {dimension_numbers = #tpu.dot_dimension_numbers<[1], [0], [0], [1], [0, 0, 1, 1], [], []>} : vector<4x16xbf16>, vector<16x64xbf16>, vector<4x64xf32> -> vector<4x64xf32>
    %213 = arith.truncf %212 : vector<4x64xf32> to vector<4x64xbf16>
    %c8_193 = arith.constant 8 : index
    %c0_194 = arith.constant 0 : index
    %c0_195 = arith.constant 0 : index
    %214 = vector.load %arg8[%c8_193, %c0_194, %c0_195] : memref<9x64x64xbf16, #tpu.memory_space<vmem>>, vector<1x64x64xbf16>
    %215 = vector.shape_cast %214 : vector<1x64x64xbf16> to vector<64x64xbf16>
    %cst_196 = arith.constant dense<0.000000e+00> : vector<4x64xf32>
    %216 = tpu.matmul %213, %215, %cst_196 {dimension_numbers = #tpu.dot_dimension_numbers<[1], [0], [0], [1], [0, 0, 1, 1], [], []>} : vector<4x64xbf16>, vector<64x64xbf16>, vector<4x64xf32> -> vector<4x64xf32>
    %217 = arith.addf %209, %216 : vector<4x64xf32>
    %c0_197 = arith.constant 0 : index
    %c0_198 = arith.constant 0 : index
    %218 = vector.load %arg9[%c0_197, %c0_198] : memref<1x64xf32, #tpu.memory_space<vmem>>, vector<1x64xf32>
    %219 = vector.broadcast %218 : vector<1x64xf32> to vector<4x64xf32>
    %220 = arith.addf %217, %219 : vector<4x64xf32>
    %cst_199 = arith.constant 0.000000e+00 : f32
    %221 = vector.broadcast %cst_199 : f32 to vector<4x64xf32>
    %222 = arith.maximumf %220, %221 : vector<4x64xf32>
    %cst_200 = arith.constant 0.000000e+00 : f32
    %223 = vector.broadcast %cst_200 : f32 to vector<1x512xf32>
    %224 = vector.extract_strided_slice %222 {offsets = [0, 0], sizes = [1, 64], strides = [1, 1]} : vector<4x64xf32> to vector<1x64xf32>
    %225 = arith.truncf %224 : vector<1x64xf32> to vector<1x64xbf16>
    %c0_201 = arith.constant 0 : index
    %c0_202 = arith.constant 0 : index
    %c0_203 = arith.constant 0 : index
    %226 = vector.load %arg10[%c0_201, %c0_202, %c0_203] : memref<4x64x512xbf16, #tpu.memory_space<vmem>>, vector<1x64x512xbf16>
    %227 = vector.shape_cast %226 : vector<1x64x512xbf16> to vector<64x512xbf16>
    %cst_204 = arith.constant dense<0.000000e+00> : vector<1x512xf32>
    %228 = tpu.matmul %225, %227, %cst_204 {dimension_numbers = #tpu.dot_dimension_numbers<[1], [0], [0], [1], [0, 0, 1, 1], [], []>} : vector<1x64xbf16>, vector<64x512xbf16>, vector<1x512xf32> -> vector<1x512xf32>
    %229 = arith.addf %223, %228 : vector<1x512xf32>
    %230 = vector.extract_strided_slice %222 {offsets = [1, 0], sizes = [1, 64], strides = [1, 1]} : vector<4x64xf32> to vector<1x64xf32>
    %231 = arith.truncf %230 : vector<1x64xf32> to vector<1x64xbf16>
    %c1_205 = arith.constant 1 : index
    %c0_206 = arith.constant 0 : index
    %c0_207 = arith.constant 0 : index
    %232 = vector.load %arg10[%c1_205, %c0_206, %c0_207] : memref<4x64x512xbf16, #tpu.memory_space<vmem>>, vector<1x64x512xbf16>
    %233 = vector.shape_cast %232 : vector<1x64x512xbf16> to vector<64x512xbf16>
    %cst_208 = arith.constant dense<0.000000e+00> : vector<1x512xf32>
    %234 = tpu.matmul %231, %233, %cst_208 {dimension_numbers = #tpu.dot_dimension_numbers<[1], [0], [0], [1], [0, 0, 1, 1], [], []>} : vector<1x64xbf16>, vector<64x512xbf16>, vector<1x512xf32> -> vector<1x512xf32>
    %235 = arith.addf %229, %234 : vector<1x512xf32>
    %236 = vector.extract_strided_slice %222 {offsets = [2, 0], sizes = [1, 64], strides = [1, 1]} : vector<4x64xf32> to vector<1x64xf32>
    %237 = arith.truncf %236 : vector<1x64xf32> to vector<1x64xbf16>
    %c2_209 = arith.constant 2 : index
    %c0_210 = arith.constant 0 : index
    %c0_211 = arith.constant 0 : index
    %238 = vector.load %arg10[%c2_209, %c0_210, %c0_211] : memref<4x64x512xbf16, #tpu.memory_space<vmem>>, vector<1x64x512xbf16>
    %239 = vector.shape_cast %238 : vector<1x64x512xbf16> to vector<64x512xbf16>
    %cst_212 = arith.constant dense<0.000000e+00> : vector<1x512xf32>
    %240 = tpu.matmul %237, %239, %cst_212 {dimension_numbers = #tpu.dot_dimension_numbers<[1], [0], [0], [1], [0, 0, 1, 1], [], []>} : vector<1x64xbf16>, vector<64x512xbf16>, vector<1x512xf32> -> vector<1x512xf32>
    %241 = arith.addf %235, %240 : vector<1x512xf32>
    %242 = vector.extract_strided_slice %222 {offsets = [3, 0], sizes = [1, 64], strides = [1, 1]} : vector<4x64xf32> to vector<1x64xf32>
    %243 = arith.truncf %242 : vector<1x64xf32> to vector<1x64xbf16>
    %c3_213 = arith.constant 3 : index
    %c0_214 = arith.constant 0 : index
    %c0_215 = arith.constant 0 : index
    %244 = vector.load %arg10[%c3_213, %c0_214, %c0_215] : memref<4x64x512xbf16, #tpu.memory_space<vmem>>, vector<1x64x512xbf16>
    %245 = vector.shape_cast %244 : vector<1x64x512xbf16> to vector<64x512xbf16>
    %cst_216 = arith.constant dense<0.000000e+00> : vector<1x512xf32>
    %246 = tpu.matmul %243, %245, %cst_216 {dimension_numbers = #tpu.dot_dimension_numbers<[1], [0], [0], [1], [0, 0, 1, 1], [], []>} : vector<1x64xbf16>, vector<64x512xbf16>, vector<1x512xf32> -> vector<1x512xf32>
    %247 = arith.addf %241, %246 : vector<1x512xf32>
    %c0_217 = arith.constant 0 : index
    %c0_218 = arith.constant 0 : index
    %248 = vector.load %arg11[%c0_217, %c0_218] : memref<1x512xf32, #tpu.memory_space<vmem>>, vector<1x512xf32>
    %249 = arith.addf %247, %248 : vector<1x512xf32>
    %cst_219 = arith.constant 0.000000e+00 : f32
    %250 = vector.broadcast %cst_219 : f32 to vector<1x512xf32>
    %251 = arith.maximumf %249, %250 : vector<1x512xf32>
    %252 = arith.truncf %251 : vector<1x512xf32> to vector<1x512xbf16>
    %c0_220 = arith.constant 0 : index
    %c0_221 = arith.constant 0 : index
    %253 = vector.load %arg12[%c0_220, %c0_221] : memref<512x128xbf16, #tpu.memory_space<vmem>>, vector<512x128xbf16>
    %cst_222 = arith.constant dense<0.000000e+00> : vector<1x128xf32>
    %254 = tpu.matmul %252, %253, %cst_222 {dimension_numbers = #tpu.dot_dimension_numbers<[1], [0], [0], [1], [0, 0, 1, 1], [], []>} : vector<1x512xbf16>, vector<512x128xbf16>, vector<1x128xf32> -> vector<1x128xf32>
    %c0_223 = arith.constant 0 : index
    %c0_224 = arith.constant 0 : index
    %255 = vector.load %arg13[%c0_223, %c0_224] : memref<1x128xf32, #tpu.memory_space<vmem>>, vector<1x128xf32>
    %256 = arith.addf %254, %255 : vector<1x128xf32>
    %257 = vector.shape_cast %256 : vector<1x128xf32> to vector<1x1x128xf32>
    %c0_225 = arith.constant 0 : index
    %c0_226 = arith.constant 0 : index
    %c0_227 = arith.constant 0 : index
    %258 = vector.load %arg14[%c0_225, %c0_226, %c0_227] : memref<1x1x128xf32, #tpu.memory_space<vmem>>, vector<1x1x128xf32>
    tpu.vector_store %arg14[%c0_225, %c0_226, %c0_227], %257 {strides = array<i32>} : memref<1x1x128xf32, #tpu.memory_space<vmem>>, vector<1x1x128xf32>,
    return
  }
  func.func @transform_0(%arg0: i32) -> (i32, i32, i32) {
    %c0_i32 = arith.constant 0 : i32
    %c0_i32_0 = arith.constant 0 : i32
    %c0_i32_1 = arith.constant 0 : i32
    return %arg0, %c0_i32, %c0_i32_0 : i32, i32, i32
  }
  func.func @transform_1(%arg0: i32) -> (i32, i32) {
    %c0_i32 = arith.constant 0 : i32
    %c0_i32_0 = arith.constant 0 : i32
    %c0_i32_1 = arith.constant 0 : i32
    return %c0_i32, %c0_i32_0 : i32, i32
  }
  func.func @transform_2(%arg0: i32) -> (i32, i32) {
    %c0_i32 = arith.constant 0 : i32
    %c0_i32_0 = arith.constant 0 : i32
    %c0_i32_1 = arith.constant 0 : i32
    return %c0_i32, %c0_i32_0 : i32, i32
  }
  func.func @transform_3(%arg0: i32) -> (i32, i32, i32) {
    %c0_i32 = arith.constant 0 : i32
    %c0_i32_0 = arith.constant 0 : i32
    %c0_i32_1 = arith.constant 0 : i32
    %c0_i32_2 = arith.constant 0 : i32
    return %c0_i32, %c0_i32_0, %c0_i32_1 : i32, i32, i32
  }
  func.func @transform_4(%arg0: i32) -> (i32, i32, i32) {
    %c0_i32 = arith.constant 0 : i32
    %c0_i32_0 = arith.constant 0 : i32
    %c0_i32_1 = arith.constant 0 : i32
    %c0_i32_2 = arith.constant 0 : i32
    return %c0_i32, %c0_i32_0, %c0_i32_1 : i32, i32, i32
  }
  func.func @transform_5(%arg0: i32) -> (i32, i32) {
    %c0_i32 = arith.constant 0 : i32
    %c0_i32_0 = arith.constant 0 : i32
    %c0_i32_1 = arith.constant 0 : i32
    return %c0_i32, %c0_i32_0 : i32, i32
  }
  func.func @transform_6(%arg0: i32) -> (i32, i32, i32) {
    %c0_i32 = arith.constant 0 : i32
    %c0_i32_0 = arith.constant 0 : i32
    %c0_i32_1 = arith.constant 0 : i32
    %c0_i32_2 = arith.constant 0 : i32
    return %c0_i32, %c0_i32_0, %c0_i32_1 : i32, i32, i32
  }
  func.func @transform_7(%arg0: i32) -> (i32, i32, i32) {
    %c0_i32 = arith.constant 0 : i32
    %c0_i32_0 = arith.constant 0 : i32
    %c0_i32_1 = arith.constant 0 : i32
    %c0_i32_2 = arith.constant 0 : i32
    return %c0_i32, %c0_i32_0, %c0_i32_1 : i32, i32, i32
  }
  func.func @transform_8(%arg0: i32) -> (i32, i32) {
    %c0_i32 = arith.constant 0 : i32
    %c0_i32_0 = arith.constant 0 : i32
    %c0_i32_1 = arith.constant 0 : i32
    return %c0_i32, %c0_i32_0 : i32, i32
  }
  func.func @transform_9(%arg0: i32) -> (i32, i32, i32) {
    %c0_i32 = arith.constant 0 : i32
    %c0_i32_0 = arith.constant 0 : i32
    %c0_i32_1 = arith.constant 0 : i32
    %c0_i32_2 = arith.constant 0 : i32
    return %c0_i32, %c0_i32_0, %c0_i32_1 : i32, i32, i32
  }
  func.func @transform_10(%arg0: i32) -> (i32, i32) {
    %c0_i32 = arith.constant 0 : i32
    %c0_i32_0 = arith.constant 0 : i32
    %c0_i32_1 = arith.constant 0 : i32
    return %c0_i32, %c0_i32_0 : i32, i32
  }
  func.func @transform_11(%arg0: i32) -> (i32, i32) {
    %c0_i32 = arith.constant 0 : i32
    %c0_i32_0 = arith.constant 0 : i32
    %c0_i32_1 = arith.constant 0 : i32
    return %c0_i32, %c0_i32_0 : i32, i32
  }
  func.func @transform_12(%arg0: i32) -> (i32, i32) {
    %c0_i32 = arith.constant 0 : i32
    %c0_i32_0 = arith.constant 0 : i32
    %c0_i32_1 = arith.constant 0 : i32
    return %c0_i32, %c0_i32_0 : i32, i32
  }
  func.func @transform_13(%arg0: i32) -> (i32, i32, i32) {
    %c0_i32 = arith.constant 0 : i32
    %c0_i32_0 = arith.constant 0 : i32
    %c0_i32_1 = arith.constant 0 : i32
    return %arg0, %c0_i32, %c0_i32_0 : i32, i32, i32
  }
}

</mosaic_0001>

<llo_original>
// kernel: dqn_forward.1
$region0: #{dqn_forward.1}
  #allocation0 [shape = 'u32[]', space=smem, size = 0x4, offset = 0x4, fixed_abs, tag = 'smem constant byte address 0x4 - core index']
  #allocation1 [shape = 'u32[144,128]{1,0:T(1,128)}', space=vmem, size = 0x12000, scoped, tag = 'internal scratch']
  %s0 = inlined_call_operand.vmem [shape: bf16[2,100,256], index: 0, kind: input, shape index: {}]
  %s1 = inlined_call_operand.vmem [shape: bf16[256,32], index: 1, kind: input, shape index: {}]
  %s2 = inlined_call_operand.vmem [shape: f32[1,32], index: 2, kind: input, shape index: {}]
  %s3 = inlined_call_operand.vmem [shape: bf16[16,16,100], index: 3, kind: input, shape index: {}]
  %s4 = inlined_call_operand.vmem [shape: bf16[16,32,64], index: 4, kind: input, shape index: {}]
  %s5 = inlined_call_operand.vmem [shape: f32[1,64], index: 5, kind: input, shape index: {}]
  %s6 = inlined_call_operand.vmem [shape: bf16[9,4,16], index: 6, kind: input, shape index: {}]
  %s7 = inlined_call_operand.vmem [shape: bf16[9,64,64], index: 7, kind: input, shape index: {}]
  %s8 = inlined_call_operand.vmem [shape: f32[1,64], index: 8, kind: input, shape index: {}]
  %s9 = inlined_call_operand.vmem [shape: bf16[4,64,512], index: 9, kind: input, shape index: {}]
  %s10 = inlined_call_operand.vmem [shape: f32[1,512], index: 10, kind: input, shape index: {}]
  %s11 = inlined_call_operand.vmem [shape: bf16[512,128], index: 11, kind: input, shape index: {}]
  %s12 = inlined_call_operand.vmem [shape: f32[1,128], index: 12, kind: input, shape index: {}]
  %s13 = inlined_call_operand.hbm [shape: f32[2,1,128], index: 13, kind: output, shape index: {}]
  %s14 = sld [smem:[#allocation0]]
  $region85: #{dqn_forward.1} parent=0
    _
  %s16 = ssub.s32 1, %s14
  %s17 = scalar_select 0, %s16, %s14
  $region1: #{dqn_forward.1} parent=0
    #allocation2 [shape = 'u8[1024]{0}', space=vmem, size = 0x400, scoped, tag = 'output window, operand 0']
    #allocation3 [shape = 's32[2]{0}', space=sflag, size = 0x8, scoped, tag = 'scoped memory for dqn_forward.1']
    %18 = vsyncpa [#allocation3], 0
    %s19 = scalar_lea.sflag [#allocation3], 1
    %20 = vsyncpa %s19, 0
    loop: start=0, step=1, limit=4
    $region2: #{dqn_forward.1} parent=1 // loop_pre_header
      _
    $region3: #{dqn_forward.1} parent=1 // loop_header
      %s22 = sphi 0, %s26
      %p23 = scmp.ge.s32.totalorder %s22, 4
      %s32 = sphi 0, %s34
      %s35 = sphi 0, %s32
      %s36 = sphi 0, %s35
      %s52 = sphi 0, %s36
      %s56 = sphi 0, %s56
      %s58 = sphi 0, %s56
      %s59 = sphi 0, %s58
      %s73 = sphi 0, %s59
      %s77 = sphi 0, %s77
      %s79 = sphi 0, %s77
      %s80 = sphi 0, %s79
      %s94 = sphi 0, %s80
      %s98 = sphi 0, %s98
      %s100 = sphi 0, %s98
      %s101 = sphi 0, %s100
      %s115 = sphi 0, %s101
      %s119 = sphi 0, %s119
      %s121 = sphi 0, %s119
      %s122 = sphi 0, %s121
      %s136 = sphi 0, %s122
      %s140 = sphi 0, %s140
      %s142 = sphi 0, %s140
      %s143 = sphi 0, %s142
      %s157 = sphi 0, %s143
      %s161 = sphi 0, %s161
      %s163 = sphi 0, %s161
      %s164 = sphi 0, %s163
      %s178 = sphi 0, %s164
      %s182 = sphi 0, %s182
      %s184 = sphi 0, %s182
      %s185 = sphi 0, %s184
      %s199 = sphi 0, %s185
      %s203 = sphi 0, %s203
      %s205 = sphi 0, %s203
      %s206 = sphi 0, %s205
      %s220 = sphi 0, %s206
      %s224 = sphi 0, %s224
      %s226 = sphi 0, %s224
      %s227 = sphi 0, %s226
      %s241 = sphi 0, %s227
      %s245 = sphi 0, %s245
      %s247 = sphi 0, %s245
      %s248 = sphi 0, %s247
      %s262 = sphi 0, %s248
      %s266 = sphi 0, %s266
      %s268 = sphi 0, %s266
      %s269 = sphi 0, %s268
      %s283 = sphi 0, %s269
      %s287 = sphi 0, %s287
      %s289 = sphi 0, %s287
      %s290 = sphi 0, %s289
      %s304 = sphi 0, %s290
      %s310 = sphi 0, %s312
      %s313 = sphi 0, %s310
      %s314 = sphi 0, %s313
      %s330 = sphi 0, %s314
    $region4: #{dqn_forward.1} parent=1 // loop_header_branch
      %25 = sbr.rel (%p23) target = $region8
    $region5: #{dqn_forward.1} parent=1 // loop_body
      %s27 = ssub.s32 %s22, 1
      %s28 = ssub.s32 %s22, 2
      %s29 = sadd.s32 %s22, 1
      %s30 = ssub.s32 %s22, %s29
      %p31 = scmp.eq.s32.totalorder %s30, 0
      %s33 = sadd.s32 %s32, 1
      %s34 = scalar_select %p31, %s32, %s33
      %p37 = pneg %p31
      %p38 = scmp.eq.s32.totalorder %s22, 1
      %p39 = por %p37, %p38
      %p40 = scmp.ne.s32.totalorder %s32, %s35
      %p41 = scmp.eq.s32.totalorder %s22, 0
      %p42 = por %p40, %p41
      %p43 = scmp.ne.s32.totalorder %s32, %s35
      %p44 = scmp.eq.s32.totalorder %s27, 1
      %p45 = por %p43, %p44
      %p46 = scmp.ne.s32.totalorder %s35, %s36
      %p47 = scmp.eq.s32.totalorder %s27, 0
      %p48 = por %p46, %p47
      %p49 = scmp.ne.s32.totalorder %s35, %s36
      %p50 = scmp.eq.s32.totalorder %s28, 1
      %p51 = por %p49, %p50
      %p53 = scmp.ne.s32.totalorder %s36, %s52
      %p54 = scmp.eq.s32.totalorder %s28, 0
      %p55 = por %p53, %p54
      %s57 = sadd.s32 %s56, 1
      %p60 = scmp.eq.s32.totalorder %s22, 1
      %p61 = scmp.ne.s32.totalorder %s56, %s58
      %p62 = scmp.eq.s32.totalorder %s22, 0
      %p63 = por %p61, %p62
      %p64 = scmp.ne.s32.totalorder %s56, %s58
      %p65 = scmp.eq.s32.totalorder %s27, 1
      %p66 = por %p64, %p65
      %p67 = scmp.ne.s32.totalorder %s58, %s59
      %p68 = scmp.eq.s32.totalorder %s27, 0
      %p69 = por %p67, %p68
      %p70 = scmp.ne.s32.totalorder %s58, %s59
      %p71 = scmp.eq.s32.totalorder %s28, 1
      %p72 = por %p70, %p71
      %p74 = scmp.ne.s32.totalorder %s59, %s73
      %p75 = scmp.eq.s32.totalorder %s28, 0
      %p76 = por %p74, %p75
      %s78 = sadd.s32 %s77, 1
      %p81 = scmp.eq.s32.totalorder %s22, 1
      %p82 = scmp.ne.s32.totalorder %s77, %s79
      %p83 = scmp.eq.s32.totalorder %s22, 0
      %p84 = por %p82, %p83
      %p85 = scmp.ne.s32.totalorder %s77, %s79
      %p86 = scmp.eq.s32.totalorder %s27, 1
      %p87 = por %p85, %p86
      %p88 = scmp.ne.s32.totalorder %s79, %s80
      %p89 = scmp.eq.s32.totalorder %s27, 0
      %p90 = por %p88, %p89
      %p91 = scmp.ne.s32.totalorder %s79, %s80
      %p92 = scmp.eq.s32.totalorder %s28, 1
      %p93 = por %p91, %p92
      %p95 = scmp.ne.s32.totalorder %s80, %s94
      %p96 = scmp.eq.s32.totalorder %s28, 0
      %p97 = por %p95, %p96
      %s99 = sadd.s32 %s98, 1
      %p102 = scmp.eq.s32.totalorder %s22, 1
      %p103 = scmp.ne.s32.totalorder %s98, %s100
      %p104 = scmp.eq.s32.totalorder %s22, 0
      %p105 = por %p103, %p104
      %p106 = scmp.ne.s32.totalorder %s98, %s100
      %p107 = scmp.eq.s32.totalorder %s27, 1
      %p108 = por %p106, %p107
      %p109 = scmp.ne.s32.totalorder %s100, %s101
      %p110 = scmp.eq.s32.totalorder %s27, 0
      %p111 = por %p109, %p110
      %p112 = scmp.ne.s32.totalorder %s100, %s101
      %p113 = scmp.eq.s32.totalorder %s28, 1
      %p114 = por %p112, %p113
      %p116 = scmp.ne.s32.totalorder %s101, %s115
      %p117 = scmp.eq.s32.totalorder %s28, 0
      %p118 = por %p116, %p117
      %s120 = sadd.s32 %s119, 1
      %p123 = scmp.eq.s32.totalorder %s22, 1
      %p124 = scmp.ne.s32.totalorder %s119, %s121
      %p125 = scmp.eq.s32.totalorder %s22, 0
      %p126 = por %p124, %p125
      %p127 = scmp.ne.s32.totalorder %s119, %s121
      %p128 = scmp.eq.s32.totalorder %s27, 1
      %p129 = por %p127, %p128
      %p130 = scmp.ne.s32.totalorder %s121, %s122
      %p131 = scmp.eq.s32.totalorder %s27, 0
      %p132 = por %p130, %p131
      %p133 = scmp.ne.s32.totalorder %s121, %s122
      %p134 = scmp.eq.s32.totalorder %s28, 1
      %p135 = por %p133, %p134
      %p137 = scmp.ne.s32.totalorder %s122, %s136
      %p138 = scmp.eq.s32.totalorder %s28, 0
      %p139 = por %p137, %p138
      %s141 = sadd.s32 %s140, 1
      %p144 = scmp.eq.s32.totalorder %s22, 1
      %p145 = scmp.ne.s32.totalorder %s140, %s142
      %p146 = scmp.eq.s32.totalorder %s22, 0
      %p147 = por %p145, %p146
      %p148 = scmp.ne.s32.totalorder %s140, %s142
      %p149 = scmp.eq.s32.totalorder %s27, 1
      %p150 = por %p148, %p149
      %p151 = scmp.ne.s32.totalorder %s142, %s143
      %p152 = scmp.eq.s32.totalorder %s27, 0
      %p153 = por %p151, %p152
      %p154 = scmp.ne.s32.totalorder %s142, %s143
      %p155 = scmp.eq.s32.totalorder %s28, 1
      %p156 = por %p154, %p155
      %p158 = scmp.ne.s32.totalorder %s143, %s157
      %p159 = scmp.eq.s32.totalorder %s28, 0
      %p160 = por %p158, %p159
      %s162 = sadd.s32 %s161, 1
      %p165 = scmp.eq.s32.totalorder %s22, 1
      %p166 = scmp.ne.s32.totalorder %s161, %s163
      %p167 = scmp.eq.s32.totalorder %s22, 0
      %p168 = por %p166, %p167
      %p169 = scmp.ne.s32.totalorder %s161, %s163
      %p170 = scmp.eq.s32.totalorder %s27, 1
      %p171 = por %p169, %p170
      %p172 = scmp.ne.s32.totalorder %s163, %s164
      %p173 = scmp.eq.s32.totalorder %s27, 0
      %p174 = por %p172, %p173
      %p175 = scmp.ne.s32.totalorder %s163, %s164
      %p176 = scmp.eq.s32.totalorder %s28, 1
      %p177 = por %p175, %p176
      %p179 = scmp.ne.s32.totalorder %s164, %s178
      %p180 = scmp.eq.s32.totalorder %s28, 0
      %p181 = por %p179, %p180
      %s183 = sadd.s32 %s182, 1
      %p186 = scmp.eq.s32.totalorder %s22, 1
      %p187 = scmp.ne.s32.totalorder %s182, %s184
      %p188 = scmp.eq.s32.totalorder %s22, 0
      %p189 = por %p187, %p188
      %p190 = scmp.ne.s32.totalorder %s182, %s184
      %p191 = scmp.eq.s32.totalorder %s27, 1
      %p192 = por %p190, %p191
      %p193 = scmp.ne.s32.totalorder %s184, %s185
      %p194 = scmp.eq.s32.totalorder %s27, 0
      %p195 = por %p193, %p194
      %p196 = scmp.ne.s32.totalorder %s184, %s185
      %p197 = scmp.eq.s32.totalorder %s28, 1
      %p198 = por %p196, %p197
      %p200 = scmp.ne.s32.totalorder %s185, %s199
      %p201 = scmp.eq.s32.totalorder %s28, 0
      %p202 = por %p200, %p201
      %s204 = sadd.s32 %s203, 1
      %p207 = scmp.eq.s32.totalorder %s22, 1
      %p208 = scmp.ne.s32.totalorder %s203, %s205
      %p209 = scmp.eq.s32.totalorder %s22, 0
      %p210 = por %p208, %p209
      %p211 = scmp.ne.s32.totalorder %s203, %s205
      %p212 = scmp.eq.s32.totalorder %s27, 1
      %p213 = por %p211, %p212
      %p214 = scmp.ne.s32.totalorder %s205, %s206
      %p215 = scmp.eq.s32.totalorder %s27, 0
      %p216 = por %p214, %p215
      %p217 = scmp.ne.s32.totalorder %s205, %s206
      %p218 = scmp.eq.s32.totalorder %s28, 1
      %p219 = por %p217, %p218
      %p221 = scmp.ne.s32.totalorder %s206, %s220
      %p222 = scmp.eq.s32.totalorder %s28, 0
      %p223 = por %p221, %p222
      %s225 = sadd.s32 %s224, 1
      %p228 = scmp.eq.s32.totalorder %s22, 1
      %p229 = scmp.ne.s32.totalorder %s224, %s226
      %p230 = scmp.eq.s32.totalorder %s22, 0
      %p231 = por %p229, %p230
      %p232 = scmp.ne.s32.totalorder %s224, %s226
      %p233 = scmp.eq.s32.totalorder %s27, 1
      %p234 = por %p232, %p233
      %p235 = scmp.ne.s32.totalorder %s226, %s227
      %p236 = scmp.eq.s32.totalorder %s27, 0
      %p237 = por %p235, %p236
      %p238 = scmp.ne.s32.totalorder %s226, %s227
      %p239 = scmp.eq.s32.totalorder %s28, 1
      %p240 = por %p238, %p239
      %p242 = scmp.ne.s32.totalorder %s227, %s241
      %p243 = scmp.eq.s32.totalorder %s28, 0
      %p244 = por %p242, %p243
      %s246 = sadd.s32 %s245, 1
      %p249 = scmp.eq.s32.totalorder %s22, 1
      %p250 = scmp.ne.s32.totalorder %s245, %s247
      %p251 = scmp.eq.s32.totalorder %s22, 0
      %p252 = por %p250, %p251
      %p253 = scmp.ne.s32.totalorder %s245, %s247
      %p254 = scmp.eq.s32.totalorder %s27, 1
      %p255 = por %p253, %p254
      %p256 = scmp.ne.s32.totalorder %s247, %s248
      %p257 = scmp.eq.s32.totalorder %s27, 0
      %p258 = por %p256, %p257
      %p259 = scmp.ne.s32.totalorder %s247, %s248
      %p260 = scmp.eq.s32.totalorder %s28, 1
      %p261 = por %p259, %p260
      %p263 = scmp.ne.s32.totalorder %s248, %s262
      %p264 = scmp.eq.s32.totalorder %s28, 0
      %p265 = por %p263, %p264
      %s267 = sadd.s32 %s266, 1
      %p270 = scmp.eq.s32.totalorder %s22, 1
      %p271 = scmp.ne.s32.totalorder %s266, %s268
      %p272 = scmp.eq.s32.totalorder %s22, 0
      %p273 = por %p271, %p272
      %p274 = scmp.ne.s32.totalorder %s266, %s268
      %p275 = scmp.eq.s32.totalorder %s27, 1
      %p276 = por %p274, %p275
      %p277 = scmp.ne.s32.totalorder %s268, %s269
      %p278 = scmp.eq.s32.totalorder %s27, 0
      %p279 = por %p277, %p278
      %p280 = scmp.ne.s32.totalorder %s268, %s269
      %p281 = scmp.eq.s32.totalorder %s28, 1
      %p282 = por %p280, %p281
      %p284 = scmp.ne.s32.totalorder %s269, %s283
      %p285 = scmp.eq.s32.totalorder %s28, 0
      %p286 = por %p284, %p285
      %s288 = sadd.s32 %s287, 1
      %p291 = scmp.eq.s32.totalorder %s22, 1
      %p292 = scmp.ne.s32.totalorder %s287, %s289
      %p293 = scmp.eq.s32.totalorder %s22, 0
      %p294 = por %p292, %p293
      %p295 = scmp.ne.s32.totalorder %s287, %s289
      %p296 = scmp.eq.s32.totalorder %s27, 1
      %p297 = por %p295, %p296
      %p298 = scmp.ne.s32.totalorder %s289, %s290
      %p299 = scmp.eq.s32.totalorder %s27, 0
      %p300 = por %p298, %p299
      %p301 = scmp.ne.s32.totalorder %s289, %s290
      %p302 = scmp.eq.s32.totalorder %s28, 1
      %p303 = por %p301, %p302
      %p305 = scmp.ne.s32.totalorder %s290, %s304
      %p306 = scmp.eq.s32.totalorder %s28, 0
      %p307 = por %p305, %p306
      %s308 = ssub.s32 %s22, %s29
      %p309 = scmp.eq.s32.totalorder %s308, 0
      %s311 = sadd.s32 %s310, 1
      %s312 = scalar_select %p309, %s310, %s311
      %p315 = pneg %p309
      %p316 = scmp.eq.s32.totalorder %s22, 1
      %p317 = por %p315, %p316
      %p318 = scmp.ne.s32.totalorder %s310, %s313
      %p319 = scmp.eq.s32.totalorder %s22, 0
      %p320 = por %p318, %p319
      %p321 = scmp.ne.s32.totalorder %s310, %s313
      %p322 = scmp.eq.s32.totalorder %s27, 1
      %p323 = por %p321, %p322
      %p324 = scmp.ne.s32.totalorder %s313, %s314
      %p325 = scmp.eq.s32.totalorder %s27, 0
      %p326 = por %p324, %p325
      %p327 = scmp.ne.s32.totalorder %s313, %s314
      %p328 = scmp.eq.s32.totalorder %s28, 1
      %p329 = por %p327, %p328
      %p331 = scmp.ne.s32.totalorder %s314, %s330
      %p332 = scmp.eq.s32.totalorder %s28, 0
      %p333 = por %p331, %p332
      %p334 = scmp.le.s32.totalorder 1, %s22
      %p335 = scmp.lt.s32.totalorder %s22, 3
      %p336 = pnand %p334, %p335
      %p337 = pneg %p336
      // Predicated region
      $region9: #{dqn_forward.1} parent=5 // pred_check
        _
      $region10: #{dqn_forward.1} parent=5 // pred_check_branch
        %339 = sbr.rel (%p336) target = $region12
      $region11: #{dqn_forward.1} parent=5 // pred_region
        %s340 = ssub.s32 %s22, 1
        // Predicated region
        $region13: #{dqn_forward.1} parent=11 // pred_check
          %p341 = pneg %p69
        $region14: #{dqn_forward.1} parent=11 // pred_check_branch
          %343 = sbr.rel (%p341) target = $region16
        $region15: #{dqn_forward.1} parent=11 // pred_region
          _
        $region16: #{dqn_forward.1} parent=11 // pred_fallthru
          _
        // Predicated region
        $region17: #{dqn_forward.1} parent=11 // pred_check
          %p344 = pneg %p90
        $region18: #{dqn_forward.1} parent=11 // pred_check_branch
          %346 = sbr.rel (%p344) target = $region20
        $region19: #{dqn_forward.1} parent=11 // pred_region
          _
        $region20: #{dqn_forward.1} parent=11 // pred_fallthru
          _
        // Predicated region
        $region21: #{dqn_forward.1} parent=11 // pred_check
          %p347 = pneg %p111
        $region22: #{dqn_forward.1} parent=11 // pred_check_branch
          %349 = sbr.rel (%p347) target = $region24
        $region23: #{dqn_forward.1} parent=11 // pred_region
          _
        $region24: #{dqn_forward.1} parent=11 // pred_fallthru
          _
        // Predicated region
        $region25: #{dqn_forward.1} parent=11 // pred_check
          %p350 = pneg %p132
        $region26: #{dqn_forward.1} parent=11 // pred_check_branch
          %352 = sbr.rel (%p350) target = $region28
        $region27: #{dqn_forward.1} parent=11 // pred_region
          _
        $region28: #{dqn_forward.1} parent=11 // pred_fallthru
          _
        // Predicated region
        $region29: #{dqn_forward.1} parent=11 // pred_check
          %p353 = pneg %p153
        $region30: #{dqn_forward.1} parent=11 // pred_check_branch
          %355 = sbr.rel (%p353) target = $region32
        $region31: #{dqn_forward.1} parent=11 // pred_region
          _
        $region32: #{dqn_forward.1} parent=11 // pred_fallthru
          _
        // Predicated region
        $region33: #{dqn_forward.1} parent=11 // pred_check
          %p356 = pneg %p174
        $region34: #{dqn_forward.1} parent=11 // pred_check_branch
          %358 = sbr.rel (%p356) target = $region36
        $region35: #{dqn_forward.1} parent=11 // pred_region
          _
        $region36: #{dqn_forward.1} parent=11 // pred_fallthru
          _
        // Predicated region
        $region37: #{dqn_forward.1} parent=11 // pred_check
          %p359 = pneg %p195
        $region38: #{dqn_forward.1} parent=11 // pred_check_branch
          %361 = sbr.rel (%p359) target = $region40
        $region39: #{dqn_forward.1} parent=11 // pred_region
          _
        $region40: #{dqn_forward.1} parent=11 // pred_fallthru
          _
        // Predicated region
        $region41: #{dqn_forward.1} parent=11 // pred_check
          %p362 = pneg %p216
        $region42: #{dqn_forward.1} parent=11 // pred_check_branch
          %364 = sbr.rel (%p362) target = $region44
        $region43: #{dqn_forward.1} parent=11 // pred_region
          _
        $region44: #{dqn_forward.1} parent=11 // pred_fallthru
          _
        // Predicated region
        $region45: #{dqn_forward.1} parent=11 // pred_check
          %p365 = pneg %p237
        $region46: #{dqn_forward.1} parent=11 // pred_check_branch
          %367 = sbr.rel (%p365) target = $region48
        $region47: #{dqn_forward.1} parent=11 // pred_region
          _
        $region48: #{dqn_forward.1} parent=11 // pred_fallthru
          _
        // Predicated region
        $region49: #{dqn_forward.1} parent=11 // pred_check
          %p368 = pneg %p258
        $region50: #{dqn_forward.1} parent=11 // pred_check_branch
          %370 = sbr.rel (%p368) target = $region52
        $region51: #{dqn_forward.1} parent=11 // pred_region
          _
        $region52: #{dqn_forward.1} parent=11 // pred_fallthru
          _
        // Predicated region
        $region53: #{dqn_forward.1} parent=11 // pred_check
          %p371 = pneg %p279
        $region54: #{dqn_forward.1} parent=11 // pred_check_branch
          %373 = sbr.rel (%p371) target = $region56
        $region55: #{dqn_forward.1} parent=11 // pred_region
          _
        $region56: #{dqn_forward.1} parent=11 // pred_fallthru
          _
        // Predicated region
        $region57: #{dqn_forward.1} parent=11 // pred_check
          %p374 = pneg %p300
        $region58: #{dqn_forward.1} parent=11 // pred_check_branch
          %376 = sbr.rel (%p374) target = $region60
        $region59: #{dqn_forward.1} parent=11 // pred_region
          _
        $region60: #{dqn_forward.1} parent=11 // pred_fallthru
          _
      $region12: #{dqn_forward.1} parent=5 // pred_fallthru
        _
      %p377 = scmp.lt.s32.totalorder %s22, 2
      // Predicated region
      $region61: #{dqn_forward.1} parent=5 // pred_check
        %p378 = pneg %p377
      $region62: #{dqn_forward.1} parent=5 // pred_check_branch
        %380 = sbr.rel (%p378) target = $region64
      $region63: #{dqn_forward.1} parent=5 // pred_region
        // Predicated region
        $region65: #{dqn_forward.1} parent=63 // pred_check
          %p381 = pneg %p42
        $region66: #{dqn_forward.1} parent=63 // pred_check_branch
          %383 = sbr.rel (%p381) target = $region68
        $region67: #{dqn_forward.1} parent=63 // pred_region
          %p384 = scmp.lt.s32.totalorder %s22, 1
          %s385 = scalar_select %p384, %s22, 1
          %s386 = smul.addr %s385, 26
          %s387 = smul.addr %s386, 4
          %s388 = scalar_lea.vmem %s0, %s387
        $region68: #{dqn_forward.1} parent=63 // pred_fallthru
          _
      $region64: #{dqn_forward.1} parent=5 // pred_fallthru
        _
      %p389 = scmp.le.s32.totalorder 1, %s22
      %p390 = scmp.lt.s32.totalorder %s22, 3
      %p391 = pnand %p389, %p390
      %p392 = pneg %p391
      // Predicated region
      $region69: #{dqn_forward.1} parent=5 // pred_check
        _
      $region70: #{dqn_forward.1} parent=5 // pred_check_branch
        %394 = sbr.rel (%p391) target = $region72
      $region71: #{dqn_forward.1} parent=5 // pred_region
        %s395 = ssub.s32 %s22, 1
        %p396 = scmp.lt.s32.totalorder %s27, 1
        %s397 = scalar_select %p396, %s27, 1
        %s398 = smul.addr %s397, 26
        %s399 = smul.addr %s398, 4
        %s400 = scalar_lea.vmem %s0, %s399
        %p401 = pneg %p48
        %p402 = pneg %p45
        %p403 = pneg %p69
        %p404 = pneg %p66
        %p405 = pneg %p90
        %p406 = pneg %p87
        %p407 = pneg %p111
        %p408 = pneg %p108
        %p409 = pneg %p132
        %p410 = pneg %p129
        %p411 = pneg %p153
        %p412 = pneg %p150
        %p413 = pneg %p174
        %p414 = pneg %p171
        %p415 = pneg %p195
        %p416 = pneg %p192
        %p417 = pneg %p216
        %p418 = pneg %p213
        %p419 = pneg %p237
        %p420 = pneg %p234
        %p421 = pneg %p258
        %p422 = pneg %p255
        %p423 = pneg %p279
        %p424 = pneg %p276
        %p425 = pneg %p300
        %p426 = pneg %p297
        %p427 = pneg %p326
        %p428 = pneg %p323
        %s429 = sand.u32 %s313, 1
        %s430 = scalar_lea.sflag [#allocation3], %s429
        %s431 = sand.u32 %s313, 1
        %s432 = scalar_lea.vmem [#allocation2], %s431
        %p433 = scmp.lt.s32.totalorder %s27, 1
        %s434 = scalar_select %p433, %s27, 1
        %s435 = smul.addr %s434, 26
        %s436 = smul.addr %s435, 4
        %s437 = scalar_lea.vmem %s0, %s436
        %v439 = vld [vmem:[%s437] sm:$0xff]
        %v440 = vld [vmem:[%s437 + $0x8] sm:$0xff]
        %v441 = vld [vmem:[%s437 + $0x10] sm:$0xff]
        %v442 = vld [vmem:[%s437 + $0x18] sm:$0xff]
        %v443 = vld [vmem:[%s437 + $0x20] sm:$0xff]
        %v444 = vld [vmem:[%s437 + $0x28] sm:$0xff]
        %v445 = vld [vmem:[%s437 + $0x30] sm:$0xff]
        %v446 = vld [vmem:[%s437 + $0x38] sm:$0xff]
        %v447 = vld [vmem:[%s437 + $0x40] sm:$0xff]
        %v448 = vld [vmem:[%s437 + $0x48] sm:$0xff]
        %v449 = vld [vmem:[%s437 + $0x50] sm:$0xff]
        %v450 = vld [vmem:[%s437 + $0x58] sm:$0xff]
        %v451 = vld [vmem:[%s437 + $0x60] sm:$0x33]
        %v452 = vld [vmem:[%s1] sm:$0xf]
        %v453 = vld [vmem:[%s1 + $0x4] sm:$0xf]
        %v454 = vld [vmem:[%s1 + $0x8] sm:$0xf]
        %v455 = vld [vmem:[%s1 + $0xc] sm:$0xf]
        %v456 = vld [vmem:[%s1 + $0x10] sm:$0xf]
        %v457 = vld [vmem:[%s1 + $0x14] sm:$0xf]
        %v458 = vld [vmem:[%s1 + $0x18] sm:$0xf]
        %v459 = vld [vmem:[%s1 + $0x1c] sm:$0xf]
        %v460 = vld [vmem:[%s1 + $0x20] sm:$0xf]
        %v461 = vld [vmem:[%s1 + $0x24] sm:$0xf]
        %v462 = vld [vmem:[%s1 + $0x28] sm:$0xf]
        %v463 = vld [vmem:[%s1 + $0x2c] sm:$0xf]
        %v464 = vld [vmem:[%s1 + $0x30] sm:$0xf]
        %v465 = vld [vmem:[%s1 + $0x34] sm:$0xf]
        %v466 = vld [vmem:[%s1 + $0x38] sm:$0xf]
        %v467 = vld [vmem:[%s1 + $0x3c] sm:$0xf]
        %v468 = vld [vmem:[%s1 + $0x40] sm:$0xf]
        %v469 = vld [vmem:[%s1 + $0x44] sm:$0xf]
        %v470 = vld [vmem:[%s1 + $0x48] sm:$0xf]
        %v471 = vld [vmem:[%s1 + $0x4c] sm:$0xf]
        %v472 = vld [vmem:[%s1 + $0x50] sm:$0xf]
        %v473 = vld [vmem:[%s1 + $0x54] sm:$0xf]
        %v474 = vld [vmem:[%s1 + $0x58] sm:$0xf]
        %v475 = vld [vmem:[%s1 + $0x5c] sm:$0xf]
        %v476 = vld [vmem:[%s1 + $0x60] sm:$0xf]
        %v477 = vld [vmem:[%s1 + $0x64] sm:$0xf]
        %v478 = vld [vmem:[%s1 + $0x68] sm:$0xf]
        %v479 = vld [vmem:[%s1 + $0x6c] sm:$0xf]
        %v480 = vld [vmem:[%s1 + $0x70] sm:$0xf]
        %v481 = vld [vmem:[%s1 + $0x74] sm:$0xf]
        %v482 = vld [vmem:[%s1 + $0x78] sm:$0xf]
        %v483 = vld [vmem:[%s1 + $0x7c] sm:$0xf]
        %v484 = vld [vmem:[%s2] sm:$0x1]
        %v486 = vlaneseq
        %v487 = vshrl.u32 %v486, 7
        %v488 = vsub.s32 0, %v487
        %v489 = vrot.slane %v484, %v488
        %v504 = vunpack.c.l.b16 %v439
        %v505 = vunpack.c.h.b16 %v439
        %v506 = vunpack.c.l.b16 %v440
        %v507 = vunpack.c.h.b16 %v440
        %v508 = vunpack.c.l.b16 %v441
        %v509 = vunpack.c.h.b16 %v441
        %v510 = vunpack.c.l.b16 %v442
        %v511 = vunpack.c.h.b16 %v442
        %v512 = vunpack.c.l.b16 %v443
        %v513 = vunpack.c.h.b16 %v443
        %v514 = vunpack.c.l.b16 %v444
        %v515 = vunpack.c.h.b16 %v444
        %v516 = vunpack.c.l.b16 %v445
        %v517 = vunpack.c.h.b16 %v445
        %v518 = vunpack.c.l.b16 %v446
        %v519 = vunpack.c.h.b16 %v446
        %v520 = vunpack.c.l.b16 %v447
        %v521 = vunpack.c.h.b16 %v447
        %v522 = vunpack.c.l.b16 %v448
        %v523 = vunpack.c.h.b16 %v448
        %v524 = vunpack.c.l.b16 %v449
        %v525 = vunpack.c.h.b16 %v449
        %v526 = vunpack.c.l.b16 %v450
        %v527 = vunpack.c.h.b16 %v450
        %v528 = vunpack.c.l.b16 %v451
        %v529 = vunpack.c.h.b16 %v451
        %v530 = vpack.c.b16 %v506, %v504
        %v531 = vpack.c.b16 %v507, %v505
        %v532 = vpack.c.b16 %v510, %v508
        %v533 = vpack.c.b16 %v511, %v509
        %v534 = vpack.c.b16 %v514, %v512
        %v535 = vpack.c.b16 %v515, %v513
        %v536 = vpack.c.b16 %v518, %v516
        %v537 = vpack.c.b16 %v519, %v517
        %v538 = vpack.c.b16 %v522, %v520
        %v539 = vpack.c.b16 %v523, %v521
        %v540 = vpack.c.b16 %v526, %v524
        %v541 = vpack.c.b16 %v527, %v525
        %v542 = vpack.c.b16 %v528, %v528
        %v543 = vpack.c.b16 %v529, %v529
        %v590 = vunpack.c.l.b16 %v452
        %v591 = vunpack.c.l.b16 %v453
        %v592 = vunpack.c.l.b16 %v454
        %v593 = vunpack.c.l.b16 %v455
        %v594 = vunpack.c.l.b16 %v456
        %v595 = vunpack.c.l.b16 %v457
        %v596 = vunpack.c.l.b16 %v458
        %v597 = vunpack.c.l.b16 %v459
        %v598 = vunpack.c.l.b16 %v460
        %v599 = vunpack.c.l.b16 %v461
        %v600 = vunpack.c.l.b16 %v462
        %v601 = vunpack.c.l.b16 %v463
        %v602 = vunpack.c.l.b16 %v464
        %v603 = vunpack.c.l.b16 %v465
        %v604 = vunpack.c.l.b16 %v466
        %v605 = vunpack.c.l.b16 %v467
        %v606 = vunpack.c.l.b16 %v468
        %v607 = vunpack.c.l.b16 %v469
        %v608 = vunpack.c.l.b16 %v470
        %v609 = vunpack.c.l.b16 %v471
        %v610 = vunpack.c.l.b16 %v472
        %v611 = vunpack.c.l.b16 %v473
        %v612 = vunpack.c.l.b16 %v474
        %v613 = vunpack.c.l.b16 %v475
        %v614 = vunpack.c.l.b16 %v476
        %v615 = vunpack.c.l.b16 %v477
        %v616 = vunpack.c.l.b16 %v478
        %v617 = vunpack.c.l.b16 %v479
        %v618 = vunpack.c.l.b16 %v480
        %v619 = vunpack.c.l.b16 %v481
        %v620 = vunpack.c.l.b16 %v482
        %v621 = vunpack.c.l.b16 %v483
        %v622 = vpack.c.b16 %v591, %v590
        %v623 = vpack.c.b16 %v593, %v592
        %v624 = vpack.c.b16 %v595, %v594
        %v625 = vpack.c.b16 %v597, %v596
        %v626 = vpack.c.b16 %v599, %v598
        %v627 = vpack.c.b16 %v601, %v600
        %v628 = vpack.c.b16 %v603, %v602
        %v629 = vpack.c.b16 %v605, %v604
        %v630 = vpack.c.b16 %v607, %v606
        %v631 = vpack.c.b16 %v609, %v608
        %v632 = vpack.c.b16 %v611, %v610
        %v633 = vpack.c.b16 %v613, %v612
        %v634 = vpack.c.b16 %v615, %v614
        %v635 = vpack.c.b16 %v617, %v616
        %v636 = vpack.c.b16 %v619, %v618
        %v637 = vpack.c.b16 %v621, %v620
        %654 = vmatprep.subr.bf16.mxu0 0
        %655 = vmatpush1.bf16.msra.mxu0 %v622
        %656 = vmatprep.subr.bf16.mxu0 0
        %657 = vmatpush1.bf16.msra.mxu0 %v623
        %658 = vmatprep.subr.bf16.mxu0 0
        %659 = vmatpush1.bf16.msra.mxu0 %v624
        %660 = vmatprep.subr.bf16.mxu0 0
        %661 = vmatpush1.bf16.msra.mxu0 %v625
        %662 = vmatprep.subr.bf16.mxu0 0
        %663 = vmatpush1.bf16.msra.mxu0 %v626
        %664 = vmatprep.subr.bf16.mxu0 0
        %665 = vmatpush1.bf16.msra.mxu0 %v627
        %666 = vmatprep.subr.bf16.mxu0 0
        %667 = vmatpush1.bf16.msra.mxu0 %v628
        %668 = vmatprep.subr.bf16.mxu0 0
        %669 = vmatpush1.bf16.msra.mxu0 %v629
        %670 = vmatprep.subr.bf16.mxu0 0
        %671 = vmatpush1.bf16.msra.mxu0 %v630
        %672 = vmatprep.subr.bf16.mxu0 0
        %673 = vmatpush1.bf16.msra.mxu0 %v631
        %674 = vmatprep.subr.bf16.mxu0 0
        %675 = vmatpush1.bf16.msra.mxu0 %v632
        %676 = vmatprep.subr.bf16.mxu0 0
        %677 = vmatpush1.bf16.msra.mxu0 %v633
        %678 = vmatprep.subr.bf16.mxu0 0
        %679 = vmatpush1.bf16.msra.mxu0 %v634
        %680 = vmatprep.subr.bf16.mxu0 0
        %681 = vmatpush1.bf16.msra.mxu0 %v635
        %682 = vmatprep.subr.bf16.mxu0 0
        %683 = vmatpush1.bf16.msra.mxu0 %v636
        %684 = vmatprep.subr.bf16.mxu0 0
        %685 = vmatpush1.bf16.msra.mxu0 %v637
        %686 = vmatprep.mubr.bf16.mxu0 %v531
        %687 = vmatmul.mubr.bf16.gmra.mrb[0].mxu0 %v530
        %v688 = vpop.f32.mrb[0].mxu0
        %v689 = vadd.f32 %v489, %v688
        %v690 = vpop.f32.mrb[0].mxu0
        %v691 = vpop.f32.mrb[0].mxu0
        %v692 = vadd.f32 %v489, %v691
        %v693 = vpop.f32.mrb[0].mxu0
        %694 = vmatprep.mubr.bf16.mxu0 %v533
        %695 = vmatmul.mubr.bf16.gmra.mrb[0].mxu0 %v532
        %v696 = vpop.f32.mrb[0].mxu0
        %v697 = vadd.f32 %v489, %v696
        %v698 = vpop.f32.mrb[0].mxu0
        %v699 = vpop.f32.mrb[0].mxu0
        %v700 = vadd.f32 %v489, %v699
        %v701 = vpop.f32.mrb[0].mxu0
        %702 = vmatprep.mubr.bf16.mxu0 %v535
        %703 = vmatmul.mubr.bf16.gmra.mrb[0].mxu0 %v534
        %v704 = vpop.f32.mrb[0].mxu0
        %v705 = vadd.f32 %v489, %v704
        %v706 = vpop.f32.mrb[0].mxu0
        %v707 = vpop.f32.mrb[0].mxu0
        %v708 = vadd.f32 %v489, %v707
        %v709 = vpop.f32.mrb[0].mxu0
        %710 = vmatprep.mubr.bf16.mxu0 %v537
        %711 = vmatmul.mubr.bf16.gmra.mrb[0].mxu0 %v536
        %v712 = vpop.f32.mrb[0].mxu0
        %v713 = vadd.f32 %v489, %v712
        %v714 = vpop.f32.mrb[0].mxu0
        %v715 = vpop.f32.mrb[0].mxu0
        %v716 = vadd.f32 %v489, %v715
        %v717 = vpop.f32.mrb[0].mxu0
        %718 = vmatprep.mubr.bf16.mxu0 %v539
        %719 = vmatmul.mubr.bf16.gmra.mrb[0].mxu0 %v538
        %v720 = vpop.f32.mrb[0].mxu0
        %v721 = vadd.f32 %v489, %v720
        %v722 = vpop.f32.mrb[0].mxu0
        %v723 = vpop.f32.mrb[0].mxu0
        %v724 = vadd.f32 %v489, %v723
        %v725 = vpop.f32.mrb[0].mxu0
        %726 = vmatprep.mubr.bf16.mxu0 %v541
        %727 = vmatmul.mubr.bf16.gmra.mrb[0].mxu0 %v540
        %v728 = vpop.f32.mrb[0].mxu0
        %v729 = vadd.f32 %v489, %v728
        %v730 = vpop.f32.mrb[0].mxu0
        %v731 = vpop.f32.mrb[0].mxu0
        %v732 = vadd.f32 %v489, %v731
        %v733 = vpop.f32.mrb[0].mxu0
        %734 = vmatprep.mubr.bf16.mxu0 %v543
        %735 = vmatmul.mubr.bf16.gmra.mrb[0].mxu0 %v542
        %v736 = vpop.f32.mrb[0].mxu0
        %v737 = vadd.f32 %v489, %v736
        %v738 = vpop.f32.mrb[0].mxu0
        %v739 = vpop.f32.mrb[0].mxu0
        %v740 = vpop.f32.mrb[0].mxu0
        %741 = vdwg.mxu0
        %v742 = vmax.f32 %v689, 0.0
        %v743 = vmax.f32 %v692, 0.0
        %v744 = vmax.f32 %v697, 0.0
        %v745 = vmax.f32 %v700, 0.0
        %v746 = vmax.f32 %v705, 0.0
        %v747 = vmax.f32 %v708, 0.0
        %v748 = vmax.f32 %v713, 0.0
        %v749 = vmax.f32 %v716, 0.0
        %v750 = vmax.f32 %v721, 0.0
        %v751 = vmax.f32 %v724, 0.0
        %v752 = vmax.f32 %v729, 0.0
        %v753 = vmax.f32 %v732, 0.0
        %v754 = vmax.f32 %v737, 0.0
        %v755 = vpack.c.bf16 %v743, %v742
        %v756 = vpack.c.bf16 %v745, %v744
        %v757 = vpack.c.bf16 %v747, %v746
        %v758 = vpack.c.bf16 %v749, %v748
        %v759 = vpack.c.bf16 %v751, %v750
        %v760 = vpack.c.bf16 %v753, %v752
        %v761 = vpack.c.bf16 %v754, %v754
        %v762 = vld [vmem:[%s3] sm:$0xf]
        %v763 = vld [vmem:[%s3 + $0x4] sm:$0xf]
        %v766 = vunpack.c.l.b16 %v762
        %v767 = vunpack.c.l.b16 %v763
        %v768 = vpack.c.b16 %v767, %v766
        %vm769 = vcmask 818176
        %v771 = vsel %vm769, %v768, 0
        %vm773 = vcmask 1041408
        %v775 = vsel %vm773, %v761, 0
        %777 = vmatprep.subr.bf16.mxu0 0
        %778 = vmatpush1.bf16.msra.mxu0 %v755
        %779 = vmatprep.subr.bf16.mxu0 0
        %780 = vmatpush1.bf16.msra.mxu0 %v756
        %781 = vmatprep.subr.bf16.mxu0 0
        %782 = vmatpush1.bf16.msra.mxu0 %v757
        %783 = vmatprep.subr.bf16.mxu0 0
        %784 = vmatpush1.bf16.msra.mxu0 %v758
        %785 = vmatprep.subr.bf16.mxu0 0
        %786 = vmatpush1.bf16.msra.mxu0 %v759
        %787 = vmatprep.subr.bf16.mxu0 0
        %788 = vmatpush1.bf16.msra.mxu0 %v760
        %789 = vmatprep.subr.bf16.mxu0 0
        %790 = vmatpush1.bf16.msra.mxu0 %v775
        %791 = vmatprep.subr.bf16.mxu0 0
        %792 = vmatpush1.bf16.msra.mxu0 0
        %793 = vmatprep.subr.bf16.mxu0 0
        %794 = vmatpush1.bf16.msra.mxu0 0
        %795 = vmatprep.subr.bf16.mxu0 0
        %796 = vmatpush1.bf16.msra.mxu0 0
        %797 = vmatprep.subr.bf16.mxu0 0
        %798 = vmatpush1.bf16.msra.mxu0 0
        %799 = vmatprep.subr.bf16.mxu0 0
        %800 = vmatpush1.bf16.msra.mxu0 0
        %801 = vmatprep.subr.bf16.mxu0 0
        %802 = vmatpush1.bf16.msra.mxu0 0
        %803 = vmatprep.subr.bf16.mxu0 0
        %804 = vmatpush1.bf16.msra.mxu0 0
        %805 = vmatprep.subr.bf16.mxu0 0
        %806 = vmatpush1.bf16.msra.mxu0 0
        %807 = vmatprep.subr.bf16.mxu0 0
        %808 = vmatpush1.bf16.msra.mxu0 0
        %809 = vmatprep.mubr.bf16.mxu0 0
        %810 = vmatmul.mubr.bf16.gmra.mrb[0].mxu0 %v771
        %v811 = vpop.f32.mrb[0].mxu0
        %v812 = vadd.f32 0.0, %v811
        %v813 = vpop.f32.mrb[0].mxu0
        %v814 = vpop.f32.mrb[0].mxu0
        %v815 = vadd.f32 0.0, %v814
        %v816 = vpop.f32.mrb[0].mxu0
        %817 = vdwg.mxu0
        %v818 = vpack.c.bf16 %v815, %v812
        %v819 = vld [vmem:[%s4] sm:$0xf]
        %v820 = vld [vmem:[%s4 + $0x4] sm:$0xf]
        %v821 = vld [vmem:[%s4 + $0x8] sm:$0xf]
        %v822 = vld [vmem:[%s4 + $0xc] sm:$0xf]
        %s823 = scalar_lea.vmem %s3, 8
        %v824 = vld [vmem:[%s823] sm:$0xf]
        %v825 = vld [vmem:[%s823 + $0x4] sm:$0xf]
        %v828 = vunpack.c.l.b16 %v824
        %v829 = vunpack.c.l.b16 %v825
        %v830 = vpack.c.b16 %v829, %v828
        %v832 = vsel %vm769, %v830, 0
        %834 = vmatprep.subr.bf16.mxu0 0
        %835 = vmatpush1.bf16.msra.mxu0 %v755
        %836 = vmatprep.subr.bf16.mxu0 0
        %837 = vmatpush1.bf16.msra.mxu0 %v756
        %838 = vmatprep.subr.bf16.mxu0 0
        %839 = vmatpush1.bf16.msra.mxu0 %v757
        %840 = vmatprep.subr.bf16.mxu0 0
        %841 = vmatpush1.bf16.msra.mxu0 %v758
        %842 = vmatprep.subr.bf16.mxu0 0
        %843 = vmatpush1.bf16.msra.mxu0 %v759
        %844 = vmatprep.subr.bf16.mxu0 0
        %845 = vmatpush1.bf16.msra.mxu0 %v760
        %846 = vmatprep.subr.bf16.mxu0 0
        %847 = vmatpush1.bf16.msra.mxu0 %v775
        %848 = vmatprep.subr.bf16.mxu0 0
        %849 = vmatpush1.bf16.msra.mxu0 0
        %850 = vmatprep.subr.bf16.mxu0 0
        %851 = vmatpush1.bf16.msra.mxu0 0
        %852 = vmatprep.subr.bf16.mxu0 0
        %853 = vmatpush1.bf16.msra.mxu0 0
        %854 = vmatprep.subr.bf16.mxu0 0
        %855 = vmatpush1.bf16.msra.mxu0 0
        %856 = vmatprep.subr.bf16.mxu0 0
        %857 = vmatpush1.bf16.msra.mxu0 0
        %858 = vmatprep.subr.bf16.mxu0 0
        %859 = vmatpush1.bf16.msra.mxu0 0
        %860 = vmatprep.subr.bf16.mxu0 0
        %861 = vmatpush1.bf16.msra.mxu0 0
        %862 = vmatprep.subr.bf16.mxu0 0
        %863 = vmatpush1.bf16.msra.mxu0 0
        %864 = vmatprep.subr.bf16.mxu0 0
        %865 = vmatpush1.bf16.msra.mxu0 0
        %866 = vmatprep.mubr.bf16.mxu0 0
        %867 = vmatmul.mubr.bf16.gmra.mrb[0].mxu0 %v832
        %v868 = vpop.f32.mrb[0].mxu0
        %v869 = vadd.f32 0.0, %v868
        %v870 = vpop.f32.mrb[0].mxu0
        %v871 = vpop.f32.mrb[0].mxu0
        %v872 = vadd.f32 0.0, %v871
        %v873 = vpop.f32.mrb[0].mxu0
        %874 = vdwg.mxu0
        %v875 = vpack.c.bf16 %v872, %v869
        %s876 = scalar_lea.vmem %s4, 16
        %v877 = vld [vmem:[%s876] sm:$0xf]
        %v878 = vld [vmem:[%s876 + $0x4] sm:$0xf]
        %v879 = vld [vmem:[%s876 + $0x8] sm:$0xf]
        %v880 = vld [vmem:[%s876 + $0xc] sm:$0xf]
        %v885 = vunpack.c.l.b16 %v877
        %v886 = vunpack.c.l.b16 %v878
        %v887 = vunpack.c.l.b16 %v879
        %v888 = vunpack.c.l.b16 %v880
        %v889 = vpack.c.b16 %v886, %v885
        %v890 = vpack.c.b16 %v888, %v887
        %vm893 = vcmask 261120
        %v895 = vsel %vm893, %v875, 0
        %897 = vmatprep.subr.bf16.mxu0 0
        %898 = vmatpush1.bf16.msra.mxu0 %v889
        %899 = vmatprep.subr.bf16.mxu0 0
        %900 = vmatpush1.bf16.msra.mxu0 %v890
        %901 = vmatprep.subr.bf16.mxu0 0
        %902 = vmatpush1.bf16.msra.mxu0 0
        %903 = vmatprep.subr.bf16.mxu0 0
        %904 = vmatpush1.bf16.msra.mxu0 0
        %905 = vmatprep.subr.bf16.mxu0 0
        %906 = vmatpush1.bf16.msra.mxu0 0
        %907 = vmatprep.subr.bf16.mxu0 0
        %908 = vmatpush1.bf16.msra.mxu0 0
        %909 = vmatprep.subr.bf16.mxu0 0
        %910 = vmatpush1.bf16.msra.mxu0 0
        %911 = vmatprep.subr.bf16.mxu0 0
        %912 = vmatpush1.bf16.msra.mxu0 0
        %913 = vmatprep.subr.bf16.mxu0 0
        %914 = vmatpush1.bf16.msra.mxu0 0
        %915 = vmatprep.subr.bf16.mxu0 0
        %916 = vmatpush1.bf16.msra.mxu0 0
        %917 = vmatprep.subr.bf16.mxu0 0
        %918 = vmatpush1.bf16.msra.mxu0 0
        %919 = vmatprep.subr.bf16.mxu0 0
        %920 = vmatpush1.bf16.msra.mxu0 0
        %921 = vmatprep.subr.bf16.mxu0 0
        %922 = vmatpush1.bf16.msra.mxu0 0
        %923 = vmatprep.subr.bf16.mxu0 0
        %924 = vmatpush1.bf16.msra.mxu0 0
        %925 = vmatprep.subr.bf16.mxu0 0
        %926 = vmatpush1.bf16.msra.mxu0 0
        %927 = vmatprep.subr.bf16.mxu0 0
        %928 = vmatpush1.bf16.msra.mxu0 0
        %929 = vmatprep.mubr.bf16.mxu0 0
        %930 = vmatmul.mubr.bf16.gmra.mrb[0].mxu0 %v895
        %v931 = vpop.f32.mrb[0].mxu0
        %v932 = vadd.f32 0.0, %v931
        %v933 = vpop.f32.mrb[0].mxu0
        %v934 = vpop.f32.mrb[0].mxu0
        %v935 = vadd.f32 0.0, %v934
        %v936 = vpop.f32.mrb[0].mxu0
        %937 = vdwg.mxu0
        %v942 = vunpack.c.l.b16 %v819
        %v943 = vunpack.c.l.b16 %v820
        %v944 = vunpack.c.l.b16 %v821
        %v945 = vunpack.c.l.b16 %v822
        %v946 = vpack.c.b16 %v943, %v942
        %v947 = vpack.c.b16 %v945, %v944
        %v951 = vsel %vm893, %v818, 0
        %953 = vmatprep.subr.bf16.mxu0 0
        %954 = vmatpush1.bf16.msra.mxu0 %v946
        %955 = vmatprep.subr.bf16.mxu0 0
        %956 = vmatpush1.bf16.msra.mxu0 %v947
        %957 = vmatprep.subr.bf16.mxu0 0
        %958 = vmatpush1.bf16.msra.mxu0 0
        %959 = vmatprep.subr.bf16.mxu0 0
        %960 = vmatpush1.bf16.msra.mxu0 0
        %961 = vmatprep.subr.bf16.mxu0 0
        %962 = vmatpush1.bf16.msra.mxu0 0
        %963 = vmatprep.subr.bf16.mxu0 0
        %964 = vmatpush1.bf16.msra.mxu0 0
        %965 = vmatprep.subr.bf16.mxu0 0
        %966 = vmatpush1.bf16.msra.mxu0 0
        %967 = vmatprep.subr.bf16.mxu0 0
        %968 = vmatpush1.bf16.msra.mxu0 0
        %969 = vmatprep.subr.bf16.mxu0 0
        %970 = vmatpush1.bf16.msra.mxu0 0
        %971 = vmatprep.subr.bf16.mxu0 0
        %972 = vmatpush1.bf16.msra.mxu0 0
        %973 = vmatprep.subr.bf16.mxu0 0
        %974 = vmatpush1.bf16.msra.mxu0 0
        %975 = vmatprep.subr.bf16.mxu0 0
        %976 = vmatpush1.bf16.msra.mxu0 0
        %977 = vmatprep.subr.bf16.mxu0 0
        %978 = vmatpush1.bf16.msra.mxu0 0
        %979 = vmatprep.subr.bf16.mxu0 0
        %980 = vmatpush1.bf16.msra.mxu0 0
        %981 = vmatprep.subr.bf16.mxu0 0
        %982 = vmatpush1.bf16.msra.mxu0 0
        %983 = vmatprep.subr.bf16.mxu0 0
        %984 = vmatpush1.bf16.msra.mxu0 0
        %985 = vmatprep.mubr.bf16.mxu0 0
        %986 = vmatmul.mubr.bf16.gmra.mrb[0].mxu0 %v951
        %v987 = vpop.f32.mrb[0].mxu0
        %v988 = vadd.f32 %v932, %v987
        %v989 = vpop.f32.mrb[0].mxu0
        %v990 = vpop.f32.mrb[0].mxu0
        %v991 = vadd.f32 %v935, %v990
        %v992 = vpop.f32.mrb[0].mxu0
        %993 = vdwg.mxu0
        %s994 = scalar_lea.vmem %s3, 16
        %v995 = vld [vmem:[%s994] sm:$0xf]
        %v996 = vld [vmem:[%s994 + $0x4] sm:$0xf]
        %v999 = vunpack.c.l.b16 %v995
        %v1000 = vunpack.c.l.b16 %v996
        %v1001 = vpack.c.b16 %v1000, %v999
        %v1003 = vsel %vm769, %v1001, 0
        %1005 = vmatprep.subr.bf16.mxu0 0
        %1006 = vmatpush1.bf16.msra.mxu0 %v755
        %1007 = vmatprep.subr.bf16.mxu0 0
        %1008 = vmatpush1.bf16.msra.mxu0 %v756
        %1009 = vmatprep.subr.bf16.mxu0 0
        %1010 = vmatpush1.bf16.msra.mxu0 %v757
        %1011 = vmatprep.subr.bf16.mxu0 0
        %1012 = vmatpush1.bf16.msra.mxu0 %v758
        %1013 = vmatprep.subr.bf16.mxu0 0
        %1014 = vmatpush1.bf16.msra.mxu0 %v759
        %1015 = vmatprep.subr.bf16.mxu0 0
        %1016 = vmatpush1.bf16.msra.mxu0 %v760
        %1017 = vmatprep.subr.bf16.mxu0 0
        %1018 = vmatpush1.bf16.msra.mxu0 %v775
        %1019 = vmatprep.subr.bf16.mxu0 0
        %1020 = vmatpush1.bf16.msra.mxu0 0
        %1021 = vmatprep.subr.bf16.mxu0 0
        %1022 = vmatpush1.bf16.msra.mxu0 0
        %1023 = vmatprep.subr.bf16.mxu0 0
        %1024 = vmatpush1.bf16.msra.mxu0 0
        %1025 = vmatprep.subr.bf16.mxu0 0
        %1026 = vmatpush1.bf16.msra.mxu0 0
        %1027 = vmatprep.subr.bf16.mxu0 0
        %1028 = vmatpush1.bf16.msra.mxu0 0
        %1029 = vmatprep.subr.bf16.mxu0 0
        %1030 = vmatpush1.bf16.msra.mxu0 0
        %1031 = vmatprep.subr.bf16.mxu0 0
        %1032 = vmatpush1.bf16.msra.mxu0 0
        %1033 = vmatprep.subr.bf16.mxu0 0
        %1034 = vmatpush1.bf16.msra.mxu0 0
        %1035 = vmatprep.subr.bf16.mxu0 0
        %1036 = vmatpush1.bf16.msra.mxu0 0
        %1037 = vmatprep.mubr.bf16.mxu0 0
        %1038 = vmatmul.mubr.bf16.gmra.mrb[0].mxu0 %v1003
        %v1039 = vpop.f32.mrb[0].mxu0
        %v1040 = vadd.f32 0.0, %v1039
        %v1041 = vpop.f32.mrb[0].mxu0
        %v1042 = vpop.f32.mrb[0].mxu0
        %v1043 = vadd.f32 0.0, %v1042
        %v1044 = vpop.f32.mrb[0].mxu0
        %1045 = vdwg.mxu0
        %v1046 = vpack.c.bf16 %v1043, %v1040
        %s1047 = scalar_lea.vmem %s4, 32
        %v1048 = vld [vmem:[%s1047] sm:$0xf]
        %v1049 = vld [vmem:[%s1047 + $0x4] sm:$0xf]
        %v1050 = vld [vmem:[%s1047 + $0x8] sm:$0xf]
        %v1051 = vld [vmem:[%s1047 + $0xc] sm:$0xf]
        %v1056 = vunpack.c.l.b16 %v1048
        %v1057 = vunpack.c.l.b16 %v1049
        %v1058 = vunpack.c.l.b16 %v1050
        %v1059 = vunpack.c.l.b16 %v1051
        %v1060 = vpack.c.b16 %v1057, %v1056
        %v1061 = vpack.c.b16 %v1059, %v1058
        %v1065 = vsel %vm893, %v1046, 0
        %1067 = vmatprep.subr.bf16.mxu0 0
        %1068 = vmatpush1.bf16.msra.mxu0 %v1060
        %1069 = vmatprep.subr.bf16.mxu0 0
        %1070 = vmatpush1.bf16.msra.mxu0 %v1061
        %1071 = vmatprep.subr.bf16.mxu0 0
        %1072 = vmatpush1.bf16.msra.mxu0 0
        %1073 = vmatprep.subr.bf16.mxu0 0
        %1074 = vmatpush1.bf16.msra.mxu0 0
        %1075 = vmatprep.subr.bf16.mxu0 0
        %1076 = vmatpush1.bf16.msra.mxu0 0
        %1077 = vmatprep.subr.bf16.mxu0 0
        %1078 = vmatpush1.bf16.msra.mxu0 0
        %1079 = vmatprep.subr.bf16.mxu0 0
        %1080 = vmatpush1.bf16.msra.mxu0 0
        %1081 = vmatprep.subr.bf16.mxu0 0
        %1082 = vmatpush1.bf16.msra.mxu0 0
        %1083 = vmatprep.subr.bf16.mxu0 0
        %1084 = vmatpush1.bf16.msra.mxu0 0
        %1085 = vmatprep.subr.bf16.mxu0 0
        %1086 = vmatpush1.bf16.msra.mxu0 0
        %1087 = vmatprep.subr.bf16.mxu0 0
        %1088 = vmatpush1.bf16.msra.mxu0 0
        %1089 = vmatprep.subr.bf16.mxu0 0
        %1090 = vmatpush1.bf16.msra.mxu0 0
        %1091 = vmatprep.subr.bf16.mxu0 0
        %1092 = vmatpush1.bf16.msra.mxu0 0
        %1093 = vmatprep.subr.bf16.mxu0 0
        %1094 = vmatpush1.bf16.msra.mxu0 0
        %1095 = vmatprep.subr.bf16.mxu0 0
        %1096 = vmatpush1.bf16.msra.mxu0 0
        %1097 = vmatprep.subr.bf16.mxu0 0
        %1098 = vmatpush1.bf16.msra.mxu0 0
        %1099 = vmatprep.mubr.bf16.mxu0 0
        %1100 = vmatmul.mubr.bf16.gmra.mrb[0].mxu0 %v1065
        %v1101 = vpop.f32.mrb[0].mxu0
        %v1102 = vadd.f32 0.0, %v1101
        %v1103 = vpop.f32.mrb[0].mxu0
        %v1104 = vpop.f32.mrb[0].mxu0
        %v1105 = vadd.f32 0.0, %v1104
        %v1106 = vpop.f32.mrb[0].mxu0
        %1107 = vdwg.mxu0
        %v1108 = vadd.f32 %v988, %v1102
        %v1109 = vadd.f32 %v991, %v1105
        %s1110 = scalar_lea.vmem %s3, 24
        %v1111 = vld [vmem:[%s1110] sm:$0xf]
        %v1112 = vld [vmem:[%s1110 + $0x4] sm:$0xf]
        %v1115 = vunpack.c.l.b16 %v1111
        %v1116 = vunpack.c.l.b16 %v1112
        %v1117 = vpack.c.b16 %v1116, %v1115
        %v1119 = vsel %vm769, %v1117, 0
        %1121 = vmatprep.subr.bf16.mxu0 0
        %1122 = vmatpush1.bf16.msra.mxu0 %v755
        %1123 = vmatprep.subr.bf16.mxu0 0
        %1124 = vmatpush1.bf16.msra.mxu0 %v756
        %1125 = vmatprep.subr.bf16.mxu0 0
        %1126 = vmatpush1.bf16.msra.mxu0 %v757
        %1127 = vmatprep.subr.bf16.mxu0 0
        %1128 = vmatpush1.bf16.msra.mxu0 %v758
        %1129 = vmatprep.subr.bf16.mxu0 0
        %1130 = vmatpush1.bf16.msra.mxu0 %v759
        %1131 = vmatprep.subr.bf16.mxu0 0
        %1132 = vmatpush1.bf16.msra.mxu0 %v760
        %1133 = vmatprep.subr.bf16.mxu0 0
        %1134 = vmatpush1.bf16.msra.mxu0 %v775
        %1135 = vmatprep.subr.bf16.mxu0 0
        %1136 = vmatpush1.bf16.msra.mxu0 0
        %1137 = vmatprep.subr.bf16.mxu0 0
        %1138 = vmatpush1.bf16.msra.mxu0 0
        %1139 = vmatprep.subr.bf16.mxu0 0
        %1140 = vmatpush1.bf16.msra.mxu0 0
        %1141 = vmatprep.subr.bf16.mxu0 0
        %1142 = vmatpush1.bf16.msra.mxu0 0
        %1143 = vmatprep.subr.bf16.mxu0 0
        %1144 = vmatpush1.bf16.msra.mxu0 0
        %1145 = vmatprep.subr.bf16.mxu0 0
        %1146 = vmatpush1.bf16.msra.mxu0 0
        %1147 = vmatprep.subr.bf16.mxu0 0
        %1148 = vmatpush1.bf16.msra.mxu0 0
        %1149 = vmatprep.subr.bf16.mxu0 0
        %1150 = vmatpush1.bf16.msra.mxu0 0
        %1151 = vmatprep.subr.bf16.mxu0 0
        %1152 = vmatpush1.bf16.msra.mxu0 0
        %1153 = vmatprep.mubr.bf16.mxu0 0
        %1154 = vmatmul.mubr.bf16.gmra.mrb[0].mxu0 %v1119
        %v1155 = vpop.f32.mrb[0].mxu0
        %v1156 = vadd.f32 0.0, %v1155
        %v1157 = vpop.f32.mrb[0].mxu0
        %v1158 = vpop.f32.mrb[0].mxu0
        %v1159 = vadd.f32 0.0, %v1158
        %v1160 = vpop.f32.mrb[0].mxu0
        %1161 = vdwg.mxu0
        %v1162 = vpack.c.bf16 %v1159, %v1156
        %s1163 = scalar_lea.vmem %s4, 48
        %v1164 = vld [vmem:[%s1163] sm:$0xf]
        %v1165 = vld [vmem:[%s1163 + $0x4] sm:$0xf]
        %v1166 = vld [vmem:[%s1163 + $0x8] sm:$0xf]
        %v1167 = vld [vmem:[%s1163 + $0xc] sm:$0xf]
        %v1172 = vunpack.c.l.b16 %v1164
        %v1173 = vunpack.c.l.b16 %v1165
        %v1174 = vunpack.c.l.b16 %v1166
        %v1175 = vunpack.c.l.b16 %v1167
        %v1176 = vpack.c.b16 %v1173, %v1172
        %v1177 = vpack.c.b16 %v1175, %v1174
        %v1181 = vsel %vm893, %v1162, 0
        %1183 = vmatprep.subr.bf16.mxu0 0
        %1184 = vmatpush1.bf16.msra.mxu0 %v1176
        %1185 = vmatprep.subr.bf16.mxu0 0
        %1186 = vmatpush1.bf16.msra.mxu0 %v1177
        %1187 = vmatprep.subr.bf16.mxu0 0
        %1188 = vmatpush1.bf16.msra.mxu0 0
        %1189 = vmatprep.subr.bf16.mxu0 0
        %1190 = vmatpush1.bf16.msra.mxu0 0
        %1191 = vmatprep.subr.bf16.mxu0 0
        %1192 = vmatpush1.bf16.msra.mxu0 0
        %1193 = vmatprep.subr.bf16.mxu0 0
        %1194 = vmatpush1.bf16.msra.mxu0 0
        %1195 = vmatprep.subr.bf16.mxu0 0
        %1196 = vmatpush1.bf16.msra.mxu0 0
        %1197 = vmatprep.subr.bf16.mxu0 0
        %1198 = vmatpush1.bf16.msra.mxu0 0
        %1199 = vmatprep.subr.bf16.mxu0 0
        %1200 = vmatpush1.bf16.msra.mxu0 0
        %1201 = vmatprep.subr.bf16.mxu0 0
        %1202 = vmatpush1.bf16.msra.mxu0 0
        %1203 = vmatprep.subr.bf16.mxu0 0
        %1204 = vmatpush1.bf16.msra.mxu0 0
        %1205 = vmatprep.subr.bf16.mxu0 0
        %1206 = vmatpush1.bf16.msra.mxu0 0
        %1207 = vmatprep.subr.bf16.mxu0 0
        %1208 = vmatpush1.bf16.msra.mxu0 0
        %1209 = vmatprep.subr.bf16.mxu0 0
        %1210 = vmatpush1.bf16.msra.mxu0 0
        %1211 = vmatprep.subr.bf16.mxu0 0
        %1212 = vmatpush1.bf16.msra.mxu0 0
        %1213 = vmatprep.subr.bf16.mxu0 0
        %1214 = vmatpush1.bf16.msra.mxu0 0
        %1215 = vmatprep.mubr.bf16.mxu0 0
        %1216 = vmatmul.mubr.bf16.gmra.mrb[0].mxu0 %v1181
        %v1217 = vpop.f32.mrb[0].mxu0
        %v1218 = vadd.f32 0.0, %v1217
        %v1219 = vpop.f32.mrb[0].mxu0
        %v1220 = vpop.f32.mrb[0].mxu0
        %v1221 = vadd.f32 0.0, %v1220
        %v1222 = vpop.f32.mrb[0].mxu0
        %1223 = vdwg.mxu0
        %v1224 = vadd.f32 %v1108, %v1218
        %v1225 = vadd.f32 %v1109, %v1221
        %s1226 = scalar_lea.vmem %s3, 32
        %v1227 = vld [vmem:[%s1226] sm:$0xf]
        %v1228 = vld [vmem:[%s1226 + $0x4] sm:$0xf]
        %v1231 = vunpack.c.l.b16 %v1227
        %v1232 = vunpack.c.l.b16 %v1228
        %v1233 = vpack.c.b16 %v1232, %v1231
        %v1235 = vsel %vm769, %v1233, 0
        %1237 = vmatprep.subr.bf16.mxu0 0
        %1238 = vmatpush1.bf16.msra.mxu0 %v755
        %1239 = vmatprep.subr.bf16.mxu0 0
        %1240 = vmatpush1.bf16.msra.mxu0 %v756
        %1241 = vmatprep.subr.bf16.mxu0 0
        %1242 = vmatpush1.bf16.msra.mxu0 %v757
        %1243 = vmatprep.subr.bf16.mxu0 0
        %1244 = vmatpush1.bf16.msra.mxu0 %v758
        %1245 = vmatprep.subr.bf16.mxu0 0
        %1246 = vmatpush1.bf16.msra.mxu0 %v759
        %1247 = vmatprep.subr.bf16.mxu0 0
        %1248 = vmatpush1.bf16.msra.mxu0 %v760
        %1249 = vmatprep.subr.bf16.mxu0 0
        %1250 = vmatpush1.bf16.msra.mxu0 %v775
        %1251 = vmatprep.subr.bf16.mxu0 0
        %1252 = vmatpush1.bf16.msra.mxu0 0
        %1253 = vmatprep.subr.bf16.mxu0 0
        %1254 = vmatpush1.bf16.msra.mxu0 0
        %1255 = vmatprep.subr.bf16.mxu0 0
        %1256 = vmatpush1.bf16.msra.mxu0 0
        %1257 = vmatprep.subr.bf16.mxu0 0
        %1258 = vmatpush1.bf16.msra.mxu0 0
        %1259 = vmatprep.subr.bf16.mxu0 0
        %1260 = vmatpush1.bf16.msra.mxu0 0
        %1261 = vmatprep.subr.bf16.mxu0 0
        %1262 = vmatpush1.bf16.msra.mxu0 0
        %1263 = vmatprep.subr.bf16.mxu0 0
        %1264 = vmatpush1.bf16.msra.mxu0 0
        %1265 = vmatprep.subr.bf16.mxu0 0
        %1266 = vmatpush1.bf16.msra.mxu0 0
        %1267 = vmatprep.subr.bf16.mxu0 0
        %1268 = vmatpush1.bf16.msra.mxu0 0
        %1269 = vmatprep.mubr.bf16.mxu0 0
        %1270 = vmatmul.mubr.bf16.gmra.mrb[0].mxu0 %v1235
        %v1271 = vpop.f32.mrb[0].mxu0
        %v1272 = vadd.f32 0.0, %v1271
        %v1273 = vpop.f32.mrb[0].mxu0
        %v1274 = vpop.f32.mrb[0].mxu0
        %v1275 = vadd.f32 0.0, %v1274
        %v1276 = vpop.f32.mrb[0].mxu0
        %1277 = vdwg.mxu0
        %v1278 = vpack.c.bf16 %v1275, %v1272
        %s1279 = scalar_lea.vmem %s4, 64
        %v1280 = vld [vmem:[%s1279] sm:$0xf]
        %v1281 = vld [vmem:[%s1279 + $0x4] sm:$0xf]
        %v1282 = vld [vmem:[%s1279 + $0x8] sm:$0xf]
        %v1283 = vld [vmem:[%s1279 + $0xc] sm:$0xf]
        %v1288 = vunpack.c.l.b16 %v1280
        %v1289 = vunpack.c.l.b16 %v1281
        %v1290 = vunpack.c.l.b16 %v1282
        %v1291 = vunpack.c.l.b16 %v1283
        %v1292 = vpack.c.b16 %v1289, %v1288
        %v1293 = vpack.c.b16 %v1291, %v1290
        %v1297 = vsel %vm893, %v1278, 0
        %1299 = vmatprep.subr.bf16.mxu0 0
        %1300 = vmatpush1.bf16.msra.mxu0 %v1292
        %1301 = vmatprep.subr.bf16.mxu0 0
        %1302 = vmatpush1.bf16.msra.mxu0 %v1293
        %1303 = vmatprep.subr.bf16.mxu0 0
        %1304 = vmatpush1.bf16.msra.mxu0 0
        %1305 = vmatprep.subr.bf16.mxu0 0
        %1306 = vmatpush1.bf16.msra.mxu0 0
        %1307 = vmatprep.subr.bf16.mxu0 0
        %1308 = vmatpush1.bf16.msra.mxu0 0
        %1309 = vmatprep.subr.bf16.mxu0 0
        %1310 = vmatpush1.bf16.msra.mxu0 0
        %1311 = vmatprep.subr.bf16.mxu0 0
        %1312 = vmatpush1.bf16.msra.mxu0 0
        %1313 = vmatprep.subr.bf16.mxu0 0
        %1314 = vmatpush1.bf16.msra.mxu0 0
        %1315 = vmatprep.subr.bf16.mxu0 0
        %1316 = vmatpush1.bf16.msra.mxu0 0
        %1317 = vmatprep.subr.bf16.mxu0 0
        %1318 = vmatpush1.bf16.msra.mxu0 0
        %1319 = vmatprep.subr.bf16.mxu0 0
        %1320 = vmatpush1.bf16.msra.mxu0 0
        %1321 = vmatprep.subr.bf16.mxu0 0
        %1322 = vmatpush1.bf16.msra.mxu0 0
        %1323 = vmatprep.subr.bf16.mxu0 0
        %1324 = vmatpush1.bf16.msra.mxu0 0
        %1325 = vmatprep.subr.bf16.mxu0 0
        %1326 = vmatpush1.bf16.msra.mxu0 0
        %1327 = vmatprep.subr.bf16.mxu0 0
        %1328 = vmatpush1.bf16.msra.mxu0 0
        %1329 = vmatprep.subr.bf16.mxu0 0
        %1330 = vmatpush1.bf16.msra.mxu0 0
        %1331 = vmatprep.mubr.bf16.mxu0 0
        %1332 = vmatmul.mubr.bf16.gmra.mrb[0].mxu0 %v1297
        %v1333 = vpop.f32.mrb[0].mxu0
        %v1334 = vadd.f32 0.0, %v1333
        %v1335 = vpop.f32.mrb[0].mxu0
        %v1336 = vpop.f32.mrb[0].mxu0
        %v1337 = vadd.f32 0.0, %v1336
        %v1338 = vpop.f32.mrb[0].mxu0
        %1339 = vdwg.mxu0
        %v1340 = vadd.f32 %v1224, %v1334
        %v1341 = vadd.f32 %v1225, %v1337
        %s1342 = scalar_lea.vmem %s3, 40
        %v1343 = vld [vmem:[%s1342] sm:$0xf]
        %v1344 = vld [vmem:[%s1342 + $0x4] sm:$0xf]
        %v1347 = vunpack.c.l.b16 %v1343
        %v1348 = vunpack.c.l.b16 %v1344
        %v1349 = vpack.c.b16 %v1348, %v1347
        %v1351 = vsel %vm769, %v1349, 0
        %1353 = vmatprep.subr.bf16.mxu0 0
        %1354 = vmatpush1.bf16.msra.mxu0 %v755
        %1355 = vmatprep.subr.bf16.mxu0 0
        %1356 = vmatpush1.bf16.msra.mxu0 %v756
        %1357 = vmatprep.subr.bf16.mxu0 0
        %1358 = vmatpush1.bf16.msra.mxu0 %v757
        %1359 = vmatprep.subr.bf16.mxu0 0
        %1360 = vmatpush1.bf16.msra.mxu0 %v758
        %1361 = vmatprep.subr.bf16.mxu0 0
        %1362 = vmatpush1.bf16.msra.mxu0 %v759
        %1363 = vmatprep.subr.bf16.mxu0 0
        %1364 = vmatpush1.bf16.msra.mxu0 %v760
        %1365 = vmatprep.subr.bf16.mxu0 0
        %1366 = vmatpush1.bf16.msra.mxu0 %v775
        %1367 = vmatprep.subr.bf16.mxu0 0
        %1368 = vmatpush1.bf16.msra.mxu0 0
        %1369 = vmatprep.subr.bf16.mxu0 0
        %1370 = vmatpush1.bf16.msra.mxu0 0
        %1371 = vmatprep.subr.bf16.mxu0 0
        %1372 = vmatpush1.bf16.msra.mxu0 0
        %1373 = vmatprep.subr.bf16.mxu0 0
        %1374 = vmatpush1.bf16.msra.mxu0 0
        %1375 = vmatprep.subr.bf16.mxu0 0
        %1376 = vmatpush1.bf16.msra.mxu0 0
        %1377 = vmatprep.subr.bf16.mxu0 0
        %1378 = vmatpush1.bf16.msra.mxu0 0
        %1379 = vmatprep.subr.bf16.mxu0 0
        %1380 = vmatpush1.bf16.msra.mxu0 0
        %1381 = vmatprep.subr.bf16.mxu0 0
        %1382 = vmatpush1.bf16.msra.mxu0 0
        %1383 = vmatprep.subr.bf16.mxu0 0
        %1384 = vmatpush1.bf16.msra.mxu0 0
        %1385 = vmatprep.mubr.bf16.mxu0 0
        %1386 = vmatmul.mubr.bf16.gmra.mrb[0].mxu0 %v1351
        %v1387 = vpop.f32.mrb[0].mxu0
        %v1388 = vadd.f32 0.0, %v1387
        %v1389 = vpop.f32.mrb[0].mxu0
        %v1390 = vpop.f32.mrb[0].mxu0
        %v1391 = vadd.f32 0.0, %v1390
        %v1392 = vpop.f32.mrb[0].mxu0
        %1393 = vdwg.mxu0
        %v1394 = vpack.c.bf16 %v1391, %v1388
        %s1395 = scalar_lea.vmem %s4, 80
        %v1396 = vld [vmem:[%s1395] sm:$0xf]
        %v1397 = vld [vmem:[%s1395 + $0x4] sm:$0xf]
        %v1398 = vld [vmem:[%s1395 + $0x8] sm:$0xf]
        %v1399 = vld [vmem:[%s1395 + $0xc] sm:$0xf]
        %v1404 = vunpack.c.l.b16 %v1396
        %v1405 = vunpack.c.l.b16 %v1397
        %v1406 = vunpack.c.l.b16 %v1398
        %v1407 = vunpack.c.l.b16 %v1399
        %v1408 = vpack.c.b16 %v1405, %v1404
        %v1409 = vpack.c.b16 %v1407, %v1406
        %v1413 = vsel %vm893, %v1394, 0
        %1415 = vmatprep.subr.bf16.mxu0 0
        %1416 = vmatpush1.bf16.msra.mxu0 %v1408
        %1417 = vmatprep.subr.bf16.mxu0 0
        %1418 = vmatpush1.bf16.msra.mxu0 %v1409
        %1419 = vmatprep.subr.bf16.mxu0 0
        %1420 = vmatpush1.bf16.msra.mxu0 0
        %1421 = vmatprep.subr.bf16.mxu0 0
        %1422 = vmatpush1.bf16.msra.mxu0 0
        %1423 = vmatprep.subr.bf16.mxu0 0
        %1424 = vmatpush1.bf16.msra.mxu0 0
        %1425 = vmatprep.subr.bf16.mxu0 0
        %1426 = vmatpush1.bf16.msra.mxu0 0
        %1427 = vmatprep.subr.bf16.mxu0 0
        %1428 = vmatpush1.bf16.msra.mxu0 0
        %1429 = vmatprep.subr.bf16.mxu0 0
        %1430 = vmatpush1.bf16.msra.mxu0 0
        %1431 = vmatprep.subr.bf16.mxu0 0
        %1432 = vmatpush1.bf16.msra.mxu0 0
        %1433 = vmatprep.subr.bf16.mxu0 0
        %1434 = vmatpush1.bf16.msra.mxu0 0
        %1435 = vmatprep.subr.bf16.mxu0 0
        %1436 = vmatpush1.bf16.msra.mxu0 0
        %1437 = vmatprep.subr.bf16.mxu0 0
        %1438 = vmatpush1.bf16.msra.mxu0 0
        %1439 = vmatprep.subr.bf16.mxu0 0
        %1440 = vmatpush1.bf16.msra.mxu0 0
        %1441 = vmatprep.subr.bf16.mxu0 0
        %1442 = vmatpush1.bf16.msra.mxu0 0
        %1443 = vmatprep.subr.bf16.mxu0 0
        %1444 = vmatpush1.bf16.msra.mxu0 0
        %1445 = vmatprep.subr.bf16.mxu0 0
        %1446 = vmatpush1.bf16.msra.mxu0 0
        %1447 = vmatprep.mubr.bf16.mxu0 0
        %1448 = vmatmul.mubr.bf16.gmra.mrb[0].mxu0 %v1413
        %v1449 = vpop.f32.mrb[0].mxu0
        %v1450 = vadd.f32 0.0, %v1449
        %v1451 = vpop.f32.mrb[0].mxu0
        %v1452 = vpop.f32.mrb[0].mxu0
        %v1453 = vadd.f32 0.0, %v1452
        %v1454 = vpop.f32.mrb[0].mxu0
        %1455 = vdwg.mxu0
        %v1456 = vadd.f32 %v1340, %v1450
        %v1457 = vadd.f32 %v1341, %v1453
        %s1458 = scalar_lea.vmem %s3, 48
        %v1459 = vld [vmem:[%s1458] sm:$0xf]
        %v1460 = vld [vmem:[%s1458 + $0x4] sm:$0xf]
        %v1463 = vunpack.c.l.b16 %v1459
        %v1464 = vunpack.c.l.b16 %v1460
        %v1465 = vpack.c.b16 %v1464, %v1463
        %v1467 = vsel %vm769, %v1465, 0
        %1469 = vmatprep.subr.bf16.mxu0 0
        %1470 = vmatpush1.bf16.msra.mxu0 %v755
        %1471 = vmatprep.subr.bf16.mxu0 0
        %1472 = vmatpush1.bf16.msra.mxu0 %v756
        %1473 = vmatprep.subr.bf16.mxu0 0
        %1474 = vmatpush1.bf16.msra.mxu0 %v757
        %1475 = vmatprep.subr.bf16.mxu0 0
        %1476 = vmatpush1.bf16.msra.mxu0 %v758
        %1477 = vmatprep.subr.bf16.mxu0 0
        %1478 = vmatpush1.bf16.msra.mxu0 %v759
        %1479 = vmatprep.subr.bf16.mxu0 0
        %1480 = vmatpush1.bf16.msra.mxu0 %v760
        %1481 = vmatprep.subr.bf16.mxu0 0
        %1482 = vmatpush1.bf16.msra.mxu0 %v775
        %1483 = vmatprep.subr.bf16.mxu0 0
        %1484 = vmatpush1.bf16.msra.mxu0 0
        %1485 = vmatprep.subr.bf16.mxu0 0
        %1486 = vmatpush1.bf16.msra.mxu0 0
        %1487 = vmatprep.subr.bf16.mxu0 0
        %1488 = vmatpush1.bf16.msra.mxu0 0
        %1489 = vmatprep.subr.bf16.mxu0 0
        %1490 = vmatpush1.bf16.msra.mxu0 0
        %1491 = vmatprep.subr.bf16.mxu0 0
        %1492 = vmatpush1.bf16.msra.mxu0 0
        %1493 = vmatprep.subr.bf16.mxu0 0
        %1494 = vmatpush1.bf16.msra.mxu0 0
        %1495 = vmatprep.subr.bf16.mxu0 0
        %1496 = vmatpush1.bf16.msra.mxu0 0
        %1497 = vmatprep.subr.bf16.mxu0 0
        %1498 = vmatpush1.bf16.msra.mxu0 0
        %1499 = vmatprep.subr.bf16.mxu0 0
        %1500 = vmatpush1.bf16.msra.mxu0 0
        %1501 = vmatprep.mubr.bf16.mxu0 0
        %1502 = vmatmul.mubr.bf16.gmra.mrb[0].mxu0 %v1467
        %v1503 = vpop.f32.mrb[0].mxu0
        %v1504 = vadd.f32 0.0, %v1503
        %v1505 = vpop.f32.mrb[0].mxu0
        %v1506 = vpop.f32.mrb[0].mxu0
        %v1507 = vadd.f32 0.0, %v1506
        %v1508 = vpop.f32.mrb[0].mxu0
        %1509 = vdwg.mxu0
        %v1510 = vpack.c.bf16 %v1507, %v1504
        %s1511 = scalar_lea.vmem %s4, 96
        %v1512 = vld [vmem:[%s1511] sm:$0xf]
        %v1513 = vld [vmem:[%s1511 + $0x4] sm:$0xf]
        %v1514 = vld [vmem:[%s1511 + $0x8] sm:$0xf]
        %v1515 = vld [vmem:[%s1511 + $0xc] sm:$0xf]
        %v1520 = vunpack.c.l.b16 %v1512
        %v1521 = vunpack.c.l.b16 %v1513
        %v1522 = vunpack.c.l.b16 %v1514
        %v1523 = vunpack.c.l.b16 %v1515
        %v1524 = vpack.c.b16 %v1521, %v1520
        %v1525 = vpack.c.b16 %v1523, %v1522
        %v1529 = vsel %vm893, %v1510, 0
        %1531 = vmatprep.subr.bf16.mxu0 0
        %1532 = vmatpush1.bf16.msra.mxu0 %v1524
        %1533 = vmatprep.subr.bf16.mxu0 0
        %1534 = vmatpush1.bf16.msra.mxu0 %v1525
        %1535 = vmatprep.subr.bf16.mxu0 0
        %1536 = vmatpush1.bf16.msra.mxu0 0
        %1537 = vmatprep.subr.bf16.mxu0 0
        %1538 = vmatpush1.bf16.msra.mxu0 0
        %1539 = vmatprep.subr.bf16.mxu0 0
        %1540 = vmatpush1.bf16.msra.mxu0 0
        %1541 = vmatprep.subr.bf16.mxu0 0
        %1542 = vmatpush1.bf16.msra.mxu0 0
        %1543 = vmatprep.subr.bf16.mxu0 0
        %1544 = vmatpush1.bf16.msra.mxu0 0
        %1545 = vmatprep.subr.bf16.mxu0 0
        %1546 = vmatpush1.bf16.msra.mxu0 0
        %1547 = vmatprep.subr.bf16.mxu0 0
        %1548 = vmatpush1.bf16.msra.mxu0 0
        %1549 = vmatprep.subr.bf16.mxu0 0
        %1550 = vmatpush1.bf16.msra.mxu0 0
        %1551 = vmatprep.subr.bf16.mxu0 0
        %1552 = vmatpush1.bf16.msra.mxu0 0
        %1553 = vmatprep.subr.bf16.mxu0 0
        %1554 = vmatpush1.bf16.msra.mxu0 0
        %1555 = vmatprep.subr.bf16.mxu0 0
        %1556 = vmatpush1.bf16.msra.mxu0 0
        %1557 = vmatprep.subr.bf16.mxu0 0
        %1558 = vmatpush1.bf16.msra.mxu0 0
        %1559 = vmatprep.subr.bf16.mxu0 0
        %1560 = vmatpush1.bf16.msra.mxu0 0
        %1561 = vmatprep.subr.bf16.mxu0 0
        %1562 = vmatpush1.bf16.msra.mxu0 0
        %1563 = vmatprep.mubr.bf16.mxu0 0
        %1564 = vmatmul.mubr.bf16.gmra.mrb[0].mxu0 %v1529
        %v1565 = vpop.f32.mrb[0].mxu0
        %v1566 = vadd.f32 0.0, %v1565
        %v1567 = vpop.f32.mrb[0].mxu0
        %v1568 = vpop.f32.mrb[0].mxu0
        %v1569 = vadd.f32 0.0, %v1568
        %v1570 = vpop.f32.mrb[0].mxu0
        %1571 = vdwg.mxu0
        %v1572 = vadd.f32 %v1456, %v1566
        %v1573 = vadd.f32 %v1457, %v1569
        %s1574 = scalar_lea.vmem %s3, 56
        %v1575 = vld [vmem:[%s1574] sm:$0xf]
        %v1576 = vld [vmem:[%s1574 + $0x4] sm:$0xf]
        %v1579 = vunpack.c.l.b16 %v1575
        %v1580 = vunpack.c.l.b16 %v1576
        %v1581 = vpack.c.b16 %v1580, %v1579
        %v1583 = vsel %vm769, %v1581, 0
        %1585 = vmatprep.subr.bf16.mxu0 0
        %1586 = vmatpush1.bf16.msra.mxu0 %v755
        %1587 = vmatprep.subr.bf16.mxu0 0
        %1588 = vmatpush1.bf16.msra.mxu0 %v756
        %1589 = vmatprep.subr.bf16.mxu0 0
        %1590 = vmatpush1.bf16.msra.mxu0 %v757
        %1591 = vmatprep.subr.bf16.mxu0 0
        %1592 = vmatpush1.bf16.msra.mxu0 %v758
        %1593 = vmatprep.subr.bf16.mxu0 0
        %1594 = vmatpush1.bf16.msra.mxu0 %v759
        %1595 = vmatprep.subr.bf16.mxu0 0
        %1596 = vmatpush1.bf16.msra.mxu0 %v760
        %1597 = vmatprep.subr.bf16.mxu0 0
        %1598 = vmatpush1.bf16.msra.mxu0 %v775
        %1599 = vmatprep.subr.bf16.mxu0 0
        %1600 = vmatpush1.bf16.msra.mxu0 0
        %1601 = vmatprep.subr.bf16.mxu0 0
        %1602 = vmatpush1.bf16.msra.mxu0 0
        %1603 = vmatprep.subr.bf16.mxu0 0
        %1604 = vmatpush1.bf16.msra.mxu0 0
        %1605 = vmatprep.subr.bf16.mxu0 0
        %1606 = vmatpush1.bf16.msra.mxu0 0
        %1607 = vmatprep.subr.bf16.mxu0 0
        %1608 = vmatpush1.bf16.msra.mxu0 0
        %1609 = vmatprep.subr.bf16.mxu0 0
        %1610 = vmatpush1.bf16.msra.mxu0 0
        %1611 = vmatprep.subr.bf16.mxu0 0
        %1612 = vmatpush1.bf16.msra.mxu0 0
        %1613 = vmatprep.subr.bf16.mxu0 0
        %1614 = vmatpush1.bf16.msra.mxu0 0
        %1615 = vmatprep.subr.bf16.mxu0 0
        %1616 = vmatpush1.bf16.msra.mxu0 0
        %1617 = vmatprep.mubr.bf16.mxu0 0
        %1618 = vmatmul.mubr.bf16.gmra.mrb[0].mxu0 %v1583
        %v1619 = vpop.f32.mrb[0].mxu0
        %v1620 = vadd.f32 0.0, %v1619
        %v1621 = vpop.f32.mrb[0].mxu0
        %v1622 = vpop.f32.mrb[0].mxu0
        %v1623 = vadd.f32 0.0, %v1622
        %v1624 = vpop.f32.mrb[0].mxu0
        %1625 = vdwg.mxu0
        %v1626 = vpack.c.bf16 %v1623, %v1620
        %s1627 = scalar_lea.vmem %s4, 112
        %v1628 = vld [vmem:[%s1627] sm:$0xf]
        %v1629 = vld [vmem:[%s1627 + $0x4] sm:$0xf]
        %v1630 = vld [vmem:[%s1627 + $0x8] sm:$0xf]
        %v1631 = vld [vmem:[%s1627 + $0xc] sm:$0xf]
        %v1636 = vunpack.c.l.b16 %v1628
        %v1637 = vunpack.c.l.b16 %v1629
        %v1638 = vunpack.c.l.b16 %v1630
        %v1639 = vunpack.c.l.b16 %v1631
        %v1640 = vpack.c.b16 %v1637, %v1636
        %v1641 = vpack.c.b16 %v1639, %v1638
        %v1645 = vsel %vm893, %v1626, 0
        %1647 = vmatprep.subr.bf16.mxu0 0
        %1648 = vmatpush1.bf16.msra.mxu0 %v1640
        %1649 = vmatprep.subr.bf16.mxu0 0
        %1650 = vmatpush1.bf16.msra.mxu0 %v1641
        %1651 = vmatprep.subr.bf16.mxu0 0
        %1652 = vmatpush1.bf16.msra.mxu0 0
        %1653 = vmatprep.subr.bf16.mxu0 0
        %1654 = vmatpush1.bf16.msra.mxu0 0
        %1655 = vmatprep.subr.bf16.mxu0 0
        %1656 = vmatpush1.bf16.msra.mxu0 0
        %1657 = vmatprep.subr.bf16.mxu0 0
        %1658 = vmatpush1.bf16.msra.mxu0 0
        %1659 = vmatprep.subr.bf16.mxu0 0
        %1660 = vmatpush1.bf16.msra.mxu0 0
        %1661 = vmatprep.subr.bf16.mxu0 0
        %1662 = vmatpush1.bf16.msra.mxu0 0
        %1663 = vmatprep.subr.bf16.mxu0 0
        %1664 = vmatpush1.bf16.msra.mxu0 0
        %1665 = vmatprep.subr.bf16.mxu0 0
        %1666 = vmatpush1.bf16.msra.mxu0 0
        %1667 = vmatprep.subr.bf16.mxu0 0
        %1668 = vmatpush1.bf16.msra.mxu0 0
        %1669 = vmatprep.subr.bf16.mxu0 0
        %1670 = vmatpush1.bf16.msra.mxu0 0
        %1671 = vmatprep.subr.bf16.mxu0 0
        %1672 = vmatpush1.bf16.msra.mxu0 0
        %1673 = vmatprep.subr.bf16.mxu0 0
        %1674 = vmatpush1.bf16.msra.mxu0 0
        %1675 = vmatprep.subr.bf16.mxu0 0
        %1676 = vmatpush1.bf16.msra.mxu0 0
        %1677 = vmatprep.subr.bf16.mxu0 0
        %1678 = vmatpush1.bf16.msra.mxu0 0
        %1679 = vmatprep.mubr.bf16.mxu0 0
        %1680 = vmatmul.mubr.bf16.gmra.mrb[0].mxu0 %v1645
        %v1681 = vpop.f32.mrb[0].mxu0
        %v1682 = vadd.f32 0.0, %v1681
        %v1683 = vpop.f32.mrb[0].mxu0
        %v1684 = vpop.f32.mrb[0].mxu0
        %v1685 = vadd.f32 0.0, %v1684
        %v1686 = vpop.f32.mrb[0].mxu0
        %1687 = vdwg.mxu0
        %v1688 = vadd.f32 %v1572, %v1682
        %v1689 = vadd.f32 %v1573, %v1685
        %s1690 = scalar_lea.vmem %s3, 64
        %v1691 = vld [vmem:[%s1690] sm:$0xf]
        %v1692 = vld [vmem:[%s1690 + $0x4] sm:$0xf]
        %v1695 = vunpack.c.l.b16 %v1691
        %v1696 = vunpack.c.l.b16 %v1692
        %v1697 = vpack.c.b16 %v1696, %v1695
        %v1699 = vsel %vm769, %v1697, 0
        %1701 = vmatprep.subr.bf16.mxu0 0
        %1702 = vmatpush1.bf16.msra.mxu0 %v755
        %1703 = vmatprep.subr.bf16.mxu0 0
        %1704 = vmatpush1.bf16.msra.mxu0 %v756
        %1705 = vmatprep.subr.bf16.mxu0 0
        %1706 = vmatpush1.bf16.msra.mxu0 %v757
        %1707 = vmatprep.subr.bf16.mxu0 0
        %1708 = vmatpush1.bf16.msra.mxu0 %v758
        %1709 = vmatprep.subr.bf16.mxu0 0
        %1710 = vmatpush1.bf16.msra.mxu0 %v759
        %1711 = vmatprep.subr.bf16.mxu0 0
        %1712 = vmatpush1.bf16.msra.mxu0 %v760
        %1713 = vmatprep.subr.bf16.mxu0 0
        %1714 = vmatpush1.bf16.msra.mxu0 %v775
        %1715 = vmatprep.subr.bf16.mxu0 0
        %1716 = vmatpush1.bf16.msra.mxu0 0
        %1717 = vmatprep.subr.bf16.mxu0 0
        %1718 = vmatpush1.bf16.msra.mxu0 0
        %1719 = vmatprep.subr.bf16.mxu0 0
        %1720 = vmatpush1.bf16.msra.mxu0 0
        %1721 = vmatprep.subr.bf16.mxu0 0
        %1722 = vmatpush1.bf16.msra.mxu0 0
        %1723 = vmatprep.subr.bf16.mxu0 0
        %1724 = vmatpush1.bf16.msra.mxu0 0
        %1725 = vmatprep.subr.bf16.mxu0 0
        %1726 = vmatpush1.bf16.msra.mxu0 0
        %1727 = vmatprep.subr.bf16.mxu0 0
        %1728 = vmatpush1.bf16.msra.mxu0 0
        %1729 = vmatprep.subr.bf16.mxu0 0
        %1730 = vmatpush1.bf16.msra.mxu0 0
        %1731 = vmatprep.subr.bf16.mxu0 0
        %1732 = vmatpush1.bf16.msra.mxu0 0
        %1733 = vmatprep.mubr.bf16.mxu0 0
        %1734 = vmatmul.mubr.bf16.gmra.mrb[0].mxu0 %v1699
        %v1735 = vpop.f32.mrb[0].mxu0
        %v1736 = vadd.f32 0.0, %v1735
        %v1737 = vpop.f32.mrb[0].mxu0
        %v1738 = vpop.f32.mrb[0].mxu0
        %v1739 = vadd.f32 0.0, %v1738
        %v1740 = vpop.f32.mrb[0].mxu0
        %1741 = vdwg.mxu0
        %v1742 = vpack.c.bf16 %v1739, %v1736
        %s1743 = scalar_lea.vmem %s4, 128
        %v1744 = vld [vmem:[%s1743] sm:$0xf]
        %v1745 = vld [vmem:[%s1743 + $0x4] sm:$0xf]
        %v1746 = vld [vmem:[%s1743 + $0x8] sm:$0xf]
        %v1747 = vld [vmem:[%s1743 + $0xc] sm:$0xf]
        %v1752 = vunpack.c.l.b16 %v1744
        %v1753 = vunpack.c.l.b16 %v1745
        %v1754 = vunpack.c.l.b16 %v1746
        %v1755 = vunpack.c.l.b16 %v1747
        %v1756 = vpack.c.b16 %v1753, %v1752
        %v1757 = vpack.c.b16 %v1755, %v1754
        %v1761 = vsel %vm893, %v1742, 0
        %1763 = vmatprep.subr.bf16.mxu0 0
        %1764 = vmatpush1.bf16.msra.mxu0 %v1756
        %1765 = vmatprep.subr.bf16.mxu0 0
        %1766 = vmatpush1.bf16.msra.mxu0 %v1757
        %1767 = vmatprep.subr.bf16.mxu0 0
        %1768 = vmatpush1.bf16.msra.mxu0 0
        %1769 = vmatprep.subr.bf16.mxu0 0
        %1770 = vmatpush1.bf16.msra.mxu0 0
        %1771 = vmatprep.subr.bf16.mxu0 0
        %1772 = vmatpush1.bf16.msra.mxu0 0
        %1773 = vmatprep.subr.bf16.mxu0 0
        %1774 = vmatpush1.bf16.msra.mxu0 0
        %1775 = vmatprep.subr.bf16.mxu0 0
        %1776 = vmatpush1.bf16.msra.mxu0 0
        %1777 = vmatprep.subr.bf16.mxu0 0
        %1778 = vmatpush1.bf16.msra.mxu0 0
        %1779 = vmatprep.subr.bf16.mxu0 0
        %1780 = vmatpush1.bf16.msra.mxu0 0
        %1781 = vmatprep.subr.bf16.mxu0 0
        %1782 = vmatpush1.bf16.msra.mxu0 0
        %1783 = vmatprep.subr.bf16.mxu0 0
        %1784 = vmatpush1.bf16.msra.mxu0 0
        %1785 = vmatprep.subr.bf16.mxu0 0
        %1786 = vmatpush1.bf16.msra.mxu0 0
        %1787 = vmatprep.subr.bf16.mxu0 0
        %1788 = vmatpush1.bf16.msra.mxu0 0
        %1789 = vmatprep.subr.bf16.mxu0 0
        %1790 = vmatpush1.bf16.msra.mxu0 0
        %1791 = vmatprep.subr.bf16.mxu0 0
        %1792 = vmatpush1.bf16.msra.mxu0 0
        %1793 = vmatprep.subr.bf16.mxu0 0
        %1794 = vmatpush1.bf16.msra.mxu0 0
        %1795 = vmatprep.mubr.bf16.mxu0 0
        %1796 = vmatmul.mubr.bf16.gmra.mrb[0].mxu0 %v1761
        %v1797 = vpop.f32.mrb[0].mxu0
        %v1798 = vadd.f32 0.0, %v1797
        %v1799 = vpop.f32.mrb[0].mxu0
        %v1800 = vpop.f32.mrb[0].mxu0
        %v1801 = vadd.f32 0.0, %v1800
        %v1802 = vpop.f32.mrb[0].mxu0
        %1803 = vdwg.mxu0
        %v1804 = vadd.f32 %v1688, %v1798
        %v1805 = vadd.f32 %v1689, %v1801
        %s1806 = scalar_lea.vmem %s3, 72
        %v1807 = vld [vmem:[%s1806] sm:$0xf]
        %v1808 = vld [vmem:[%s1806 + $0x4] sm:$0xf]
        %v1811 = vunpack.c.l.b16 %v1807
        %v1812 = vunpack.c.l.b16 %v1808
        %v1813 = vpack.c.b16 %v1812, %v1811
        %v1815 = vsel %vm769, %v1813, 0
        %1817 = vmatprep.subr.bf16.mxu0 0
        %1818 = vmatpush1.bf16.msra.mxu0 %v755
        %1819 = vmatprep.subr.bf16.mxu0 0
        %1820 = vmatpush1.bf16.msra.mxu0 %v756
        %1821 = vmatprep.subr.bf16.mxu0 0
        %1822 = vmatpush1.bf16.msra.mxu0 %v757
        %1823 = vmatprep.subr.bf16.mxu0 0
        %1824 = vmatpush1.bf16.msra.mxu0 %v758
        %1825 = vmatprep.subr.bf16.mxu0 0
        %1826 = vmatpush1.bf16.msra.mxu0 %v759
        %1827 = vmatprep.subr.bf16.mxu0 0
        %1828 = vmatpush1.bf16.msra.mxu0 %v760
        %1829 = vmatprep.subr.bf16.mxu0 0
        %1830 = vmatpush1.bf16.msra.mxu0 %v775
        %1831 = vmatprep.subr.bf16.mxu0 0
        %1832 = vmatpush1.bf16.msra.mxu0 0
        %1833 = vmatprep.subr.bf16.mxu0 0
        %1834 = vmatpush1.bf16.msra.mxu0 0
        %1835 = vmatprep.subr.bf16.mxu0 0
        %1836 = vmatpush1.bf16.msra.mxu0 0
        %1837 = vmatprep.subr.bf16.mxu0 0
        %1838 = vmatpush1.bf16.msra.mxu0 0
        %1839 = vmatprep.subr.bf16.mxu0 0
        %1840 = vmatpush1.bf16.msra.mxu0 0
        %1841 = vmatprep.subr.bf16.mxu0 0
        %1842 = vmatpush1.bf16.msra.mxu0 0
        %1843 = vmatprep.subr.bf16.mxu0 0
        %1844 = vmatpush1.bf16.msra.mxu0 0
        %1845 = vmatprep.subr.bf16.mxu0 0
        %1846 = vmatpush1.bf16.msra.mxu0 0
        %1847 = vmatprep.subr.bf16.mxu0 0
        %1848 = vmatpush1.bf16.msra.mxu0 0
        %1849 = vmatprep.mubr.bf16.mxu0 0
        %1850 = vmatmul.mubr.bf16.gmra.mrb[0].mxu0 %v1815
        %v1851 = vpop.f32.mrb[0].mxu0
        %v1852 = vadd.f32 0.0, %v1851
        %v1853 = vpop.f32.mrb[0].mxu0
        %v1854 = vpop.f32.mrb[0].mxu0
        %v1855 = vadd.f32 0.0, %v1854
        %v1856 = vpop.f32.mrb[0].mxu0
        %1857 = vdwg.mxu0
        %v1858 = vpack.c.bf16 %v1855, %v1852
        %s1859 = scalar_lea.vmem %s4, 144
        %v1860 = vld [vmem:[%s1859] sm:$0xf]
        %v1861 = vld [vmem:[%s1859 + $0x4] sm:$0xf]
        %v1862 = vld [vmem:[%s1859 + $0x8] sm:$0xf]
        %v1863 = vld [vmem:[%s1859 + $0xc] sm:$0xf]
        %v1868 = vunpack.c.l.b16 %v1860
        %v1869 = vunpack.c.l.b16 %v1861
        %v1870 = vunpack.c.l.b16 %v1862
        %v1871 = vunpack.c.l.b16 %v1863
        %v1872 = vpack.c.b16 %v1869, %v1868
        %v1873 = vpack.c.b16 %v1871, %v1870
        %v1877 = vsel %vm893, %v1858, 0
        %1879 = vmatprep.subr.bf16.mxu0 0
        %1880 = vmatpush1.bf16.msra.mxu0 %v1872
        %1881 = vmatprep.subr.bf16.mxu0 0
        %1882 = vmatpush1.bf16.msra.mxu0 %v1873
        %1883 = vmatprep.subr.bf16.mxu0 0
        %1884 = vmatpush1.bf16.msra.mxu0 0
        %1885 = vmatprep.subr.bf16.mxu0 0
        %1886 = vmatpush1.bf16.msra.mxu0 0
        %1887 = vmatprep.subr.bf16.mxu0 0
        %1888 = vmatpush1.bf16.msra.mxu0 0
        %1889 = vmatprep.subr.bf16.mxu0 0
        %1890 = vmatpush1.bf16.msra.mxu0 0
        %1891 = vmatprep.subr.bf16.mxu0 0
        %1892 = vmatpush1.bf16.msra.mxu0 0
        %1893 = vmatprep.subr.bf16.mxu0 0
        %1894 = vmatpush1.bf16.msra.mxu0 0
        %1895 = vmatprep.subr.bf16.mxu0 0
        %1896 = vmatpush1.bf16.msra.mxu0 0
        %1897 = vmatprep.subr.bf16.mxu0 0
        %1898 = vmatpush1.bf16.msra.mxu0 0
        %1899 = vmatprep.subr.bf16.mxu0 0
        %1900 = vmatpush1.bf16.msra.mxu0 0
        %1901 = vmatprep.subr.bf16.mxu0 0
        %1902 = vmatpush1.bf16.msra.mxu0 0
        %1903 = vmatprep.subr.bf16.mxu0 0
        %1904 = vmatpush1.bf16.msra.mxu0 0
        %1905 = vmatprep.subr.bf16.mxu0 0
        %1906 = vmatpush1.bf16.msra.mxu0 0
        %1907 = vmatprep.subr.bf16.mxu0 0
        %1908 = vmatpush1.bf16.msra.mxu0 0
        %1909 = vmatprep.subr.bf16.mxu0 0
        %1910 = vmatpush1.bf16.msra.mxu0 0
        %1911 = vmatprep.mubr.bf16.mxu0 0
        %1912 = vmatmul.mubr.bf16.gmra.mrb[0].mxu0 %v1877
        %v1913 = vpop.f32.mrb[0].mxu0
        %v1914 = vadd.f32 0.0, %v1913
        %v1915 = vpop.f32.mrb[0].mxu0
        %v1916 = vpop.f32.mrb[0].mxu0
        %v1917 = vadd.f32 0.0, %v1916
        %v1918 = vpop.f32.mrb[0].mxu0
        %1919 = vdwg.mxu0
        %v1920 = vadd.f32 %v1804, %v1914
        %v1921 = vadd.f32 %v1805, %v1917
        %s1922 = scalar_lea.vmem %s3, 80
        %v1923 = vld [vmem:[%s1922] sm:$0xf]
        %v1924 = vld [vmem:[%s1922 + $0x4] sm:$0xf]
        %v1927 = vunpack.c.l.b16 %v1923
        %v1928 = vunpack.c.l.b16 %v1924
        %v1929 = vpack.c.b16 %v1928, %v1927
        %v1931 = vsel %vm769, %v1929, 0
        %1933 = vmatprep.subr.bf16.mxu0 0
        %1934 = vmatpush1.bf16.msra.mxu0 %v755
        %1935 = vmatprep.subr.bf16.mxu0 0
        %1936 = vmatpush1.bf16.msra.mxu0 %v756
        %1937 = vmatprep.subr.bf16.mxu0 0
        %1938 = vmatpush1.bf16.msra.mxu0 %v757
        %1939 = vmatprep.subr.bf16.mxu0 0
        %1940 = vmatpush1.bf16.msra.mxu0 %v758
        %1941 = vmatprep.subr.bf16.mxu0 0
        %1942 = vmatpush1.bf16.msra.mxu0 %v759
        %1943 = vmatprep.subr.bf16.mxu0 0
        %1944 = vmatpush1.bf16.msra.mxu0 %v760
        %1945 = vmatprep.subr.bf16.mxu0 0
        %1946 = vmatpush1.bf16.msra.mxu0 %v775
        %1947 = vmatprep.subr.bf16.mxu0 0
        %1948 = vmatpush1.bf16.msra.mxu0 0
        %1949 = vmatprep.subr.bf16.mxu0 0
        %1950 = vmatpush1.bf16.msra.mxu0 0
        %1951 = vmatprep.subr.bf16.mxu0 0
        %1952 = vmatpush1.bf16.msra.mxu0 0
        %1953 = vmatprep.subr.bf16.mxu0 0
        %1954 = vmatpush1.bf16.msra.mxu0 0
        %1955 = vmatprep.subr.bf16.mxu0 0
        %1956 = vmatpush1.bf16.msra.mxu0 0
        %1957 = vmatprep.subr.bf16.mxu0 0
        %1958 = vmatpush1.bf16.msra.mxu0 0
        %1959 = vmatprep.subr.bf16.mxu0 0
        %1960 = vmatpush1.bf16.msra.mxu0 0
        %1961 = vmatprep.subr.bf16.mxu0 0
        %1962 = vmatpush1.bf16.msra.mxu0 0
        %1963 = vmatprep.subr.bf16.mxu0 0
        %1964 = vmatpush1.bf16.msra.mxu0 0
        %1965 = vmatprep.mubr.bf16.mxu0 0
        %1966 = vmatmul.mubr.bf16.gmra.mrb[0].mxu0 %v1931
        %v1967 = vpop.f32.mrb[0].mxu0
        %v1968 = vadd.f32 0.0, %v1967
        %v1969 = vpop.f32.mrb[0].mxu0
        %v1970 = vpop.f32.mrb[0].mxu0
        %v1971 = vadd.f32 0.0, %v1970
        %v1972 = vpop.f32.mrb[0].mxu0
        %1973 = vdwg.mxu0
        %v1974 = vpack.c.bf16 %v1971, %v1968
        %s1975 = scalar_lea.vmem %s4, 160
        %v1976 = vld [vmem:[%s1975] sm:$0xf]
        %v1977 = vld [vmem:[%s1975 + $0x4] sm:$0xf]
        %v1978 = vld [vmem:[%s1975 + $0x8] sm:$0xf]
        %v1979 = vld [vmem:[%s1975 + $0xc] sm:$0xf]
        %v1984 = vunpack.c.l.b16 %v1976
        %v1985 = vunpack.c.l.b16 %v1977
        %v1986 = vunpack.c.l.b16 %v1978
        %v1987 = vunpack.c.l.b16 %v1979
        %v1988 = vpack.c.b16 %v1985, %v1984
        %v1989 = vpack.c.b16 %v1987, %v1986
        %v1993 = vsel %vm893, %v1974, 0
        %1995 = vmatprep.subr.bf16.mxu0 0
        %1996 = vmatpush1.bf16.msra.mxu0 %v1988
        %1997 = vmatprep.subr.bf16.mxu0 0
        %1998 = vmatpush1.bf16.msra.mxu0 %v1989
        %1999 = vmatprep.subr.bf16.mxu0 0
        %2000 = vmatpush1.bf16.msra.mxu0 0
        %2001 = vmatprep.subr.bf16.mxu0 0
        %2002 = vmatpush1.bf16.msra.mxu0 0
        %2003 = vmatprep.subr.bf16.mxu0 0
        %2004 = vmatpush1.bf16.msra.mxu0 0
        %2005 = vmatprep.subr.bf16.mxu0 0
        %2006 = vmatpush1.bf16.msra.mxu0 0
        %2007 = vmatprep.subr.bf16.mxu0 0
        %2008 = vmatpush1.bf16.msra.mxu0 0
        %2009 = vmatprep.subr.bf16.mxu0 0
        %2010 = vmatpush1.bf16.msra.mxu0 0
        %2011 = vmatprep.subr.bf16.mxu0 0
        %2012 = vmatpush1.bf16.msra.mxu0 0
        %2013 = vmatprep.subr.bf16.mxu0 0
        %2014 = vmatpush1.bf16.msra.mxu0 0
        %2015 = vmatprep.subr.bf16.mxu0 0
        %2016 = vmatpush1.bf16.msra.mxu0 0
        %2017 = vmatprep.subr.bf16.mxu0 0
        %2018 = vmatpush1.bf16.msra.mxu0 0
        %2019 = vmatprep.subr.bf16.mxu0 0
        %2020 = vmatpush1.bf16.msra.mxu0 0
        %2021 = vmatprep.subr.bf16.mxu0 0
        %2022 = vmatpush1.bf16.msra.mxu0 0
        %2023 = vmatprep.subr.bf16.mxu0 0
        %2024 = vmatpush1.bf16.msra.mxu0 0
        %2025 = vmatprep.subr.bf16.mxu0 0
        %2026 = vmatpush1.bf16.msra.mxu0 0
        %2027 = vmatprep.mubr.bf16.mxu0 0
        %2028 = vmatmul.mubr.bf16.gmra.mrb[0].mxu0 %v1993
        %v2029 = vpop.f32.mrb[0].mxu0
        %v2030 = vadd.f32 0.0, %v2029
        %v2031 = vpop.f32.mrb[0].mxu0
        %v2032 = vpop.f32.mrb[0].mxu0
        %v2033 = vadd.f32 0.0, %v2032
        %v2034 = vpop.f32.mrb[0].mxu0
        %2035 = vdwg.mxu0
        %v2036 = vadd.f32 %v1920, %v2030
        %v2037 = vadd.f32 %v1921, %v2033
        %s2038 = scalar_lea.vmem %s3, 88
        %v2039 = vld [vmem:[%s2038] sm:$0xf]
        %v2040 = vld [vmem:[%s2038 + $0x4] sm:$0xf]
        %v2043 = vunpack.c.l.b16 %v2039
        %v2044 = vunpack.c.l.b16 %v2040
        %v2045 = vpack.c.b16 %v2044, %v2043
        %v2047 = vsel %vm769, %v2045, 0
        %2049 = vmatprep.subr.bf16.mxu0 0
        %2050 = vmatpush1.bf16.msra.mxu0 %v755
        %2051 = vmatprep.subr.bf16.mxu0 0
        %2052 = vmatpush1.bf16.msra.mxu0 %v756
        %2053 = vmatprep.subr.bf16.mxu0 0
        %2054 = vmatpush1.bf16.msra.mxu0 %v757
        %2055 = vmatprep.subr.bf16.mxu0 0
        %2056 = vmatpush1.bf16.msra.mxu0 %v758
        %2057 = vmatprep.subr.bf16.mxu0 0
        %2058 = vmatpush1.bf16.msra.mxu0 %v759
        %2059 = vmatprep.subr.bf16.mxu0 0
        %2060 = vmatpush1.bf16.msra.mxu0 %v760
        %2061 = vmatprep.subr.bf16.mxu0 0
        %2062 = vmatpush1.bf16.msra.mxu0 %v775
        %2063 = vmatprep.subr.bf16.mxu0 0
        %2064 = vmatpush1.bf16.msra.mxu0 0
        %2065 = vmatprep.subr.bf16.mxu0 0
        %2066 = vmatpush1.bf16.msra.mxu0 0
        %2067 = vmatprep.subr.bf16.mxu0 0
        %2068 = vmatpush1.bf16.msra.mxu0 0
        %2069 = vmatprep.subr.bf16.mxu0 0
        %2070 = vmatpush1.bf16.msra.mxu0 0
        %2071 = vmatprep.subr.bf16.mxu0 0
        %2072 = vmatpush1.bf16.msra.mxu0 0
        %2073 = vmatprep.subr.bf16.mxu0 0
        %2074 = vmatpush1.bf16.msra.mxu0 0
        %2075 = vmatprep.subr.bf16.mxu0 0
        %2076 = vmatpush1.bf16.msra.mxu0 0
        %2077 = vmatprep.subr.bf16.mxu0 0
        %2078 = vmatpush1.bf16.msra.mxu0 0
        %2079 = vmatprep.subr.bf16.mxu0 0
        %2080 = vmatpush1.bf16.msra.mxu0 0
        %2081 = vmatprep.mubr.bf16.mxu0 0
        %2082 = vmatmul.mubr.bf16.gmra.mrb[0].mxu0 %v2047
        %v2083 = vpop.f32.mrb[0].mxu0
        %v2084 = vadd.f32 0.0, %v2083
        %v2085 = vpop.f32.mrb[0].mxu0
        %v2086 = vpop.f32.mrb[0].mxu0
        %v2087 = vadd.f32 0.0, %v2086
        %v2088 = vpop.f32.mrb[0].mxu0
        %2089 = vdwg.mxu0
        %v2090 = vpack.c.bf16 %v2087, %v2084
        %s2091 = scalar_lea.vmem %s4, 176
        %v2092 = vld [vmem:[%s2091] sm:$0xf]
        %v2093 = vld [vmem:[%s2091 + $0x4] sm:$0xf]
        %v2094 = vld [vmem:[%s2091 + $0x8] sm:$0xf]
        %v2095 = vld [vmem:[%s2091 + $0xc] sm:$0xf]
        %v2100 = vunpack.c.l.b16 %v2092
        %v2101 = vunpack.c.l.b16 %v2093
        %v2102 = vunpack.c.l.b16 %v2094
        %v2103 = vunpack.c.l.b16 %v2095
        %v2104 = vpack.c.b16 %v2101, %v2100
        %v2105 = vpack.c.b16 %v2103, %v2102
        %v2109 = vsel %vm893, %v2090, 0
        %2111 = vmatprep.subr.bf16.mxu0 0
        %2112 = vmatpush1.bf16.msra.mxu0 %v2104
        %2113 = vmatprep.subr.bf16.mxu0 0
        %2114 = vmatpush1.bf16.msra.mxu0 %v2105
        %2115 = vmatprep.subr.bf16.mxu0 0
        %2116 = vmatpush1.bf16.msra.mxu0 0
        %2117 = vmatprep.subr.bf16.mxu0 0
        %2118 = vmatpush1.bf16.msra.mxu0 0
        %2119 = vmatprep.subr.bf16.mxu0 0
        %2120 = vmatpush1.bf16.msra.mxu0 0
        %2121 = vmatprep.subr.bf16.mxu0 0
        %2122 = vmatpush1.bf16.msra.mxu0 0
        %2123 = vmatprep.subr.bf16.mxu0 0
        %2124 = vmatpush1.bf16.msra.mxu0 0
        %2125 = vmatprep.subr.bf16.mxu0 0
        %2126 = vmatpush1.bf16.msra.mxu0 0
        %2127 = vmatprep.subr.bf16.mxu0 0
        %2128 = vmatpush1.bf16.msra.mxu0 0
        %2129 = vmatprep.subr.bf16.mxu0 0
        %2130 = vmatpush1.bf16.msra.mxu0 0
        %2131 = vmatprep.subr.bf16.mxu0 0
        %2132 = vmatpush1.bf16.msra.mxu0 0
        %2133 = vmatprep.subr.bf16.mxu0 0
        %2134 = vmatpush1.bf16.msra.mxu0 0
        %2135 = vmatprep.subr.bf16.mxu0 0
        %2136 = vmatpush1.bf16.msra.mxu0 0
        %2137 = vmatprep.subr.bf16.mxu0 0
        %2138 = vmatpush1.bf16.msra.mxu0 0
        %2139 = vmatprep.subr.bf16.mxu0 0
        %2140 = vmatpush1.bf16.msra.mxu0 0
        %2141 = vmatprep.subr.bf16.mxu0 0
        %2142 = vmatpush1.bf16.msra.mxu0 0
        %2143 = vmatprep.mubr.bf16.mxu0 0
        %2144 = vmatmul.mubr.bf16.gmra.mrb[0].mxu0 %v2109
        %v2145 = vpop.f32.mrb[0].mxu0
        %v2146 = vadd.f32 0.0, %v2145
        %v2147 = vpop.f32.mrb[0].mxu0
        %v2148 = vpop.f32.mrb[0].mxu0
        %v2149 = vadd.f32 0.0, %v2148
        %v2150 = vpop.f32.mrb[0].mxu0
        %2151 = vdwg.mxu0
        %v2152 = vadd.f32 %v2036, %v2146
        %v2153 = vadd.f32 %v2037, %v2149
        %s2154 = scalar_lea.vmem %s3, 96
        %v2155 = vld [vmem:[%s2154] sm:$0xf]
        %v2156 = vld [vmem:[%s2154 + $0x4] sm:$0xf]
        %v2159 = vunpack.c.l.b16 %v2155
        %v2160 = vunpack.c.l.b16 %v2156
        %v2161 = vpack.c.b16 %v2160, %v2159
        %v2163 = vsel %vm769, %v2161, 0
        %2165 = vmatprep.subr.bf16.mxu0 0
        %2166 = vmatpush1.bf16.msra.mxu0 %v755
        %2167 = vmatprep.subr.bf16.mxu0 0
        %2168 = vmatpush1.bf16.msra.mxu0 %v756
        %2169 = vmatprep.subr.bf16.mxu0 0
        %2170 = vmatpush1.bf16.msra.mxu0 %v757
        %2171 = vmatprep.subr.bf16.mxu0 0
        %2172 = vmatpush1.bf16.msra.mxu0 %v758
        %2173 = vmatprep.subr.bf16.mxu0 0
        %2174 = vmatpush1.bf16.msra.mxu0 %v759
        %2175 = vmatprep.subr.bf16.mxu0 0
        %2176 = vmatpush1.bf16.msra.mxu0 %v760
        %2177 = vmatprep.subr.bf16.mxu0 0
        %2178 = vmatpush1.bf16.msra.mxu0 %v775
        %2179 = vmatprep.subr.bf16.mxu0 0
        %2180 = vmatpush1.bf16.msra.mxu0 0
        %2181 = vmatprep.subr.bf16.mxu0 0
        %2182 = vmatpush1.bf16.msra.mxu0 0
        %2183 = vmatprep.subr.bf16.mxu0 0
        %2184 = vmatpush1.bf16.msra.mxu0 0
        %2185 = vmatprep.subr.bf16.mxu0 0
        %2186 = vmatpush1.bf16.msra.mxu0 0
        %2187 = vmatprep.subr.bf16.mxu0 0
        %2188 = vmatpush1.bf16.msra.mxu0 0
        %2189 = vmatprep.subr.bf16.mxu0 0
        %2190 = vmatpush1.bf16.msra.mxu0 0
        %2191 = vmatprep.subr.bf16.mxu0 0
        %2192 = vmatpush1.bf16.msra.mxu0 0
        %2193 = vmatprep.subr.bf16.mxu0 0
        %2194 = vmatpush1.bf16.msra.mxu0 0
        %2195 = vmatprep.subr.bf16.mxu0 0
        %2196 = vmatpush1.bf16.msra.mxu0 0
        %2197 = vmatprep.mubr.bf16.mxu0 0
        %2198 = vmatmul.mubr.bf16.gmra.mrb[0].mxu0 %v2163
        %v2199 = vpop.f32.mrb[0].mxu0
        %v2200 = vadd.f32 0.0, %v2199
        %v2201 = vpop.f32.mrb[0].mxu0
        %v2202 = vpop.f32.mrb[0].mxu0
        %v2203 = vadd.f32 0.0, %v2202
        %v2204 = vpop.f32.mrb[0].mxu0
        %2205 = vdwg.mxu0
        %v2206 = vpack.c.bf16 %v2203, %v2200
        %s2207 = scalar_lea.vmem %s4, 192
        %v2208 = vld [vmem:[%s2207] sm:$0xf]
        %v2209 = vld [vmem:[%s2207 + $0x4] sm:$0xf]
        %v2210 = vld [vmem:[%s2207 + $0x8] sm:$0xf]
        %v2211 = vld [vmem:[%s2207 + $0xc] sm:$0xf]
        %v2216 = vunpack.c.l.b16 %v2208
        %v2217 = vunpack.c.l.b16 %v2209
        %v2218 = vunpack.c.l.b16 %v2210
        %v2219 = vunpack.c.l.b16 %v2211
        %v2220 = vpack.c.b16 %v2217, %v2216
        %v2221 = vpack.c.b16 %v2219, %v2218
        %v2225 = vsel %vm893, %v2206, 0
        %2227 = vmatprep.subr.bf16.mxu0 0
        %2228 = vmatpush1.bf16.msra.mxu0 %v2220
        %2229 = vmatprep.subr.bf16.mxu0 0
        %2230 = vmatpush1.bf16.msra.mxu0 %v2221
        %2231 = vmatprep.subr.bf16.mxu0 0
        %2232 = vmatpush1.bf16.msra.mxu0 0
        %2233 = vmatprep.subr.bf16.mxu0 0
        %2234 = vmatpush1.bf16.msra.mxu0 0
        %2235 = vmatprep.subr.bf16.mxu0 0
        %2236 = vmatpush1.bf16.msra.mxu0 0
        %2237 = vmatprep.subr.bf16.mxu0 0
        %2238 = vmatpush1.bf16.msra.mxu0 0
        %2239 = vmatprep.subr.bf16.mxu0 0
        %2240 = vmatpush1.bf16.msra.mxu0 0
        %2241 = vmatprep.subr.bf16.mxu0 0
        %2242 = vmatpush1.bf16.msra.mxu0 0
        %2243 = vmatprep.subr.bf16.mxu0 0
        %2244 = vmatpush1.bf16.msra.mxu0 0
        %2245 = vmatprep.subr.bf16.mxu0 0
        %2246 = vmatpush1.bf16.msra.mxu0 0
        %2247 = vmatprep.subr.bf16.mxu0 0
        %2248 = vmatpush1.bf16.msra.mxu0 0
        %2249 = vmatprep.subr.bf16.mxu0 0
        %2250 = vmatpush1.bf16.msra.mxu0 0
        %2251 = vmatprep.subr.bf16.mxu0 0
        %2252 = vmatpush1.bf16.msra.mxu0 0
        %2253 = vmatprep.subr.bf16.mxu0 0
        %2254 = vmatpush1.bf16.msra.mxu0 0
        %2255 = vmatprep.subr.bf16.mxu0 0
        %2256 = vmatpush1.bf16.msra.mxu0 0
        %2257 = vmatprep.subr.bf16.mxu0 0
        %2258 = vmatpush1.bf16.msra.mxu0 0
        %2259 = vmatprep.mubr.bf16.mxu0 0
        %2260 = vmatmul.mubr.bf16.gmra.mrb[0].mxu0 %v2225
        %v2261 = vpop.f32.mrb[0].mxu0
        %v2262 = vadd.f32 0.0, %v2261
        %v2263 = vpop.f32.mrb[0].mxu0
        %v2264 = vpop.f32.mrb[0].mxu0
        %v2265 = vadd.f32 0.0, %v2264
        %v2266 = vpop.f32.mrb[0].mxu0
        %2267 = vdwg.mxu0
        %v2268 = vadd.f32 %v2152, %v2262
        %v2269 = vadd.f32 %v2153, %v2265
        %s2270 = scalar_lea.vmem %s3, 104
        %v2271 = vld [vmem:[%s2270] sm:$0xf]
        %v2272 = vld [vmem:[%s2270 + $0x4] sm:$0xf]
        %v2275 = vunpack.c.l.b16 %v2271
        %v2276 = vunpack.c.l.b16 %v2272
        %v2277 = vpack.c.b16 %v2276, %v2275
        %v2279 = vsel %vm769, %v2277, 0
        %2281 = vmatprep.subr.bf16.mxu0 0
        %2282 = vmatpush1.bf16.msra.mxu0 %v755
        %2283 = vmatprep.subr.bf16.mxu0 0
        %2284 = vmatpush1.bf16.msra.mxu0 %v756
        %2285 = vmatprep.subr.bf16.mxu0 0
        %2286 = vmatpush1.bf16.msra.mxu0 %v757
        %2287 = vmatprep.subr.bf16.mxu0 0
        %2288 = vmatpush1.bf16.msra.mxu0 %v758
        %2289 = vmatprep.subr.bf16.mxu0 0
        %2290 = vmatpush1.bf16.msra.mxu0 %v759
        %2291 = vmatprep.subr.bf16.mxu0 0
        %2292 = vmatpush1.bf16.msra.mxu0 %v760
        %2293 = vmatprep.subr.bf16.mxu0 0
        %2294 = vmatpush1.bf16.msra.mxu0 %v775
        %2295 = vmatprep.subr.bf16.mxu0 0
        %2296 = vmatpush1.bf16.msra.mxu0 0
        %2297 = vmatprep.subr.bf16.mxu0 0
        %2298 = vmatpush1.bf16.msra.mxu0 0
        %2299 = vmatprep.subr.bf16.mxu0 0
        %2300 = vmatpush1.bf16.msra.mxu0 0
        %2301 = vmatprep.subr.bf16.mxu0 0
        %2302 = vmatpush1.bf16.msra.mxu0 0
        %2303 = vmatprep.subr.bf16.mxu0 0
        %2304 = vmatpush1.bf16.msra.mxu0 0
        %2305 = vmatprep.subr.bf16.mxu0 0
        %2306 = vmatpush1.bf16.msra.mxu0 0
        %2307 = vmatprep.subr.bf16.mxu0 0
        %2308 = vmatpush1.bf16.msra.mxu0 0
        %2309 = vmatprep.subr.bf16.mxu0 0
        %2310 = vmatpush1.bf16.msra.mxu0 0
        %2311 = vmatprep.subr.bf16.mxu0 0
        %2312 = vmatpush1.bf16.msra.mxu0 0
        %2313 = vmatprep.mubr.bf16.mxu0 0
        %2314 = vmatmul.mubr.bf16.gmra.mrb[0].mxu0 %v2279
        %v2315 = vpop.f32.mrb[0].mxu0
        %v2316 = vadd.f32 0.0, %v2315
        %v2317 = vpop.f32.mrb[0].mxu0
        %v2318 = vpop.f32.mrb[0].mxu0
        %v2319 = vadd.f32 0.0, %v2318
        %v2320 = vpop.f32.mrb[0].mxu0
        %2321 = vdwg.mxu0
        %v2322 = vpack.c.bf16 %v2319, %v2316
        %s2323 = scalar_lea.vmem %s4, 208
        %v2324 = vld [vmem:[%s2323] sm:$0xf]
        %v2325 = vld [vmem:[%s2323 + $0x4] sm:$0xf]
        %v2326 = vld [vmem:[%s2323 + $0x8] sm:$0xf]
        %v2327 = vld [vmem:[%s2323 + $0xc] sm:$0xf]
        %v2332 = vunpack.c.l.b16 %v2324
        %v2333 = vunpack.c.l.b16 %v2325
        %v2334 = vunpack.c.l.b16 %v2326
        %v2335 = vunpack.c.l.b16 %v2327
        %v2336 = vpack.c.b16 %v2333, %v2332
        %v2337 = vpack.c.b16 %v2335, %v2334
        %v2341 = vsel %vm893, %v2322, 0
        %2343 = vmatprep.subr.bf16.mxu0 0
        %2344 = vmatpush1.bf16.msra.mxu0 %v2336
        %2345 = vmatprep.subr.bf16.mxu0 0
        %2346 = vmatpush1.bf16.msra.mxu0 %v2337
        %2347 = vmatprep.subr.bf16.mxu0 0
        %2348 = vmatpush1.bf16.msra.mxu0 0
        %2349 = vmatprep.subr.bf16.mxu0 0
        %2350 = vmatpush1.bf16.msra.mxu0 0
        %2351 = vmatprep.subr.bf16.mxu0 0
        %2352 = vmatpush1.bf16.msra.mxu0 0
        %2353 = vmatprep.subr.bf16.mxu0 0
        %2354 = vmatpush1.bf16.msra.mxu0 0
        %2355 = vmatprep.subr.bf16.mxu0 0
        %2356 = vmatpush1.bf16.msra.mxu0 0
        %2357 = vmatprep.subr.bf16.mxu0 0
        %2358 = vmatpush1.bf16.msra.mxu0 0
        %2359 = vmatprep.subr.bf16.mxu0 0
        %2360 = vmatpush1.bf16.msra.mxu0 0
        %2361 = vmatprep.subr.bf16.mxu0 0
        %2362 = vmatpush1.bf16.msra.mxu0 0
        %2363 = vmatprep.subr.bf16.mxu0 0
        %2364 = vmatpush1.bf16.msra.mxu0 0
        %2365 = vmatprep.subr.bf16.mxu0 0
        %2366 = vmatpush1.bf16.msra.mxu0 0
        %2367 = vmatprep.subr.bf16.mxu0 0
        %2368 = vmatpush1.bf16.msra.mxu0 0
        %2369 = vmatprep.subr.bf16.mxu0 0
        %2370 = vmatpush1.bf16.msra.mxu0 0
        %2371 = vmatprep.subr.bf16.mxu0 0
        %2372 = vmatpush1.bf16.msra.mxu0 0
        %2373 = vmatprep.subr.bf16.mxu0 0
        %2374 = vmatpush1.bf16.msra.mxu0 0
        %2375 = vmatprep.mubr.bf16.mxu0 0
        %2376 = vmatmul.mubr.bf16.gmra.mrb[0].mxu0 %v2341
        %v2377 = vpop.f32.mrb[0].mxu0
        %v2378 = vadd.f32 0.0, %v2377
        %v2379 = vpop.f32.mrb[0].mxu0
        %v2380 = vpop.f32.mrb[0].mxu0
        %v2381 = vadd.f32 0.0, %v2380
        %v2382 = vpop.f32.mrb[0].mxu0
        %2383 = vdwg.mxu0
        %v2384 = vadd.f32 %v2268, %v2378
        %v2385 = vadd.f32 %v2269, %v2381
        %s2386 = scalar_lea.vmem %s3, 112
        %v2387 = vld [vmem:[%s2386] sm:$0xf]
        %v2388 = vld [vmem:[%s2386 + $0x4] sm:$0xf]
        %v2391 = vunpack.c.l.b16 %v2387
        %v2392 = vunpack.c.l.b16 %v2388
        %v2393 = vpack.c.b16 %v2392, %v2391
        %v2395 = vsel %vm769, %v2393, 0
        %2397 = vmatprep.subr.bf16.mxu0 0
        %2398 = vmatpush1.bf16.msra.mxu0 %v755
        %2399 = vmatprep.subr.bf16.mxu0 0
        %2400 = vmatpush1.bf16.msra.mxu0 %v756
        %2401 = vmatprep.subr.bf16.mxu0 0
        %2402 = vmatpush1.bf16.msra.mxu0 %v757
        %2403 = vmatprep.subr.bf16.mxu0 0
        %2404 = vmatpush1.bf16.msra.mxu0 %v758
        %2405 = vmatprep.subr.bf16.mxu0 0
        %2406 = vmatpush1.bf16.msra.mxu0 %v759
        %2407 = vmatprep.subr.bf16.mxu0 0
        %2408 = vmatpush1.bf16.msra.mxu0 %v760
        %2409 = vmatprep.subr.bf16.mxu0 0
        %2410 = vmatpush1.bf16.msra.mxu0 %v775
        %2411 = vmatprep.subr.bf16.mxu0 0
        %2412 = vmatpush1.bf16.msra.mxu0 0
        %2413 = vmatprep.subr.bf16.mxu0 0
        %2414 = vmatpush1.bf16.msra.mxu0 0
        %2415 = vmatprep.subr.bf16.mxu0 0
        %2416 = vmatpush1.bf16.msra.mxu0 0
        %2417 = vmatprep.subr.bf16.mxu0 0
        %2418 = vmatpush1.bf16.msra.mxu0 0
        %2419 = vmatprep.subr.bf16.mxu0 0
        %2420 = vmatpush1.bf16.msra.mxu0 0
        %2421 = vmatprep.subr.bf16.mxu0 0
        %2422 = vmatpush1.bf16.msra.mxu0 0
        %2423 = vmatprep.subr.bf16.mxu0 0
        %2424 = vmatpush1.bf16.msra.mxu0 0
        %2425 = vmatprep.subr.bf16.mxu0 0
        %2426 = vmatpush1.bf16.msra.mxu0 0
        %2427 = vmatprep.subr.bf16.mxu0 0
        %2428 = vmatpush1.bf16.msra.mxu0 0
        %2429 = vmatprep.mubr.bf16.mxu0 0
        %2430 = vmatmul.mubr.bf16.gmra.mrb[0].mxu0 %v2395
        %v2431 = vpop.f32.mrb[0].mxu0
        %v2432 = vadd.f32 0.0, %v2431
        %v2433 = vpop.f32.mrb[0].mxu0
        %v2434 = vpop.f32.mrb[0].mxu0
        %v2435 = vadd.f32 0.0, %v2434
        %v2436 = vpop.f32.mrb[0].mxu0
        %2437 = vdwg.mxu0
        %v2438 = vpack.c.bf16 %v2435, %v2432
        %s2439 = scalar_lea.vmem %s4, 224
        %v2440 = vld [vmem:[%s2439] sm:$0xf]
        %v2441 = vld [vmem:[%s2439 + $0x4] sm:$0xf]
        %v2442 = vld [vmem:[%s2439 + $0x8] sm:$0xf]
        %v2443 = vld [vmem:[%s2439 + $0xc] sm:$0xf]
        %v2448 = vunpack.c.l.b16 %v2440
        %v2449 = vunpack.c.l.b16 %v2441
        %v2450 = vunpack.c.l.b16 %v2442
        %v2451 = vunpack.c.l.b16 %v2443
        %v2452 = vpack.c.b16 %v2449, %v2448
        %v2453 = vpack.c.b16 %v2451, %v2450
        %v2457 = vsel %vm893, %v2438, 0
        %2459 = vmatprep.subr.bf16.mxu0 0
        %2460 = vmatpush1.bf16.msra.mxu0 %v2452
        %2461 = vmatprep.subr.bf16.mxu0 0
        %2462 = vmatpush1.bf16.msra.mxu0 %v2453
        %2463 = vmatprep.subr.bf16.mxu0 0
        %2464 = vmatpush1.bf16.msra.mxu0 0
        %2465 = vmatprep.subr.bf16.mxu0 0
        %2466 = vmatpush1.bf16.msra.mxu0 0
        %2467 = vmatprep.subr.bf16.mxu0 0
        %2468 = vmatpush1.bf16.msra.mxu0 0
        %2469 = vmatprep.subr.bf16.mxu0 0
        %2470 = vmatpush1.bf16.msra.mxu0 0
        %2471 = vmatprep.subr.bf16.mxu0 0
        %2472 = vmatpush1.bf16.msra.mxu0 0
        %2473 = vmatprep.subr.bf16.mxu0 0
        %2474 = vmatpush1.bf16.msra.mxu0 0
        %2475 = vmatprep.subr.bf16.mxu0 0
        %2476 = vmatpush1.bf16.msra.mxu0 0
        %2477 = vmatprep.subr.bf16.mxu0 0
        %2478 = vmatpush1.bf16.msra.mxu0 0
        %2479 = vmatprep.subr.bf16.mxu0 0
        %2480 = vmatpush1.bf16.msra.mxu0 0
        %2481 = vmatprep.subr.bf16.mxu0 0
        %2482 = vmatpush1.bf16.msra.mxu0 0
        %2483 = vmatprep.subr.bf16.mxu0 0
        %2484 = vmatpush1.bf16.msra.mxu0 0
        %2485 = vmatprep.subr.bf16.mxu0 0
        %2486 = vmatpush1.bf16.msra.mxu0 0
        %2487 = vmatprep.subr.bf16.mxu0 0
        %2488 = vmatpush1.bf16.msra.mxu0 0
        %2489 = vmatprep.subr.bf16.mxu0 0
        %2490 = vmatpush1.bf16.msra.mxu0 0
        %2491 = vmatprep.mubr.bf16.mxu0 0
        %2492 = vmatmul.mubr.bf16.gmra.mrb[0].mxu0 %v2457
        %v2493 = vpop.f32.mrb[0].mxu0
        %v2494 = vadd.f32 0.0, %v2493
        %v2495 = vpop.f32.mrb[0].mxu0
        %v2496 = vpop.f32.mrb[0].mxu0
        %v2497 = vadd.f32 0.0, %v2496
        %v2498 = vpop.f32.mrb[0].mxu0
        %2499 = vdwg.mxu0
        %v2500 = vadd.f32 %v2384, %v2494
        %v2501 = vadd.f32 %v2385, %v2497
        %s2502 = scalar_lea.vmem %s3, 120
        %v2503 = vld [vmem:[%s2502] sm:$0xf]
        %v2504 = vld [vmem:[%s2502 + $0x4] sm:$0xf]
        %v2507 = vunpack.c.l.b16 %v2503
        %v2508 = vunpack.c.l.b16 %v2504
        %v2509 = vpack.c.b16 %v2508, %v2507
        %v2511 = vsel %vm769, %v2509, 0
        %2513 = vmatprep.subr.bf16.mxu0 0
        %2514 = vmatpush1.bf16.msra.mxu0 %v755
        %2515 = vmatprep.subr.bf16.mxu0 0
        %2516 = vmatpush1.bf16.msra.mxu0 %v756
        %2517 = vmatprep.subr.bf16.mxu0 0
        %2518 = vmatpush1.bf16.msra.mxu0 %v757
        %2519 = vmatprep.subr.bf16.mxu0 0
        %2520 = vmatpush1.bf16.msra.mxu0 %v758
        %2521 = vmatprep.subr.bf16.mxu0 0
        %2522 = vmatpush1.bf16.msra.mxu0 %v759
        %2523 = vmatprep.subr.bf16.mxu0 0
        %2524 = vmatpush1.bf16.msra.mxu0 %v760
        %2525 = vmatprep.subr.bf16.mxu0 0
        %2526 = vmatpush1.bf16.msra.mxu0 %v775
        %2527 = vmatprep.subr.bf16.mxu0 0
        %2528 = vmatpush1.bf16.msra.mxu0 0
        %2529 = vmatprep.subr.bf16.mxu0 0
        %2530 = vmatpush1.bf16.msra.mxu0 0
        %2531 = vmatprep.subr.bf16.mxu0 0
        %2532 = vmatpush1.bf16.msra.mxu0 0
        %2533 = vmatprep.subr.bf16.mxu0 0
        %2534 = vmatpush1.bf16.msra.mxu0 0
        %2535 = vmatprep.subr.bf16.mxu0 0
        %2536 = vmatpush1.bf16.msra.mxu0 0
        %2537 = vmatprep.subr.bf16.mxu0 0
        %2538 = vmatpush1.bf16.msra.mxu0 0
        %2539 = vmatprep.subr.bf16.mxu0 0
        %2540 = vmatpush1.bf16.msra.mxu0 0
        %2541 = vmatprep.subr.bf16.mxu0 0
        %2542 = vmatpush1.bf16.msra.mxu0 0
        %2543 = vmatprep.subr.bf16.mxu0 0
        %2544 = vmatpush1.bf16.msra.mxu0 0
        %2545 = vmatprep.mubr.bf16.mxu0 0
        %2546 = vmatmul.mubr.bf16.gmra.mrb[0].mxu0 %v2511
        %v2547 = vpop.f32.mrb[0].mxu0
        %v2548 = vadd.f32 0.0, %v2547
        %v2549 = vpop.f32.mrb[0].mxu0
        %v2550 = vpop.f32.mrb[0].mxu0
        %v2551 = vadd.f32 0.0, %v2550
        %v2552 = vpop.f32.mrb[0].mxu0
        %2553 = vdwg.mxu0
        %v2554 = vpack.c.bf16 %v2551, %v2548
        %s2555 = scalar_lea.vmem %s4, 240
        %v2556 = vld [vmem:[%s2555] sm:$0xf]
        %v2557 = vld [vmem:[%s2555 + $0x4] sm:$0xf]
        %v2558 = vld [vmem:[%s2555 + $0x8] sm:$0xf]
        %v2559 = vld [vmem:[%s2555 + $0xc] sm:$0xf]
        %v2564 = vunpack.c.l.b16 %v2556
        %v2565 = vunpack.c.l.b16 %v2557
        %v2566 = vunpack.c.l.b16 %v2558
        %v2567 = vunpack.c.l.b16 %v2559
        %v2568 = vpack.c.b16 %v2565, %v2564
        %v2569 = vpack.c.b16 %v2567, %v2566
        %v2573 = vsel %vm893, %v2554, 0
        %2575 = vmatprep.subr.bf16.mxu0 0
        %2576 = vmatpush1.bf16.msra.mxu0 %v2568
        %2577 = vmatprep.subr.bf16.mxu0 0
        %2578 = vmatpush1.bf16.msra.mxu0 %v2569
        %2579 = vmatprep.subr.bf16.mxu0 0
        %2580 = vmatpush1.bf16.msra.mxu0 0
        %2581 = vmatprep.subr.bf16.mxu0 0
        %2582 = vmatpush1.bf16.msra.mxu0 0
        %2583 = vmatprep.subr.bf16.mxu0 0
        %2584 = vmatpush1.bf16.msra.mxu0 0
        %2585 = vmatprep.subr.bf16.mxu0 0
        %2586 = vmatpush1.bf16.msra.mxu0 0
        %2587 = vmatprep.subr.bf16.mxu0 0
        %2588 = vmatpush1.bf16.msra.mxu0 0
        %2589 = vmatprep.subr.bf16.mxu0 0
        %2590 = vmatpush1.bf16.msra.mxu0 0
        %2591 = vmatprep.subr.bf16.mxu0 0
        %2592 = vmatpush1.bf16.msra.mxu0 0
        %2593 = vmatprep.subr.bf16.mxu0 0
        %2594 = vmatpush1.bf16.msra.mxu0 0
        %2595 = vmatprep.subr.bf16.mxu0 0
        %2596 = vmatpush1.bf16.msra.mxu0 0
        %2597 = vmatprep.subr.bf16.mxu0 0
        %2598 = vmatpush1.bf16.msra.mxu0 0
        %2599 = vmatprep.subr.bf16.mxu0 0
        %2600 = vmatpush1.bf16.msra.mxu0 0
        %2601 = vmatprep.subr.bf16.mxu0 0
        %2602 = vmatpush1.bf16.msra.mxu0 0
        %2603 = vmatprep.subr.bf16.mxu0 0
        %2604 = vmatpush1.bf16.msra.mxu0 0
        %2605 = vmatprep.subr.bf16.mxu0 0
        %2606 = vmatpush1.bf16.msra.mxu0 0
        %2607 = vmatprep.mubr.bf16.mxu0 0
        %2608 = vmatmul.mubr.bf16.gmra.mrb[0].mxu0 %v2573
        %v2609 = vpop.f32.mrb[0].mxu0
        %v2610 = vadd.f32 0.0, %v2609
        %v2611 = vpop.f32.mrb[0].mxu0
        %v2612 = vpop.f32.mrb[0].mxu0
        %v2613 = vadd.f32 0.0, %v2612
        %v2614 = vpop.f32.mrb[0].mxu0
        %2615 = vdwg.mxu0
        %v2616 = vadd.f32 %v2500, %v2610
        %v2617 = vadd.f32 %v2501, %v2613
        %v2618 = vld [vmem:[%s5] sm:$0x1]
        %v2620 = vlaneseq
        %v2621 = vshrl.u32 %v2620, 7
        %v2622 = vsub.s32 0, %v2621
        %v2623 = vrot.slane %v2618, %v2622
        %v2625 = vadd.f32 %v2616, %v2623
        %v2626 = vadd.f32 %v2617, %v2623
        %v2627 = vmax.f32 %v2625, 0.0
        %v2628 = vmax.f32 %v2626, 0.0
        %v2629 = vpack.c.bf16 %v2628, %v2627
        %v2630 = vld [vmem:[%s6] sm:$0x3]
        %vm2631 = vcmask 130048
        %v2633 = vsel %vm2631, %v2630, 0
        %2635 = vmatprep.subr.bf16.mxu0 0
        %2636 = vmatpush1.bf16.msra.mxu0 %v2629
        %2637 = vmatprep.subr.bf16.mxu0 0
        %2638 = vmatpush1.bf16.msra.mxu0 0
        %2639 = vmatprep.subr.bf16.mxu0 0
        %2640 = vmatpush1.bf16.msra.mxu0 0
        %2641 = vmatprep.subr.bf16.mxu0 0
        %2642 = vmatpush1.bf16.msra.mxu0 0
        %2643 = vmatprep.subr.bf16.mxu0 0
        %2644 = vmatpush1.bf16.msra.mxu0 0
        %2645 = vmatprep.subr.bf16.mxu0 0
        %2646 = vmatpush1.bf16.msra.mxu0 0
        %2647 = vmatprep.subr.bf16.mxu0 0
        %2648 = vmatpush1.bf16.msra.mxu0 0
        %2649 = vmatprep.subr.bf16.mxu0 0
        %2650 = vmatpush1.bf16.msra.mxu0 0
        %2651 = vmatprep.subr.bf16.mxu0 0
        %2652 = vmatpush1.bf16.msra.mxu0 0
        %2653 = vmatprep.subr.bf16.mxu0 0
        %2654 = vmatpush1.bf16.msra.mxu0 0
        %2655 = vmatprep.subr.bf16.mxu0 0
        %2656 = vmatpush1.bf16.msra.mxu0 0
        %2657 = vmatprep.subr.bf16.mxu0 0
        %2658 = vmatpush1.bf16.msra.mxu0 0
        %2659 = vmatprep.subr.bf16.mxu0 0
        %2660 = vmatpush1.bf16.msra.mxu0 0
        %2661 = vmatprep.subr.bf16.mxu0 0
        %2662 = vmatpush1.bf16.msra.mxu0 0
        %2663 = vmatprep.subr.bf16.mxu0 0
        %2664 = vmatpush1.bf16.msra.mxu0 0
        %2665 = vmatprep.subr.bf16.mxu0 0
        %2666 = vmatpush1.bf16.msra.mxu0 0
        %2667 = vmatprep.mubr.bf16.mxu0 0
        %2668 = vmatmul.mubr.bf16.gmra.mrb[0].mxu0 %v2633
        %v2669 = vpop.f32.mrb[0].mxu0
        %v2670 = vadd.f32 0.0, %v2669
        %v2671 = vpop.f32.mrb[0].mxu0
        %v2672 = vpop.f32.mrb[0].mxu0
        %v2673 = vpop.f32.mrb[0].mxu0
        %2674 = vdwg.mxu0
        %v2675 = vpack.c.bf16 %v2670, %v2670
        %v2676 = vld [vmem:[%s7] sm:$0xf]
        %v2677 = vld [vmem:[%s7 + $0x4] sm:$0xf]
        %v2678 = vld [vmem:[%s7 + $0x8] sm:$0xf]
        %v2679 = vld [vmem:[%s7 + $0xc] sm:$0xf]
        %v2680 = vld [vmem:[%s7 + $0x10] sm:$0xf]
        %v2681 = vld [vmem:[%s7 + $0x14] sm:$0xf]
        %v2682 = vld [vmem:[%s7 + $0x18] sm:$0xf]
        %v2683 = vld [vmem:[%s7 + $0x1c] sm:$0xf]
        %s2684 = scalar_lea.vmem %s6, 2
        %v2685 = vld [vmem:[%s2684] sm:$0x3]
        %v2687 = vsel %vm2631, %v2685, 0
        %2689 = vmatprep.subr.bf16.mxu0 0
        %2690 = vmatpush1.bf16.msra.mxu0 %v2629
        %2691 = vmatprep.subr.bf16.mxu0 0
        %2692 = vmatpush1.bf16.msra.mxu0 0
        %2693 = vmatprep.subr.bf16.mxu0 0
        %2694 = vmatpush1.bf16.msra.mxu0 0
        %2695 = vmatprep.subr.bf16.mxu0 0
        %2696 = vmatpush1.bf16.msra.mxu0 0
        %2697 = vmatprep.subr.bf16.mxu0 0
        %2698 = vmatpush1.bf16.msra.mxu0 0
        %2699 = vmatprep.subr.bf16.mxu0 0
        %2700 = vmatpush1.bf16.msra.mxu0 0
        %2701 = vmatprep.subr.bf16.mxu0 0
        %2702 = vmatpush1.bf16.msra.mxu0 0
        %2703 = vmatprep.subr.bf16.mxu0 0
        %2704 = vmatpush1.bf16.msra.mxu0 0
        %2705 = vmatprep.subr.bf16.mxu0 0
        %2706 = vmatpush1.bf16.msra.mxu0 0
        %2707 = vmatprep.subr.bf16.mxu0 0
        %2708 = vmatpush1.bf16.msra.mxu0 0
        %2709 = vmatprep.subr.bf16.mxu0 0
        %2710 = vmatpush1.bf16.msra.mxu0 0
        %2711 = vmatprep.subr.bf16.mxu0 0
        %2712 = vmatpush1.bf16.msra.mxu0 0
        %2713 = vmatprep.subr.bf16.mxu0 0
        %2714 = vmatpush1.bf16.msra.mxu0 0
        %2715 = vmatprep.subr.bf16.mxu0 0
        %2716 = vmatpush1.bf16.msra.mxu0 0
        %2717 = vmatprep.subr.bf16.mxu0 0
        %2718 = vmatpush1.bf16.msra.mxu0 0
        %2719 = vmatprep.subr.bf16.mxu0 0
        %2720 = vmatpush1.bf16.msra.mxu0 0
        %2721 = vmatprep.mubr.bf16.mxu0 0
        %2722 = vmatmul.mubr.bf16.gmra.mrb[0].mxu0 %v2687
        %v2723 = vpop.f32.mrb[0].mxu0
        %v2724 = vadd.f32 0.0, %v2723
        %v2725 = vpop.f32.mrb[0].mxu0
        %v2726 = vpop.f32.mrb[0].mxu0
        %v2727 = vpop.f32.mrb[0].mxu0
        %2728 = vdwg.mxu0
        %v2729 = vpack.c.bf16 %v2724, %v2724
        %s2730 = scalar_lea.vmem %s7, 32
        %v2731 = vld [vmem:[%s2730] sm:$0xf]
        %v2732 = vld [vmem:[%s2730 + $0x4] sm:$0xf]
        %v2733 = vld [vmem:[%s2730 + $0x8] sm:$0xf]
        %v2734 = vld [vmem:[%s2730 + $0xc] sm:$0xf]
        %v2735 = vld [vmem:[%s2730 + $0x10] sm:$0xf]
        %v2736 = vld [vmem:[%s2730 + $0x14] sm:$0xf]
        %v2737 = vld [vmem:[%s2730 + $0x18] sm:$0xf]
        %v2738 = vld [vmem:[%s2730 + $0x1c] sm:$0xf]
        %v2747 = vunpack.c.l.b16 %v2731
        %v2748 = vunpack.c.l.b16 %v2732
        %v2749 = vunpack.c.l.b16 %v2733
        %v2750 = vunpack.c.l.b16 %v2734
        %v2751 = vunpack.c.l.b16 %v2735
        %v2752 = vunpack.c.l.b16 %v2736
        %v2753 = vunpack.c.l.b16 %v2737
        %v2754 = vunpack.c.l.b16 %v2738
        %v2755 = vpack.c.b16 %v2748, %v2747
        %v2756 = vpack.c.b16 %v2750, %v2749
        %v2757 = vpack.c.b16 %v2752, %v2751
        %v2758 = vpack.c.b16 %v2754, %v2753
        %vm2763 = vcmask 523264
        %v2765 = vsel %vm2763, %v2729, 0
        %2767 = vmatprep.subr.bf16.mxu0 0
        %2768 = vmatpush1.bf16.msra.mxu0 %v2755
        %2769 = vmatprep.subr.bf16.mxu0 0
        %2770 = vmatpush1.bf16.msra.mxu0 %v2756
        %2771 = vmatprep.subr.bf16.mxu0 0
        %2772 = vmatpush1.bf16.msra.mxu0 %v2757
        %2773 = vmatprep.subr.bf16.mxu0 0
        %2774 = vmatpush1.bf16.msra.mxu0 %v2758
        %2775 = vmatprep.subr.bf16.mxu0 0
        %2776 = vmatpush1.bf16.msra.mxu0 0
        %2777 = vmatprep.subr.bf16.mxu0 0
        %2778 = vmatpush1.bf16.msra.mxu0 0
        %2779 = vmatprep.subr.bf16.mxu0 0
        %2780 = vmatpush1.bf16.msra.mxu0 0
        %2781 = vmatprep.subr.bf16.mxu0 0
        %2782 = vmatpush1.bf16.msra.mxu0 0
        %2783 = vmatprep.subr.bf16.mxu0 0
        %2784 = vmatpush1.bf16.msra.mxu0 0
        %2785 = vmatprep.subr.bf16.mxu0 0
        %2786 = vmatpush1.bf16.msra.mxu0 0
        %2787 = vmatprep.subr.bf16.mxu0 0
        %2788 = vmatpush1.bf16.msra.mxu0 0
        %2789 = vmatprep.subr.bf16.mxu0 0
        %2790 = vmatpush1.bf16.msra.mxu0 0
        %2791 = vmatprep.subr.bf16.mxu0 0
        %2792 = vmatpush1.bf16.msra.mxu0 0
        %2793 = vmatprep.subr.bf16.mxu0 0
        %2794 = vmatpush1.bf16.msra.mxu0 0
        %2795 = vmatprep.subr.bf16.mxu0 0
        %2796 = vmatpush1.bf16.msra.mxu0 0
        %2797 = vmatprep.subr.bf16.mxu0 0
        %2798 = vmatpush1.bf16.msra.mxu0 0
        %2799 = vmatprep.mubr.bf16.mxu0 0
        %2800 = vmatmul.mubr.bf16.gmra.mrb[0].mxu0 %v2765
        %v2801 = vpop.f32.mrb[0].mxu0
        %v2802 = vadd.f32 0.0, %v2801
        %v2803 = vpop.f32.mrb[0].mxu0
        %v2804 = vpop.f32.mrb[0].mxu0
        %v2805 = vpop.f32.mrb[0].mxu0
        %2806 = vdwg.mxu0
        %v2815 = vunpack.c.l.b16 %v2676
        %v2816 = vunpack.c.l.b16 %v2677
        %v2817 = vunpack.c.l.b16 %v2678
        %v2818 = vunpack.c.l.b16 %v2679
        %v2819 = vunpack.c.l.b16 %v2680
        %v2820 = vunpack.c.l.b16 %v2681
        %v2821 = vunpack.c.l.b16 %v2682
        %v2822 = vunpack.c.l.b16 %v2683
        %v2823 = vpack.c.b16 %v2816, %v2815
        %v2824 = vpack.c.b16 %v2818, %v2817
        %v2825 = vpack.c.b16 %v2820, %v2819
        %v2826 = vpack.c.b16 %v2822, %v2821
        %v2832 = vsel %vm2763, %v2675, 0
        %2834 = vmatprep.subr.bf16.mxu0 0
        %2835 = vmatpush1.bf16.msra.mxu0 %v2823
        %2836 = vmatprep.subr.bf16.mxu0 0
        %2837 = vmatpush1.bf16.msra.mxu0 %v2824
        %2838 = vmatprep.subr.bf16.mxu0 0
        %2839 = vmatpush1.bf16.msra.mxu0 %v2825
        %2840 = vmatprep.subr.bf16.mxu0 0
        %2841 = vmatpush1.bf16.msra.mxu0 %v2826
        %2842 = vmatprep.subr.bf16.mxu0 0
        %2843 = vmatpush1.bf16.msra.mxu0 0
        %2844 = vmatprep.subr.bf16.mxu0 0
        %2845 = vmatpush1.bf16.msra.mxu0 0
        %2846 = vmatprep.subr.bf16.mxu0 0
        %2847 = vmatpush1.bf16.msra.mxu0 0
        %2848 = vmatprep.subr.bf16.mxu0 0
        %2849 = vmatpush1.bf16.msra.mxu0 0
        %2850 = vmatprep.subr.bf16.mxu0 0
        %2851 = vmatpush1.bf16.msra.mxu0 0
        %2852 = vmatprep.subr.bf16.mxu0 0
        %2853 = vmatpush1.bf16.msra.mxu0 0
        %2854 = vmatprep.subr.bf16.mxu0 0
        %2855 = vmatpush1.bf16.msra.mxu0 0
        %2856 = vmatprep.subr.bf16.mxu0 0
        %2857 = vmatpush1.bf16.msra.mxu0 0
        %2858 = vmatprep.subr.bf16.mxu0 0
        %2859 = vmatpush1.bf16.msra.mxu0 0
        %2860 = vmatprep.subr.bf16.mxu0 0
        %2861 = vmatpush1.bf16.msra.mxu0 0
        %2862 = vmatprep.subr.bf16.mxu0 0
        %2863 = vmatpush1.bf16.msra.mxu0 0
        %2864 = vmatprep.subr.bf16.mxu0 0
        %2865 = vmatpush1.bf16.msra.mxu0 0
        %2866 = vmatprep.mubr.bf16.mxu0 0
        %2867 = vmatmul.mubr.bf16.gmra.mrb[0].mxu0 %v2832
        %v2868 = vpop.f32.mrb[0].mxu0
        %v2869 = vadd.f32 %v2802, %v2868
        %v2870 = vpop.f32.mrb[0].mxu0
        %v2871 = vpop.f32.mrb[0].mxu0
        %v2872 = vpop.f32.mrb[0].mxu0
        %2873 = vdwg.mxu0
        %s2874 = scalar_lea.vmem %s6, 4
        %v2875 = vld [vmem:[%s2874] sm:$0x3]
        %v2877 = vsel %vm2631, %v2875, 0
        %2879 = vmatprep.subr.bf16.mxu0 0
        %2880 = vmatpush1.bf16.msra.mxu0 %v2629
        %2881 = vmatprep.subr.bf16.mxu0 0
        %2882 = vmatpush1.bf16.msra.mxu0 0
        %2883 = vmatprep.subr.bf16.mxu0 0
        %2884 = vmatpush1.bf16.msra.mxu0 0
        %2885 = vmatprep.subr.bf16.mxu0 0
        %2886 = vmatpush1.bf16.msra.mxu0 0
        %2887 = vmatprep.subr.bf16.mxu0 0
        %2888 = vmatpush1.bf16.msra.mxu0 0
        %2889 = vmatprep.subr.bf16.mxu0 0
        %2890 = vmatpush1.bf16.msra.mxu0 0
        %2891 = vmatprep.subr.bf16.mxu0 0
        %2892 = vmatpush1.bf16.msra.mxu0 0
        %2893 = vmatprep.subr.bf16.mxu0 0
        %2894 = vmatpush1.bf16.msra.mxu0 0
        %2895 = vmatprep.subr.bf16.mxu0 0
        %2896 = vmatpush1.bf16.msra.mxu0 0
        %2897 = vmatprep.subr.bf16.mxu0 0
        %2898 = vmatpush1.bf16.msra.mxu0 0
        %2899 = vmatprep.subr.bf16.mxu0 0
        %2900 = vmatpush1.bf16.msra.mxu0 0
        %2901 = vmatprep.subr.bf16.mxu0 0
        %2902 = vmatpush1.bf16.msra.mxu0 0
        %2903 = vmatprep.subr.bf16.mxu0 0
        %2904 = vmatpush1.bf16.msra.mxu0 0
        %2905 = vmatprep.subr.bf16.mxu0 0
        %2906 = vmatpush1.bf16.msra.mxu0 0
        %2907 = vmatprep.subr.bf16.mxu0 0
        %2908 = vmatpush1.bf16.msra.mxu0 0
        %2909 = vmatprep.subr.bf16.mxu0 0
        %2910 = vmatpush1.bf16.msra.mxu0 0
        %2911 = vmatprep.mubr.bf16.mxu0 0
        %2912 = vmatmul.mubr.bf16.gmra.mrb[0].mxu0 %v2877
        %v2913 = vpop.f32.mrb[0].mxu0
        %v2914 = vadd.f32 0.0, %v2913
        %v2915 = vpop.f32.mrb[0].mxu0
        %v2916 = vpop.f32.mrb[0].mxu0
        %v2917 = vpop.f32.mrb[0].mxu0
        %2918 = vdwg.mxu0
        %v2919 = vpack.c.bf16 %v2914, %v2914
        %s2920 = scalar_lea.vmem %s7, 64
        %v2921 = vld [vmem:[%s2920] sm:$0xf]
        %v2922 = vld [vmem:[%s2920 + $0x4] sm:$0xf]
        %v2923 = vld [vmem:[%s2920 + $0x8] sm:$0xf]
        %v2924 = vld [vmem:[%s2920 + $0xc] sm:$0xf]
        %v2925 = vld [vmem:[%s2920 + $0x10] sm:$0xf]
        %v2926 = vld [vmem:[%s2920 + $0x14] sm:$0xf]
        %v2927 = vld [vmem:[%s2920 + $0x18] sm:$0xf]
        %v2928 = vld [vmem:[%s2920 + $0x1c] sm:$0xf]
        %v2937 = vunpack.c.l.b16 %v2921
        %v2938 = vunpack.c.l.b16 %v2922
        %v2939 = vunpack.c.l.b16 %v2923
        %v2940 = vunpack.c.l.b16 %v2924
        %v2941 = vunpack.c.l.b16 %v2925
        %v2942 = vunpack.c.l.b16 %v2926
        %v2943 = vunpack.c.l.b16 %v2927
        %v2944 = vunpack.c.l.b16 %v2928
        %v2945 = vpack.c.b16 %v2938, %v2937
        %v2946 = vpack.c.b16 %v2940, %v2939
        %v2947 = vpack.c.b16 %v2942, %v2941
        %v2948 = vpack.c.b16 %v2944, %v2943
        %v2954 = vsel %vm2763, %v2919, 0
        %2956 = vmatprep.subr.bf16.mxu0 0
        %2957 = vmatpush1.bf16.msra.mxu0 %v2945
        %2958 = vmatprep.subr.bf16.mxu0 0
        %2959 = vmatpush1.bf16.msra.mxu0 %v2946
        %2960 = vmatprep.subr.bf16.mxu0 0
        %2961 = vmatpush1.bf16.msra.mxu0 %v2947
        %2962 = vmatprep.subr.bf16.mxu0 0
        %2963 = vmatpush1.bf16.msra.mxu0 %v2948
        %2964 = vmatprep.subr.bf16.mxu0 0
        %2965 = vmatpush1.bf16.msra.mxu0 0
        %2966 = vmatprep.subr.bf16.mxu0 0
        %2967 = vmatpush1.bf16.msra.mxu0 0
        %2968 = vmatprep.subr.bf16.mxu0 0
        %2969 = vmatpush1.bf16.msra.mxu0 0
        %2970 = vmatprep.subr.bf16.mxu0 0
        %2971 = vmatpush1.bf16.msra.mxu0 0
        %2972 = vmatprep.subr.bf16.mxu0 0
        %2973 = vmatpush1.bf16.msra.mxu0 0
        %2974 = vmatprep.subr.bf16.mxu0 0
        %2975 = vmatpush1.bf16.msra.mxu0 0
        %2976 = vmatprep.subr.bf16.mxu0 0
        %2977 = vmatpush1.bf16.msra.mxu0 0
        %2978 = vmatprep.subr.bf16.mxu0 0
        %2979 = vmatpush1.bf16.msra.mxu0 0
        %2980 = vmatprep.subr.bf16.mxu0 0
        %2981 = vmatpush1.bf16.msra.mxu0 0
        %2982 = vmatprep.subr.bf16.mxu0 0
        %2983 = vmatpush1.bf16.msra.mxu0 0
        %2984 = vmatprep.subr.bf16.mxu0 0
        %2985 = vmatpush1.bf16.msra.mxu0 0
        %2986 = vmatprep.subr.bf16.mxu0 0
        %2987 = vmatpush1.bf16.msra.mxu0 0
        %2988 = vmatprep.mubr.bf16.mxu0 0
        %2989 = vmatmul.mubr.bf16.gmra.mrb[0].mxu0 %v2954
        %v2990 = vpop.f32.mrb[0].mxu0
        %v2991 = vadd.f32 0.0, %v2990
        %v2992 = vpop.f32.mrb[0].mxu0
        %v2993 = vpop.f32.mrb[0].mxu0
        %v2994 = vpop.f32.mrb[0].mxu0
        %2995 = vdwg.mxu0
        %v2996 = vadd.f32 %v2869, %v2991
        %s2997 = scalar_lea.vmem %s6, 6
        %v2998 = vld [vmem:[%s2997] sm:$0x3]
        %v3000 = vsel %vm2631, %v2998, 0
        %3002 = vmatprep.subr.bf16.mxu0 0
        %3003 = vmatpush1.bf16.msra.mxu0 %v2629
        %3004 = vmatprep.subr.bf16.mxu0 0
        %3005 = vmatpush1.bf16.msra.mxu0 0
        %3006 = vmatprep.subr.bf16.mxu0 0
        %3007 = vmatpush1.bf16.msra.mxu0 0
        %3008 = vmatprep.subr.bf16.mxu0 0
        %3009 = vmatpush1.bf16.msra.mxu0 0
        %3010 = vmatprep.subr.bf16.mxu0 0
        %3011 = vmatpush1.bf16.msra.mxu0 0
        %3012 = vmatprep.subr.bf16.mxu0 0
        %3013 = vmatpush1.bf16.msra.mxu0 0
        %3014 = vmatprep.subr.bf16.mxu0 0
        %3015 = vmatpush1.bf16.msra.mxu0 0
        %3016 = vmatprep.subr.bf16.mxu0 0
        %3017 = vmatpush1.bf16.msra.mxu0 0
        %3018 = vmatprep.subr.bf16.mxu0 0
        %3019 = vmatpush1.bf16.msra.mxu0 0
        %3020 = vmatprep.subr.bf16.mxu0 0
        %3021 = vmatpush1.bf16.msra.mxu0 0
        %3022 = vmatprep.subr.bf16.mxu0 0
        %3023 = vmatpush1.bf16.msra.mxu0 0
        %3024 = vmatprep.subr.bf16.mxu0 0
        %3025 = vmatpush1.bf16.msra.mxu0 0
        %3026 = vmatprep.subr.bf16.mxu0 0
        %3027 = vmatpush1.bf16.msra.mxu0 0
        %3028 = vmatprep.subr.bf16.mxu0 0
        %3029 = vmatpush1.bf16.msra.mxu0 0
        %3030 = vmatprep.subr.bf16.mxu0 0
        %3031 = vmatpush1.bf16.msra.mxu0 0
        %3032 = vmatprep.subr.bf16.mxu0 0
        %3033 = vmatpush1.bf16.msra.mxu0 0
        %3034 = vmatprep.mubr.bf16.mxu0 0
        %3035 = vmatmul.mubr.bf16.gmra.mrb[0].mxu0 %v3000
        %v3036 = vpop.f32.mrb[0].mxu0
        %v3037 = vadd.f32 0.0, %v3036
        %v3038 = vpop.f32.mrb[0].mxu0
        %v3039 = vpop.f32.mrb[0].mxu0
        %v3040 = vpop.f32.mrb[0].mxu0
        %3041 = vdwg.mxu0
        %v3042 = vpack.c.bf16 %v3037, %v3037
        %s3043 = scalar_lea.vmem %s7, 96
        %v3044 = vld [vmem:[%s3043] sm:$0xf]
        %v3045 = vld [vmem:[%s3043 + $0x4] sm:$0xf]
        %v3046 = vld [vmem:[%s3043 + $0x8] sm:$0xf]
        %v3047 = vld [vmem:[%s3043 + $0xc] sm:$0xf]
        %v3048 = vld [vmem:[%s3043 + $0x10] sm:$0xf]
        %v3049 = vld [vmem:[%s3043 + $0x14] sm:$0xf]
        %v3050 = vld [vmem:[%s3043 + $0x18] sm:$0xf]
        %v3051 = vld [vmem:[%s3043 + $0x1c] sm:$0xf]
        %v3060 = vunpack.c.l.b16 %v3044
        %v3061 = vunpack.c.l.b16 %v3045
        %v3062 = vunpack.c.l.b16 %v3046
        %v3063 = vunpack.c.l.b16 %v3047
        %v3064 = vunpack.c.l.b16 %v3048
        %v3065 = vunpack.c.l.b16 %v3049
        %v3066 = vunpack.c.l.b16 %v3050
        %v3067 = vunpack.c.l.b16 %v3051
        %v3068 = vpack.c.b16 %v3061, %v3060
        %v3069 = vpack.c.b16 %v3063, %v3062
        %v3070 = vpack.c.b16 %v3065, %v3064
        %v3071 = vpack.c.b16 %v3067, %v3066
        %v3077 = vsel %vm2763, %v3042, 0
        %3079 = vmatprep.subr.bf16.mxu0 0
        %3080 = vmatpush1.bf16.msra.mxu0 %v3068
        %3081 = vmatprep.subr.bf16.mxu0 0
        %3082 = vmatpush1.bf16.msra.mxu0 %v3069
        %3083 = vmatprep.subr.bf16.mxu0 0
        %3084 = vmatpush1.bf16.msra.mxu0 %v3070
        %3085 = vmatprep.subr.bf16.mxu0 0
        %3086 = vmatpush1.bf16.msra.mxu0 %v3071
        %3087 = vmatprep.subr.bf16.mxu0 0
        %3088 = vmatpush1.bf16.msra.mxu0 0
        %3089 = vmatprep.subr.bf16.mxu0 0
        %3090 = vmatpush1.bf16.msra.mxu0 0
        %3091 = vmatprep.subr.bf16.mxu0 0
        %3092 = vmatpush1.bf16.msra.mxu0 0
        %3093 = vmatprep.subr.bf16.mxu0 0
        %3094 = vmatpush1.bf16.msra.mxu0 0
        %3095 = vmatprep.subr.bf16.mxu0 0
        %3096 = vmatpush1.bf16.msra.mxu0 0
        %3097 = vmatprep.subr.bf16.mxu0 0
        %3098 = vmatpush1.bf16.msra.mxu0 0
        %3099 = vmatprep.subr.bf16.mxu0 0
        %3100 = vmatpush1.bf16.msra.mxu0 0
        %3101 = vmatprep.subr.bf16.mxu0 0
        %3102 = vmatpush1.bf16.msra.mxu0 0
        %3103 = vmatprep.subr.bf16.mxu0 0
        %3104 = vmatpush1.bf16.msra.mxu0 0
        %3105 = vmatprep.subr.bf16.mxu0 0
        %3106 = vmatpush1.bf16.msra.mxu0 0
        %3107 = vmatprep.subr.bf16.mxu0 0
        %3108 = vmatpush1.bf16.msra.mxu0 0
        %3109 = vmatprep.subr.bf16.mxu0 0
        %3110 = vmatpush1.bf16.msra.mxu0 0
        %3111 = vmatprep.mubr.bf16.mxu0 0
        %3112 = vmatmul.mubr.bf16.gmra.mrb[0].mxu0 %v3077
        %v3113 = vpop.f32.mrb[0].mxu0
        %v3114 = vadd.f32 0.0, %v3113
        %v3115 = vpop.f32.mrb[0].mxu0
        %v3116 = vpop.f32.mrb[0].mxu0
        %v3117 = vpop.f32.mrb[0].mxu0
        %3118 = vdwg.mxu0
        %v3119 = vadd.f32 %v2996, %v3114
        %s3120 = scalar_lea.vmem %s6, 8
        %v3121 = vld [vmem:[%s3120] sm:$0x3]
        %v3123 = vsel %vm2631, %v3121, 0
        %3125 = vmatprep.subr.bf16.mxu0 0
        %3126 = vmatpush1.bf16.msra.mxu0 %v2629
        %3127 = vmatprep.subr.bf16.mxu0 0
        %3128 = vmatpush1.bf16.msra.mxu0 0
        %3129 = vmatprep.subr.bf16.mxu0 0
        %3130 = vmatpush1.bf16.msra.mxu0 0
        %3131 = vmatprep.subr.bf16.mxu0 0
        %3132 = vmatpush1.bf16.msra.mxu0 0
        %3133 = vmatprep.subr.bf16.mxu0 0
        %3134 = vmatpush1.bf16.msra.mxu0 0
        %3135 = vmatprep.subr.bf16.mxu0 0
        %3136 = vmatpush1.bf16.msra.mxu0 0
        %3137 = vmatprep.subr.bf16.mxu0 0
        %3138 = vmatpush1.bf16.msra.mxu0 0
        %3139 = vmatprep.subr.bf16.mxu0 0
        %3140 = vmatpush1.bf16.msra.mxu0 0
        %3141 = vmatprep.subr.bf16.mxu0 0
        %3142 = vmatpush1.bf16.msra.mxu0 0
        %3143 = vmatprep.subr.bf16.mxu0 0
        %3144 = vmatpush1.bf16.msra.mxu0 0
        %3145 = vmatprep.subr.bf16.mxu0 0
        %3146 = vmatpush1.bf16.msra.mxu0 0
        %3147 = vmatprep.subr.bf16.mxu0 0
        %3148 = vmatpush1.bf16.msra.mxu0 0
        %3149 = vmatprep.subr.bf16.mxu0 0
        %3150 = vmatpush1.bf16.msra.mxu0 0
        %3151 = vmatprep.subr.bf16.mxu0 0
        %3152 = vmatpush1.bf16.msra.mxu0 0
        %3153 = vmatprep.subr.bf16.mxu0 0
        %3154 = vmatpush1.bf16.msra.mxu0 0
        %3155 = vmatprep.subr.bf16.mxu0 0
        %3156 = vmatpush1.bf16.msra.mxu0 0
        %3157 = vmatprep.mubr.bf16.mxu0 0
        %3158 = vmatmul.mubr.bf16.gmra.mrb[0].mxu0 %v3123
        %v3159 = vpop.f32.mrb[0].mxu0
        %v3160 = vadd.f32 0.0, %v3159
        %v3161 = vpop.f32.mrb[0].mxu0
        %v3162 = vpop.f32.mrb[0].mxu0
        %v3163 = vpop.f32.mrb[0].mxu0
        %3164 = vdwg.mxu0
        %v3165 = vpack.c.bf16 %v3160, %v3160
        %s3166 = scalar_lea.vmem %s7, 128
        %v3167 = vld [vmem:[%s3166] sm:$0xf]
        %v3168 = vld [vmem:[%s3166 + $0x4] sm:$0xf]
        %v3169 = vld [vmem:[%s3166 + $0x8] sm:$0xf]
        %v3170 = vld [vmem:[%s3166 + $0xc] sm:$0xf]
        %v3171 = vld [vmem:[%s3166 + $0x10] sm:$0xf]
        %v3172 = vld [vmem:[%s3166 + $0x14] sm:$0xf]
        %v3173 = vld [vmem:[%s3166 + $0x18] sm:$0xf]
        %v3174 = vld [vmem:[%s3166 + $0x1c] sm:$0xf]
        %v3183 = vunpack.c.l.b16 %v3167
        %v3184 = vunpack.c.l.b16 %v3168
        %v3185 = vunpack.c.l.b16 %v3169
        %v3186 = vunpack.c.l.b16 %v3170
        %v3187 = vunpack.c.l.b16 %v3171
        %v3188 = vunpack.c.l.b16 %v3172
        %v3189 = vunpack.c.l.b16 %v3173
        %v3190 = vunpack.c.l.b16 %v3174
        %v3191 = vpack.c.b16 %v3184, %v3183
        %v3192 = vpack.c.b16 %v3186, %v3185
        %v3193 = vpack.c.b16 %v3188, %v3187
        %v3194 = vpack.c.b16 %v3190, %v3189
        %v3200 = vsel %vm2763, %v3165, 0
        %3202 = vmatprep.subr.bf16.mxu0 0
        %3203 = vmatpush1.bf16.msra.mxu0 %v3191
        %3204 = vmatprep.subr.bf16.mxu0 0
        %3205 = vmatpush1.bf16.msra.mxu0 %v3192
        %3206 = vmatprep.subr.bf16.mxu0 0
        %3207 = vmatpush1.bf16.msra.mxu0 %v3193
        %3208 = vmatprep.subr.bf16.mxu0 0
        %3209 = vmatpush1.bf16.msra.mxu0 %v3194
        %3210 = vmatprep.subr.bf16.mxu0 0
        %3211 = vmatpush1.bf16.msra.mxu0 0
        %3212 = vmatprep.subr.bf16.mxu0 0
        %3213 = vmatpush1.bf16.msra.mxu0 0
        %3214 = vmatprep.subr.bf16.mxu0 0
        %3215 = vmatpush1.bf16.msra.mxu0 0
        %3216 = vmatprep.subr.bf16.mxu0 0
        %3217 = vmatpush1.bf16.msra.mxu0 0
        %3218 = vmatprep.subr.bf16.mxu0 0
        %3219 = vmatpush1.bf16.msra.mxu0 0
        %3220 = vmatprep.subr.bf16.mxu0 0
        %3221 = vmatpush1.bf16.msra.mxu0 0
        %3222 = vmatprep.subr.bf16.mxu0 0
        %3223 = vmatpush1.bf16.msra.mxu0 0
        %3224 = vmatprep.subr.bf16.mxu0 0
        %3225 = vmatpush1.bf16.msra.mxu0 0
        %3226 = vmatprep.subr.bf16.mxu0 0
        %3227 = vmatpush1.bf16.msra.mxu0 0
        %3228 = vmatprep.subr.bf16.mxu0 0
        %3229 = vmatpush1.bf16.msra.mxu0 0
        %3230 = vmatprep.subr.bf16.mxu0 0
        %3231 = vmatpush1.bf16.msra.mxu0 0
        %3232 = vmatprep.subr.bf16.mxu0 0
        %3233 = vmatpush1.bf16.msra.mxu0 0
        %3234 = vmatprep.mubr.bf16.mxu0 0
        %3235 = vmatmul.mubr.bf16.gmra.mrb[0].mxu0 %v3200
        %v3236 = vpop.f32.mrb[0].mxu0
        %v3237 = vadd.f32 0.0, %v3236
        %v3238 = vpop.f32.mrb[0].mxu0
        %v3239 = vpop.f32.mrb[0].mxu0
        %v3240 = vpop.f32.mrb[0].mxu0
        %3241 = vdwg.mxu0
        %v3242 = vadd.f32 %v3119, %v3237
        %s3243 = scalar_lea.vmem %s6, 10
        %v3244 = vld [vmem:[%s3243] sm:$0x3]
        %v3246 = vsel %vm2631, %v3244, 0
        %3248 = vmatprep.subr.bf16.mxu0 0
        %3249 = vmatpush1.bf16.msra.mxu0 %v2629
        %3250 = vmatprep.subr.bf16.mxu0 0
        %3251 = vmatpush1.bf16.msra.mxu0 0
        %3252 = vmatprep.subr.bf16.mxu0 0
        %3253 = vmatpush1.bf16.msra.mxu0 0
        %3254 = vmatprep.subr.bf16.mxu0 0
        %3255 = vmatpush1.bf16.msra.mxu0 0
        %3256 = vmatprep.subr.bf16.mxu0 0
        %3257 = vmatpush1.bf16.msra.mxu0 0
        %3258 = vmatprep.subr.bf16.mxu0 0
        %3259 = vmatpush1.bf16.msra.mxu0 0
        %3260 = vmatprep.subr.bf16.mxu0 0
        %3261 = vmatpush1.bf16.msra.mxu0 0
        %3262 = vmatprep.subr.bf16.mxu0 0
        %3263 = vmatpush1.bf16.msra.mxu0 0
        %3264 = vmatprep.subr.bf16.mxu0 0
        %3265 = vmatpush1.bf16.msra.mxu0 0
        %3266 = vmatprep.subr.bf16.mxu0 0
        %3267 = vmatpush1.bf16.msra.mxu0 0
        %3268 = vmatprep.subr.bf16.mxu0 0
        %3269 = vmatpush1.bf16.msra.mxu0 0
        %3270 = vmatprep.subr.bf16.mxu0 0
        %3271 = vmatpush1.bf16.msra.mxu0 0
        %3272 = vmatprep.subr.bf16.mxu0 0
        %3273 = vmatpush1.bf16.msra.mxu0 0
        %3274 = vmatprep.subr.bf16.mxu0 0
        %3275 = vmatpush1.bf16.msra.mxu0 0
        %3276 = vmatprep.subr.bf16.mxu0 0
        %3277 = vmatpush1.bf16.msra.mxu0 0
        %3278 = vmatprep.subr.bf16.mxu0 0
        %3279 = vmatpush1.bf16.msra.mxu0 0
        %3280 = vmatprep.mubr.bf16.mxu0 0
        %3281 = vmatmul.mubr.bf16.gmra.mrb[0].mxu0 %v3246
        %v3282 = vpop.f32.mrb[0].mxu0
        %v3283 = vadd.f32 0.0, %v3282
        %v3284 = vpop.f32.mrb[0].mxu0
        %v3285 = vpop.f32.mrb[0].mxu0
        %v3286 = vpop.f32.mrb[0].mxu0
        %3287 = vdwg.mxu0
        %v3288 = vpack.c.bf16 %v3283, %v3283
        %s3289 = scalar_lea.vmem %s7, 160
        %v3290 = vld [vmem:[%s3289] sm:$0xf]
        %v3291 = vld [vmem:[%s3289 + $0x4] sm:$0xf]
        %v3292 = vld [vmem:[%s3289 + $0x8] sm:$0xf]
        %v3293 = vld [vmem:[%s3289 + $0xc] sm:$0xf]
        %v3294 = vld [vmem:[%s3289 + $0x10] sm:$0xf]
        %v3295 = vld [vmem:[%s3289 + $0x14] sm:$0xf]
        %v3296 = vld [vmem:[%s3289 + $0x18] sm:$0xf]
        %v3297 = vld [vmem:[%s3289 + $0x1c] sm:$0xf]
        %v3306 = vunpack.c.l.b16 %v3290
        %v3307 = vunpack.c.l.b16 %v3291
        %v3308 = vunpack.c.l.b16 %v3292
        %v3309 = vunpack.c.l.b16 %v3293
        %v3310 = vunpack.c.l.b16 %v3294
        %v3311 = vunpack.c.l.b16 %v3295
        %v3312 = vunpack.c.l.b16 %v3296
        %v3313 = vunpack.c.l.b16 %v3297
        %v3314 = vpack.c.b16 %v3307, %v3306
        %v3315 = vpack.c.b16 %v3309, %v3308
        %v3316 = vpack.c.b16 %v3311, %v3310
        %v3317 = vpack.c.b16 %v3313, %v3312
        %v3323 = vsel %vm2763, %v3288, 0
        %3325 = vmatprep.subr.bf16.mxu0 0
        %3326 = vmatpush1.bf16.msra.mxu0 %v3314
        %3327 = vmatprep.subr.bf16.mxu0 0
        %3328 = vmatpush1.bf16.msra.mxu0 %v3315
        %3329 = vmatprep.subr.bf16.mxu0 0
        %3330 = vmatpush1.bf16.msra.mxu0 %v3316
        %3331 = vmatprep.subr.bf16.mxu0 0
        %3332 = vmatpush1.bf16.msra.mxu0 %v3317
        %3333 = vmatprep.subr.bf16.mxu0 0
        %3334 = vmatpush1.bf16.msra.mxu0 0
        %3335 = vmatprep.subr.bf16.mxu0 0
        %3336 = vmatpush1.bf16.msra.mxu0 0
        %3337 = vmatprep.subr.bf16.mxu0 0
        %3338 = vmatpush1.bf16.msra.mxu0 0
        %3339 = vmatprep.subr.bf16.mxu0 0
        %3340 = vmatpush1.bf16.msra.mxu0 0
        %3341 = vmatprep.subr.bf16.mxu0 0
        %3342 = vmatpush1.bf16.msra.mxu0 0
        %3343 = vmatprep.subr.bf16.mxu0 0
        %3344 = vmatpush1.bf16.msra.mxu0 0
        %3345 = vmatprep.subr.bf16.mxu0 0
        %3346 = vmatpush1.bf16.msra.mxu0 0
        %3347 = vmatprep.subr.bf16.mxu0 0
        %3348 = vmatpush1.bf16.msra.mxu0 0
        %3349 = vmatprep.subr.bf16.mxu0 0
        %3350 = vmatpush1.bf16.msra.mxu0 0
        %3351 = vmatprep.subr.bf16.mxu0 0
        %3352 = vmatpush1.bf16.msra.mxu0 0
        %3353 = vmatprep.subr.bf16.mxu0 0
        %3354 = vmatpush1.bf16.msra.mxu0 0
        %3355 = vmatprep.subr.bf16.mxu0 0
        %3356 = vmatpush1.bf16.msra.mxu0 0
        %3357 = vmatprep.mubr.bf16.mxu0 0
        %3358 = vmatmul.mubr.bf16.gmra.mrb[0].mxu0 %v3323
        %v3359 = vpop.f32.mrb[0].mxu0
        %v3360 = vadd.f32 0.0, %v3359
        %v3361 = vpop.f32.mrb[0].mxu0
        %v3362 = vpop.f32.mrb[0].mxu0
        %v3363 = vpop.f32.mrb[0].mxu0
        %3364 = vdwg.mxu0
        %v3365 = vadd.f32 %v3242, %v3360
        %s3366 = scalar_lea.vmem %s6, 12
        %v3367 = vld [vmem:[%s3366] sm:$0x3]
        %v3369 = vsel %vm2631, %v3367, 0
        %3371 = vmatprep.subr.bf16.mxu0 0
        %3372 = vmatpush1.bf16.msra.mxu0 %v2629
        %3373 = vmatprep.subr.bf16.mxu0 0
        %3374 = vmatpush1.bf16.msra.mxu0 0
        %3375 = vmatprep.subr.bf16.mxu0 0
        %3376 = vmatpush1.bf16.msra.mxu0 0
        %3377 = vmatprep.subr.bf16.mxu0 0
        %3378 = vmatpush1.bf16.msra.mxu0 0
        %3379 = vmatprep.subr.bf16.mxu0 0
        %3380 = vmatpush1.bf16.msra.mxu0 0
        %3381 = vmatprep.subr.bf16.mxu0 0
        %3382 = vmatpush1.bf16.msra.mxu0 0
        %3383 = vmatprep.subr.bf16.mxu0 0
        %3384 = vmatpush1.bf16.msra.mxu0 0
        %3385 = vmatprep.subr.bf16.mxu0 0
        %3386 = vmatpush1.bf16.msra.mxu0 0
        %3387 = vmatprep.subr.bf16.mxu0 0
        %3388 = vmatpush1.bf16.msra.mxu0 0
        %3389 = vmatprep.subr.bf16.mxu0 0
        %3390 = vmatpush1.bf16.msra.mxu0 0
        %3391 = vmatprep.subr.bf16.mxu0 0
        %3392 = vmatpush1.bf16.msra.mxu0 0
        %3393 = vmatprep.subr.bf16.mxu0 0
        %3394 = vmatpush1.bf16.msra.mxu0 0
        %3395 = vmatprep.subr.bf16.mxu0 0
        %3396 = vmatpush1.bf16.msra.mxu0 0
        %3397 = vmatprep.subr.bf16.mxu0 0
        %3398 = vmatpush1.bf16.msra.mxu0 0
        %3399 = vmatprep.subr.bf16.mxu0 0
        %3400 = vmatpush1.bf16.msra.mxu0 0
        %3401 = vmatprep.subr.bf16.mxu0 0
        %3402 = vmatpush1.bf16.msra.mxu0 0
        %3403 = vmatprep.mubr.bf16.mxu0 0
        %3404 = vmatmul.mubr.bf16.gmra.mrb[0].mxu0 %v3369
        %v3405 = vpop.f32.mrb[0].mxu0
        %v3406 = vadd.f32 0.0, %v3405
        %v3407 = vpop.f32.mrb[0].mxu0
        %v3408 = vpop.f32.mrb[0].mxu0
        %v3409 = vpop.f32.mrb[0].mxu0
        %3410 = vdwg.mxu0
        %v3411 = vpack.c.bf16 %v3406, %v3406
        %s3412 = scalar_lea.vmem %s7, 192
        %v3413 = vld [vmem:[%s3412] sm:$0xf]
        %v3414 = vld [vmem:[%s3412 + $0x4] sm:$0xf]
        %v3415 = vld [vmem:[%s3412 + $0x8] sm:$0xf]
        %v3416 = vld [vmem:[%s3412 + $0xc] sm:$0xf]
        %v3417 = vld [vmem:[%s3412 + $0x10] sm:$0xf]
        %v3418 = vld [vmem:[%s3412 + $0x14] sm:$0xf]
        %v3419 = vld [vmem:[%s3412 + $0x18] sm:$0xf]
        %v3420 = vld [vmem:[%s3412 + $0x1c] sm:$0xf]
        %v3429 = vunpack.c.l.b16 %v3413
        %v3430 = vunpack.c.l.b16 %v3414
        %v3431 = vunpack.c.l.b16 %v3415
        %v3432 = vunpack.c.l.b16 %v3416
        %v3433 = vunpack.c.l.b16 %v3417
        %v3434 = vunpack.c.l.b16 %v3418
        %v3435 = vunpack.c.l.b16 %v3419
        %v3436 = vunpack.c.l.b16 %v3420
        %v3437 = vpack.c.b16 %v3430, %v3429
        %v3438 = vpack.c.b16 %v3432, %v3431
        %v3439 = vpack.c.b16 %v3434, %v3433
        %v3440 = vpack.c.b16 %v3436, %v3435
        %v3446 = vsel %vm2763, %v3411, 0
        %3448 = vmatprep.subr.bf16.mxu0 0
        %3449 = vmatpush1.bf16.msra.mxu0 %v3437
        %3450 = vmatprep.subr.bf16.mxu0 0
        %3451 = vmatpush1.bf16.msra.mxu0 %v3438
        %3452 = vmatprep.subr.bf16.mxu0 0
        %3453 = vmatpush1.bf16.msra.mxu0 %v3439
        %3454 = vmatprep.subr.bf16.mxu0 0
        %3455 = vmatpush1.bf16.msra.mxu0 %v3440
        %3456 = vmatprep.subr.bf16.mxu0 0
        %3457 = vmatpush1.bf16.msra.mxu0 0
        %3458 = vmatprep.subr.bf16.mxu0 0
        %3459 = vmatpush1.bf16.msra.mxu0 0
        %3460 = vmatprep.subr.bf16.mxu0 0
        %3461 = vmatpush1.bf16.msra.mxu0 0
        %3462 = vmatprep.subr.bf16.mxu0 0
        %3463 = vmatpush1.bf16.msra.mxu0 0
        %3464 = vmatprep.subr.bf16.mxu0 0
        %3465 = vmatpush1.bf16.msra.mxu0 0
        %3466 = vmatprep.subr.bf16.mxu0 0
        %3467 = vmatpush1.bf16.msra.mxu0 0
        %3468 = vmatprep.subr.bf16.mxu0 0
        %3469 = vmatpush1.bf16.msra.mxu0 0
        %3470 = vmatprep.subr.bf16.mxu0 0
        %3471 = vmatpush1.bf16.msra.mxu0 0
        %3472 = vmatprep.subr.bf16.mxu0 0
        %3473 = vmatpush1.bf16.msra.mxu0 0
        %3474 = vmatprep.subr.bf16.mxu0 0
        %3475 = vmatpush1.bf16.msra.mxu0 0
        %3476 = vmatprep.subr.bf16.mxu0 0
        %3477 = vmatpush1.bf16.msra.mxu0 0
        %3478 = vmatprep.subr.bf16.mxu0 0
        %3479 = vmatpush1.bf16.msra.mxu0 0
        %3480 = vmatprep.mubr.bf16.mxu0 0
        %3481 = vmatmul.mubr.bf16.gmra.mrb[0].mxu0 %v3446
        %v3482 = vpop.f32.mrb[0].mxu0
        %v3483 = vadd.f32 0.0, %v3482
        %v3484 = vpop.f32.mrb[0].mxu0
        %v3485 = vpop.f32.mrb[0].mxu0
        %v3486 = vpop.f32.mrb[0].mxu0
        %3487 = vdwg.mxu0
        %v3488 = vadd.f32 %v3365, %v3483
        %s3489 = scalar_lea.vmem %s6, 14
        %v3490 = vld [vmem:[%s3489] sm:$0x3]
        %v3492 = vsel %vm2631, %v3490, 0
        %3494 = vmatprep.subr.bf16.mxu0 0
        %3495 = vmatpush1.bf16.msra.mxu0 %v2629
        %3496 = vmatprep.subr.bf16.mxu0 0
        %3497 = vmatpush1.bf16.msra.mxu0 0
        %3498 = vmatprep.subr.bf16.mxu0 0
        %3499 = vmatpush1.bf16.msra.mxu0 0
        %3500 = vmatprep.subr.bf16.mxu0 0
        %3501 = vmatpush1.bf16.msra.mxu0 0
        %3502 = vmatprep.subr.bf16.mxu0 0
        %3503 = vmatpush1.bf16.msra.mxu0 0
        %3504 = vmatprep.subr.bf16.mxu0 0
        %3505 = vmatpush1.bf16.msra.mxu0 0
        %3506 = vmatprep.subr.bf16.mxu0 0
        %3507 = vmatpush1.bf16.msra.mxu0 0
        %3508 = vmatprep.subr.bf16.mxu0 0
        %3509 = vmatpush1.bf16.msra.mxu0 0
        %3510 = vmatprep.subr.bf16.mxu0 0
        %3511 = vmatpush1.bf16.msra.mxu0 0
        %3512 = vmatprep.subr.bf16.mxu0 0
        %3513 = vmatpush1.bf16.msra.mxu0 0
        %3514 = vmatprep.subr.bf16.mxu0 0
        %3515 = vmatpush1.bf16.msra.mxu0 0
        %3516 = vmatprep.subr.bf16.mxu0 0
        %3517 = vmatpush1.bf16.msra.mxu0 0
        %3518 = vmatprep.subr.bf16.mxu0 0
        %3519 = vmatpush1.bf16.msra.mxu0 0
        %3520 = vmatprep.subr.bf16.mxu0 0
        %3521 = vmatpush1.bf16.msra.mxu0 0
        %3522 = vmatprep.subr.bf16.mxu0 0
        %3523 = vmatpush1.bf16.msra.mxu0 0
        %3524 = vmatprep.subr.bf16.mxu0 0
        %3525 = vmatpush1.bf16.msra.mxu0 0
        %3526 = vmatprep.mubr.bf16.mxu0 0
        %3527 = vmatmul.mubr.bf16.gmra.mrb[0].mxu0 %v3492
        %v3528 = vpop.f32.mrb[0].mxu0
        %v3529 = vadd.f32 0.0, %v3528
        %v3530 = vpop.f32.mrb[0].mxu0
        %v3531 = vpop.f32.mrb[0].mxu0
        %v3532 = vpop.f32.mrb[0].mxu0
        %3533 = vdwg.mxu0
        %v3534 = vpack.c.bf16 %v3529, %v3529
        %s3535 = scalar_lea.vmem %s7, 224
        %v3536 = vld [vmem:[%s3535] sm:$0xf]
        %v3537 = vld [vmem:[%s3535 + $0x4] sm:$0xf]
        %v3538 = vld [vmem:[%s3535 + $0x8] sm:$0xf]
        %v3539 = vld [vmem:[%s3535 + $0xc] sm:$0xf]
        %v3540 = vld [vmem:[%s3535 + $0x10] sm:$0xf]
        %v3541 = vld [vmem:[%s3535 + $0x14] sm:$0xf]
        %v3542 = vld [vmem:[%s3535 + $0x18] sm:$0xf]
        %v3543 = vld [vmem:[%s3535 + $0x1c] sm:$0xf]
        %v3552 = vunpack.c.l.b16 %v3536
        %v3553 = vunpack.c.l.b16 %v3537
        %v3554 = vunpack.c.l.b16 %v3538
        %v3555 = vunpack.c.l.b16 %v3539
        %v3556 = vunpack.c.l.b16 %v3540
        %v3557 = vunpack.c.l.b16 %v3541
        %v3558 = vunpack.c.l.b16 %v3542
        %v3559 = vunpack.c.l.b16 %v3543
        %v3560 = vpack.c.b16 %v3553, %v3552
        %v3561 = vpack.c.b16 %v3555, %v3554
        %v3562 = vpack.c.b16 %v3557, %v3556
        %v3563 = vpack.c.b16 %v3559, %v3558
        %v3569 = vsel %vm2763, %v3534, 0
        %3571 = vmatprep.subr.bf16.mxu0 0
        %3572 = vmatpush1.bf16.msra.mxu0 %v3560
        %3573 = vmatprep.subr.bf16.mxu0 0
        %3574 = vmatpush1.bf16.msra.mxu0 %v3561
        %3575 = vmatprep.subr.bf16.mxu0 0
        %3576 = vmatpush1.bf16.msra.mxu0 %v3562
        %3577 = vmatprep.subr.bf16.mxu0 0
        %3578 = vmatpush1.bf16.msra.mxu0 %v3563
        %3579 = vmatprep.subr.bf16.mxu0 0
        %3580 = vmatpush1.bf16.msra.mxu0 0
        %3581 = vmatprep.subr.bf16.mxu0 0
        %3582 = vmatpush1.bf16.msra.mxu0 0
        %3583 = vmatprep.subr.bf16.mxu0 0
        %3584 = vmatpush1.bf16.msra.mxu0 0
        %3585 = vmatprep.subr.bf16.mxu0 0
        %3586 = vmatpush1.bf16.msra.mxu0 0
        %3587 = vmatprep.subr.bf16.mxu0 0
        %3588 = vmatpush1.bf16.msra.mxu0 0
        %3589 = vmatprep.subr.bf16.mxu0 0
        %3590 = vmatpush1.bf16.msra.mxu0 0
        %3591 = vmatprep.subr.bf16.mxu0 0
        %3592 = vmatpush1.bf16.msra.mxu0 0
        %3593 = vmatprep.subr.bf16.mxu0 0
        %3594 = vmatpush1.bf16.msra.mxu0 0
        %3595 = vmatprep.subr.bf16.mxu0 0
        %3596 = vmatpush1.bf16.msra.mxu0 0
        %3597 = vmatprep.subr.bf16.mxu0 0
        %3598 = vmatpush1.bf16.msra.mxu0 0
        %3599 = vmatprep.subr.bf16.mxu0 0
        %3600 = vmatpush1.bf16.msra.mxu0 0
        %3601 = vmatprep.subr.bf16.mxu0 0
        %3602 = vmatpush1.bf16.msra.mxu0 0
        %3603 = vmatprep.mubr.bf16.mxu0 0
        %3604 = vmatmul.mubr.bf16.gmra.mrb[0].mxu0 %v3569
        %v3605 = vpop.f32.mrb[0].mxu0
        %v3606 = vadd.f32 0.0, %v3605
        %v3607 = vpop.f32.mrb[0].mxu0
        %v3608 = vpop.f32.mrb[0].mxu0
        %v3609 = vpop.f32.mrb[0].mxu0
        %3610 = vdwg.mxu0
        %v3611 = vadd.f32 %v3488, %v3606
        %s3612 = scalar_lea.vmem %s6, 16
        %v3613 = vld [vmem:[%s3612] sm:$0x3]
        %v3615 = vsel %vm2631, %v3613, 0
        %3617 = vmatprep.subr.bf16.mxu0 0
        %3618 = vmatpush1.bf16.msra.mxu0 %v2629
        %3619 = vmatprep.subr.bf16.mxu0 0
        %3620 = vmatpush1.bf16.msra.mxu0 0
        %3621 = vmatprep.subr.bf16.mxu0 0
        %3622 = vmatpush1.bf16.msra.mxu0 0
        %3623 = vmatprep.subr.bf16.mxu0 0
        %3624 = vmatpush1.bf16.msra.mxu0 0
        %3625 = vmatprep.subr.bf16.mxu0 0
        %3626 = vmatpush1.bf16.msra.mxu0 0
        %3627 = vmatprep.subr.bf16.mxu0 0
        %3628 = vmatpush1.bf16.msra.mxu0 0
        %3629 = vmatprep.subr.bf16.mxu0 0
        %3630 = vmatpush1.bf16.msra.mxu0 0
        %3631 = vmatprep.subr.bf16.mxu0 0
        %3632 = vmatpush1.bf16.msra.mxu0 0
        %3633 = vmatprep.subr.bf16.mxu0 0
        %3634 = vmatpush1.bf16.msra.mxu0 0
        %3635 = vmatprep.subr.bf16.mxu0 0
        %3636 = vmatpush1.bf16.msra.mxu0 0
        %3637 = vmatprep.subr.bf16.mxu0 0
        %3638 = vmatpush1.bf16.msra.mxu0 0
        %3639 = vmatprep.subr.bf16.mxu0 0
        %3640 = vmatpush1.bf16.msra.mxu0 0
        %3641 = vmatprep.subr.bf16.mxu0 0
        %3642 = vmatpush1.bf16.msra.mxu0 0
        %3643 = vmatprep.subr.bf16.mxu0 0
        %3644 = vmatpush1.bf16.msra.mxu0 0
        %3645 = vmatprep.subr.bf16.mxu0 0
        %3646 = vmatpush1.bf16.msra.mxu0 0
        %3647 = vmatprep.subr.bf16.mxu0 0
        %3648 = vmatpush1.bf16.msra.mxu0 0
        %3649 = vmatprep.mubr.bf16.mxu0 0
        %3650 = vmatmul.mubr.bf16.gmra.mrb[0].mxu0 %v3615
        %v3651 = vpop.f32.mrb[0].mxu0
        %v3652 = vadd.f32 0.0, %v3651
        %v3653 = vpop.f32.mrb[0].mxu0
        %v3654 = vpop.f32.mrb[0].mxu0
        %v3655 = vpop.f32.mrb[0].mxu0
        %3656 = vdwg.mxu0
        %v3657 = vpack.c.bf16 %v3652, %v3652
        %s3658 = scalar_lea.vmem %s7, 256
        %v3659 = vld [vmem:[%s3658] sm:$0xf]
        %v3660 = vld [vmem:[%s3658 + $0x4] sm:$0xf]
        %v3661 = vld [vmem:[%s3658 + $0x8] sm:$0xf]
        %v3662 = vld [vmem:[%s3658 + $0xc] sm:$0xf]
        %v3663 = vld [vmem:[%s3658 + $0x10] sm:$0xf]
        %v3664 = vld [vmem:[%s3658 + $0x14] sm:$0xf]
        %v3665 = vld [vmem:[%s3658 + $0x18] sm:$0xf]
        %v3666 = vld [vmem:[%s3658 + $0x1c] sm:$0xf]
        %v3675 = vunpack.c.l.b16 %v3659
        %v3676 = vunpack.c.l.b16 %v3660
        %v3677 = vunpack.c.l.b16 %v3661
        %v3678 = vunpack.c.l.b16 %v3662
        %v3679 = vunpack.c.l.b16 %v3663
        %v3680 = vunpack.c.l.b16 %v3664
        %v3681 = vunpack.c.l.b16 %v3665
        %v3682 = vunpack.c.l.b16 %v3666
        %v3683 = vpack.c.b16 %v3676, %v3675
        %v3684 = vpack.c.b16 %v3678, %v3677
        %v3685 = vpack.c.b16 %v3680, %v3679
        %v3686 = vpack.c.b16 %v3682, %v3681
        %v3692 = vsel %vm2763, %v3657, 0
        %3694 = vmatprep.subr.bf16.mxu0 0
        %3695 = vmatpush1.bf16.msra.mxu0 %v3683
        %3696 = vmatprep.subr.bf16.mxu0 0
        %3697 = vmatpush1.bf16.msra.mxu0 %v3684
        %3698 = vmatprep.subr.bf16.mxu0 0
        %3699 = vmatpush1.bf16.msra.mxu0 %v3685
        %3700 = vmatprep.subr.bf16.mxu0 0
        %3701 = vmatpush1.bf16.msra.mxu0 %v3686
        %3702 = vmatprep.subr.bf16.mxu0 0
        %3703 = vmatpush1.bf16.msra.mxu0 0
        %3704 = vmatprep.subr.bf16.mxu0 0
        %3705 = vmatpush1.bf16.msra.mxu0 0
        %3706 = vmatprep.subr.bf16.mxu0 0
        %3707 = vmatpush1.bf16.msra.mxu0 0
        %3708 = vmatprep.subr.bf16.mxu0 0
        %3709 = vmatpush1.bf16.msra.mxu0 0
        %3710 = vmatprep.subr.bf16.mxu0 0
        %3711 = vmatpush1.bf16.msra.mxu0 0
        %3712 = vmatprep.subr.bf16.mxu0 0
        %3713 = vmatpush1.bf16.msra.mxu0 0
        %3714 = vmatprep.subr.bf16.mxu0 0
        %3715 = vmatpush1.bf16.msra.mxu0 0
        %3716 = vmatprep.subr.bf16.mxu0 0
        %3717 = vmatpush1.bf16.msra.mxu0 0
        %3718 = vmatprep.subr.bf16.mxu0 0
        %3719 = vmatpush1.bf16.msra.mxu0 0
        %3720 = vmatprep.subr.bf16.mxu0 0
        %3721 = vmatpush1.bf16.msra.mxu0 0
        %3722 = vmatprep.subr.bf16.mxu0 0
        %3723 = vmatpush1.bf16.msra.mxu0 0
        %3724 = vmatprep.subr.bf16.mxu0 0
        %3725 = vmatpush1.bf16.msra.mxu0 0
        %3726 = vmatprep.mubr.bf16.mxu0 0
        %3727 = vmatmul.mubr.bf16.gmra.mrb[0].mxu0 %v3692
        %v3728 = vpop.f32.mrb[0].mxu0
        %v3729 = vadd.f32 0.0, %v3728
        %v3730 = vpop.f32.mrb[0].mxu0
        %v3731 = vpop.f32.mrb[0].mxu0
        %v3732 = vpop.f32.mrb[0].mxu0
        %3733 = vdwg.mxu0
        %v3734 = vadd.f32 %v3611, %v3729
        %v3735 = vld [vmem:[%s8] sm:$0x1]
        %v3737 = vlaneseq
        %v3738 = vshrl.u32 %v3737, 7
        %v3739 = vsub.s32 0, %v3738
        %v3740 = vrot.slane %v3735, %v3739
        %v3742 = vadd.f32 %v3734, %v3740
        %v3743 = vmax.f32 %v3742, 0.0
        %v3744 = vpack.c.bf16 %v3743, %v3743
        %v3745 = vld [vmem:[%s9] sm:$0xff]
        %v3746 = vld [vmem:[%s9 + $0x8] sm:$0xff]
        %v3747 = vld [vmem:[%s9 + $0x10] sm:$0xff]
        %v3748 = vld [vmem:[%s9 + $0x18] sm:$0xff]
        %v3749 = vld [vmem:[%s9 + $0x20] sm:$0xff]
        %v3750 = vld [vmem:[%s9 + $0x28] sm:$0xff]
        %v3751 = vld [vmem:[%s9 + $0x30] sm:$0xff]
        %v3752 = vld [vmem:[%s9 + $0x38] sm:$0xff]
        %v3753 = vld [vmem:[%s9 + $0x40] sm:$0xff]
        %v3754 = vld [vmem:[%s9 + $0x48] sm:$0xff]
        %v3755 = vld [vmem:[%s9 + $0x50] sm:$0xff]
        %v3756 = vld [vmem:[%s9 + $0x58] sm:$0xff]
        %v3757 = vld [vmem:[%s9 + $0x60] sm:$0xff]
        %v3758 = vld [vmem:[%s9 + $0x68] sm:$0xff]
        %v3759 = vld [vmem:[%s9 + $0x70] sm:$0xff]
        %v3760 = vld [vmem:[%s9 + $0x78] sm:$0xff]
        %s3761 = scalar_lea.vmem %s9, 128
        %v3762 = vld [vmem:[%s3761] sm:$0xff]
        %v3763 = vld [vmem:[%s3761 + $0x8] sm:$0xff]
        %v3764 = vld [vmem:[%s3761 + $0x10] sm:$0xff]
        %v3765 = vld [vmem:[%s3761 + $0x18] sm:$0xff]
        %v3766 = vld [vmem:[%s3761 + $0x20] sm:$0xff]
        %v3767 = vld [vmem:[%s3761 + $0x28] sm:$0xff]
        %v3768 = vld [vmem:[%s3761 + $0x30] sm:$0xff]
        %v3769 = vld [vmem:[%s3761 + $0x38] sm:$0xff]
        %v3770 = vld [vmem:[%s3761 + $0x40] sm:$0xff]
        %v3771 = vld [vmem:[%s3761 + $0x48] sm:$0xff]
        %v3772 = vld [vmem:[%s3761 + $0x50] sm:$0xff]
        %v3773 = vld [vmem:[%s3761 + $0x58] sm:$0xff]
        %v3774 = vld [vmem:[%s3761 + $0x60] sm:$0xff]
        %v3775 = vld [vmem:[%s3761 + $0x68] sm:$0xff]
        %v3776 = vld [vmem:[%s3761 + $0x70] sm:$0xff]
        %v3777 = vld [vmem:[%s3761 + $0x78] sm:$0xff]
        %v3779 = vshrl.u32 %v3744, 16
        %v3797 = vunpack.c.l.b16 %v3762
        %v3798 = vunpack.c.h.b16 %v3762
        %v3799 = vunpack.c.l.b16 %v3763
        %v3800 = vunpack.c.h.b16 %v3763
        %v3801 = vunpack.c.l.b16 %v3764
        %v3802 = vunpack.c.h.b16 %v3764
        %v3803 = vunpack.c.l.b16 %v3765
        %v3804 = vunpack.c.h.b16 %v3765
        %v3805 = vunpack.c.l.b16 %v3766
        %v3806 = vunpack.c.h.b16 %v3766
        %v3807 = vunpack.c.l.b16 %v3767
        %v3808 = vunpack.c.h.b16 %v3767
        %v3809 = vunpack.c.l.b16 %v3768
        %v3810 = vunpack.c.h.b16 %v3768
        %v3811 = vunpack.c.l.b16 %v3769
        %v3812 = vunpack.c.h.b16 %v3769
        %v3813 = vunpack.c.l.b16 %v3770
        %v3814 = vunpack.c.h.b16 %v3770
        %v3815 = vunpack.c.l.b16 %v3771
        %v3816 = vunpack.c.h.b16 %v3771
        %v3817 = vunpack.c.l.b16 %v3772
        %v3818 = vunpack.c.h.b16 %v3772
        %v3819 = vunpack.c.l.b16 %v3773
        %v3820 = vunpack.c.h.b16 %v3773
        %v3821 = vunpack.c.l.b16 %v3774
        %v3822 = vunpack.c.h.b16 %v3774
        %v3823 = vunpack.c.l.b16 %v3775
        %v3824 = vunpack.c.h.b16 %v3775
        %v3825 = vunpack.c.l.b16 %v3776
        %v3826 = vunpack.c.h.b16 %v3776
        %v3827 = vunpack.c.l.b16 %v3777
        %v3828 = vunpack.c.h.b16 %v3777
        %v3829 = vpack.c.b16 %v3801, %v3797
        %v3830 = vpack.c.b16 %v3802, %v3798
        %v3831 = vpack.c.b16 %v3803, %v3799
        %v3832 = vpack.c.b16 %v3804, %v3800
        %v3833 = vpack.c.b16 %v3809, %v3805
        %v3834 = vpack.c.b16 %v3810, %v3806
        %v3835 = vpack.c.b16 %v3811, %v3807
        %v3836 = vpack.c.b16 %v3812, %v3808
        %v3837 = vpack.c.b16 %v3817, %v3813
        %v3838 = vpack.c.b16 %v3818, %v3814
        %v3839 = vpack.c.b16 %v3819, %v3815
        %v3840 = vpack.c.b16 %v3820, %v3816
        %v3841 = vpack.c.b16 %v3825, %v3821
        %v3842 = vpack.c.b16 %v3826, %v3822
        %v3843 = vpack.c.b16 %v3827, %v3823
        %v3844 = vpack.c.b16 %v3828, %v3824
        %v3862 = vsel %vm2763, %v3779, 0
        %3864 = vmatprep.subr.bf16.mxu0 %v3830
        %3865 = vmatpush1.bf16.msra.mxu0 %v3829
        %3866 = vmatprep.subr.bf16.mxu0 %v3834
        %3867 = vmatpush1.bf16.msra.mxu0 %v3833
        %3868 = vmatprep.subr.bf16.mxu0 %v3838
        %3869 = vmatpush1.bf16.msra.mxu0 %v3837
        %3870 = vmatprep.subr.bf16.mxu0 %v3842
        %3871 = vmatpush1.bf16.msra.mxu0 %v3841
        %3872 = vmatprep.subr.bf16.mxu0 0
        %3873 = vmatpush1.bf16.msra.mxu0 0
        %3874 = vmatprep.subr.bf16.mxu0 0
        %3875 = vmatpush1.bf16.msra.mxu0 0
        %3876 = vmatprep.subr.bf16.mxu0 0
        %3877 = vmatpush1.bf16.msra.mxu0 0
        %3878 = vmatprep.subr.bf16.mxu0 0
        %3879 = vmatpush1.bf16.msra.mxu0 0
        %3880 = vmatprep.subr.bf16.mxu0 0
        %3881 = vmatpush1.bf16.msra.mxu0 0
        %3882 = vmatprep.subr.bf16.mxu0 0
        %3883 = vmatpush1.bf16.msra.mxu0 0
        %3884 = vmatprep.subr.bf16.mxu0 0
        %3885 = vmatpush1.bf16.msra.mxu0 0
        %3886 = vmatprep.subr.bf16.mxu0 0
        %3887 = vmatpush1.bf16.msra.mxu0 0
        %3888 = vmatprep.subr.bf16.mxu0 0
        %3889 = vmatpush1.bf16.msra.mxu0 0
        %3890 = vmatprep.subr.bf16.mxu0 0
        %3891 = vmatpush1.bf16.msra.mxu0 0
        %3892 = vmatprep.subr.bf16.mxu0 0
        %3893 = vmatpush1.bf16.msra.mxu0 0
        %3894 = vmatprep.subr.bf16.mxu0 0
        %3895 = vmatpush1.bf16.msra.mxu0 0
        %3896 = vmatprep.mubr.bf16.mxu0 0
        %3897 = vmatmul.mubr.bf16.gmra.mrb[0].mxu0 %v3862
        %v3898 = vpop.f32.mrb[0].mxu0
        %v3899 = vadd.f32 0.0, %v3898
        %v3900 = vpop.f32.mrb[0].mxu0
        %v3901 = vadd.f32 0.0, %v3900
        %v3902 = vpop.f32.mrb[0].mxu0
        %v3903 = vpop.f32.mrb[0].mxu0
        %3904 = vdwg.mxu0
        %3905 = vmatprep.subr.bf16.mxu0 %v3832
        %3906 = vmatpush1.bf16.msra.mxu0 %v3831
        %3907 = vmatprep.subr.bf16.mxu0 %v3836
        %3908 = vmatpush1.bf16.msra.mxu0 %v3835
        %3909 = vmatprep.subr.bf16.mxu0 %v3840
        %3910 = vmatpush1.bf16.msra.mxu0 %v3839
        %3911 = vmatprep.subr.bf16.mxu0 %v3844
        %3912 = vmatpush1.bf16.msra.mxu0 %v3843
        %3913 = vmatprep.subr.bf16.mxu0 0
        %3914 = vmatpush1.bf16.msra.mxu0 0
        %3915 = vmatprep.subr.bf16.mxu0 0
        %3916 = vmatpush1.bf16.msra.mxu0 0
        %3917 = vmatprep.subr.bf16.mxu0 0
        %3918 = vmatpush1.bf16.msra.mxu0 0
        %3919 = vmatprep.subr.bf16.mxu0 0
        %3920 = vmatpush1.bf16.msra.mxu0 0
        %3921 = vmatprep.subr.bf16.mxu0 0
        %3922 = vmatpush1.bf16.msra.mxu0 0
        %3923 = vmatprep.subr.bf16.mxu0 0
        %3924 = vmatpush1.bf16.msra.mxu0 0
        %3925 = vmatprep.subr.bf16.mxu0 0
        %3926 = vmatpush1.bf16.msra.mxu0 0
        %3927 = vmatprep.subr.bf16.mxu0 0
        %3928 = vmatpush1.bf16.msra.mxu0 0
        %3929 = vmatprep.subr.bf16.mxu0 0
        %3930 = vmatpush1.bf16.msra.mxu0 0
        %3931 = vmatprep.subr.bf16.mxu0 0
        %3932 = vmatpush1.bf16.msra.mxu0 0
        %3933 = vmatprep.subr.bf16.mxu0 0
        %3934 = vmatpush1.bf16.msra.mxu0 0
        %3935 = vmatprep.subr.bf16.mxu0 0
        %3936 = vmatpush1.bf16.msra.mxu0 0
        %3937 = vmatprep.mubr.bf16.mxu0 0
        %3938 = vmatmul.mubr.bf16.gmra.mrb[0].mxu0 %v3862
        %v3939 = vpop.f32.mrb[0].mxu0
        %v3940 = vadd.f32 0.0, %v3939
        %v3941 = vpop.f32.mrb[0].mxu0
        %v3942 = vadd.f32 0.0, %v3941
        %v3943 = vpop.f32.mrb[0].mxu0
        %v3944 = vpop.f32.mrb[0].mxu0
        %3945 = vdwg.mxu0
        %v3962 = vunpack.c.l.b16 %v3745
        %v3963 = vunpack.c.h.b16 %v3745
        %v3964 = vunpack.c.l.b16 %v3746
        %v3965 = vunpack.c.h.b16 %v3746
        %v3966 = vunpack.c.l.b16 %v3747
        %v3967 = vunpack.c.h.b16 %v3747
        %v3968 = vunpack.c.l.b16 %v3748
        %v3969 = vunpack.c.h.b16 %v3748
        %v3970 = vunpack.c.l.b16 %v3749
        %v3971 = vunpack.c.h.b16 %v3749
        %v3972 = vunpack.c.l.b16 %v3750
        %v3973 = vunpack.c.h.b16 %v3750
        %v3974 = vunpack.c.l.b16 %v3751
        %v3975 = vunpack.c.h.b16 %v3751
        %v3976 = vunpack.c.l.b16 %v3752
        %v3977 = vunpack.c.h.b16 %v3752
        %v3978 = vunpack.c.l.b16 %v3753
        %v3979 = vunpack.c.h.b16 %v3753
        %v3980 = vunpack.c.l.b16 %v3754
        %v3981 = vunpack.c.h.b16 %v3754
        %v3982 = vunpack.c.l.b16 %v3755
        %v3983 = vunpack.c.h.b16 %v3755
        %v3984 = vunpack.c.l.b16 %v3756
        %v3985 = vunpack.c.h.b16 %v3756
        %v3986 = vunpack.c.l.b16 %v3757
        %v3987 = vunpack.c.h.b16 %v3757
        %v3988 = vunpack.c.l.b16 %v3758
        %v3989 = vunpack.c.h.b16 %v3758
        %v3990 = vunpack.c.l.b16 %v3759
        %v3991 = vunpack.c.h.b16 %v3759
        %v3992 = vunpack.c.l.b16 %v3760
        %v3993 = vunpack.c.h.b16 %v3760
        %v3994 = vpack.c.b16 %v3966, %v3962
        %v3995 = vpack.c.b16 %v3967, %v3963
        %v3996 = vpack.c.b16 %v3968, %v3964
        %v3997 = vpack.c.b16 %v3969, %v3965
        %v3998 = vpack.c.b16 %v3974, %v3970
        %v3999 = vpack.c.b16 %v3975, %v3971
        %v4000 = vpack.c.b16 %v3976, %v3972
        %v4001 = vpack.c.b16 %v3977, %v3973
        %v4002 = vpack.c.b16 %v3982, %v3978
        %v4003 = vpack.c.b16 %v3983, %v3979
        %v4004 = vpack.c.b16 %v3984, %v3980
        %v4005 = vpack.c.b16 %v3985, %v3981
        %v4006 = vpack.c.b16 %v3990, %v3986
        %v4007 = vpack.c.b16 %v3991, %v3987
        %v4008 = vpack.c.b16 %v3992, %v3988
        %v4009 = vpack.c.b16 %v3993, %v3989
        %v4026 = vsel %vm2763, %v3744, 0
        %4028 = vmatprep.subr.bf16.mxu0 %v3995
        %4029 = vmatpush1.bf16.msra.mxu0 %v3994
        %4030 = vmatprep.subr.bf16.mxu0 %v3999
        %4031 = vmatpush1.bf16.msra.mxu0 %v3998
        %4032 = vmatprep.subr.bf16.mxu0 %v4003
        %4033 = vmatpush1.bf16.msra.mxu0 %v4002
        %4034 = vmatprep.subr.bf16.mxu0 %v4007
        %4035 = vmatpush1.bf16.msra.mxu0 %v4006
        %4036 = vmatprep.subr.bf16.mxu0 0
        %4037 = vmatpush1.bf16.msra.mxu0 0
        %4038 = vmatprep.subr.bf16.mxu0 0
        %4039 = vmatpush1.bf16.msra.mxu0 0
        %4040 = vmatprep.subr.bf16.mxu0 0
        %4041 = vmatpush1.bf16.msra.mxu0 0
        %4042 = vmatprep.subr.bf16.mxu0 0
        %4043 = vmatpush1.bf16.msra.mxu0 0
        %4044 = vmatprep.subr.bf16.mxu0 0
        %4045 = vmatpush1.bf16.msra.mxu0 0
        %4046 = vmatprep.subr.bf16.mxu0 0
        %4047 = vmatpush1.bf16.msra.mxu0 0
        %4048 = vmatprep.subr.bf16.mxu0 0
        %4049 = vmatpush1.bf16.msra.mxu0 0
        %4050 = vmatprep.subr.bf16.mxu0 0
        %4051 = vmatpush1.bf16.msra.mxu0 0
        %4052 = vmatprep.subr.bf16.mxu0 0
        %4053 = vmatpush1.bf16.msra.mxu0 0
        %4054 = vmatprep.subr.bf16.mxu0 0
        %4055 = vmatpush1.bf16.msra.mxu0 0
        %4056 = vmatprep.subr.bf16.mxu0 0
        %4057 = vmatpush1.bf16.msra.mxu0 0
        %4058 = vmatprep.subr.bf16.mxu0 0
        %4059 = vmatpush1.bf16.msra.mxu0 0
        %4060 = vmatprep.mubr.bf16.mxu0 0
        %4061 = vmatmul.mubr.bf16.gmra.mrb[0].mxu0 %v4026
        %v4062 = vpop.f32.mrb[0].mxu0
        %v4063 = vadd.f32 %v3899, %v4062
        %v4064 = vpop.f32.mrb[0].mxu0
        %v4065 = vadd.f32 %v3901, %v4064
        %v4066 = vpop.f32.mrb[0].mxu0
        %v4067 = vpop.f32.mrb[0].mxu0
        %4068 = vdwg.mxu0
        %4069 = vmatprep.subr.bf16.mxu0 %v3997
        %4070 = vmatpush1.bf16.msra.mxu0 %v3996
        %4071 = vmatprep.subr.bf16.mxu0 %v4001
        %4072 = vmatpush1.bf16.msra.mxu0 %v4000
        %4073 = vmatprep.subr.bf16.mxu0 %v4005
        %4074 = vmatpush1.bf16.msra.mxu0 %v4004
        %4075 = vmatprep.subr.bf16.mxu0 %v4009
        %4076 = vmatpush1.bf16.msra.mxu0 %v4008
        %4077 = vmatprep.subr.bf16.mxu0 0
        %4078 = vmatpush1.bf16.msra.mxu0 0
        %4079 = vmatprep.subr.bf16.mxu0 0
        %4080 = vmatpush1.bf16.msra.mxu0 0
        %4081 = vmatprep.subr.bf16.mxu0 0
        %4082 = vmatpush1.bf16.msra.mxu0 0
        %4083 = vmatprep.subr.bf16.mxu0 0
        %4084 = vmatpush1.bf16.msra.mxu0 0
        %4085 = vmatprep.subr.bf16.mxu0 0
        %4086 = vmatpush1.bf16.msra.mxu0 0
        %4087 = vmatprep.subr.bf16.mxu0 0
        %4088 = vmatpush1.bf16.msra.mxu0 0
        %4089 = vmatprep.subr.bf16.mxu0 0
        %4090 = vmatpush1.bf16.msra.mxu0 0
        %4091 = vmatprep.subr.bf16.mxu0 0
        %4092 = vmatpush1.bf16.msra.mxu0 0
        %4093 = vmatprep.subr.bf16.mxu0 0
        %4094 = vmatpush1.bf16.msra.mxu0 0
        %4095 = vmatprep.subr.bf16.mxu0 0
        %4096 = vmatpush1.bf16.msra.mxu0 0
        %4097 = vmatprep.subr.bf16.mxu0 0
        %4098 = vmatpush1.bf16.msra.mxu0 0
        %4099 = vmatprep.subr.bf16.mxu0 0
        %4100 = vmatpush1.bf16.msra.mxu0 0
        %4101 = vmatprep.mubr.bf16.mxu0 0
        %4102 = vmatmul.mubr.bf16.gmra.mrb[0].mxu0 %v4026
        %v4103 = vpop.f32.mrb[0].mxu0
        %v4104 = vadd.f32 %v3940, %v4103
        %v4105 = vpop.f32.mrb[0].mxu0
        %v4106 = vadd.f32 %v3942, %v4105
        %v4107 = vpop.f32.mrb[0].mxu0
        %v4108 = vpop.f32.mrb[0].mxu0
        %4109 = vdwg.mxu0
        %s4110 = scalar_lea.vmem %s9, 256
        %v4111 = vld [vmem:[%s4110] sm:$0xff]
        %v4112 = vld [vmem:[%s4110 + $0x8] sm:$0xff]
        %v4113 = vld [vmem:[%s4110 + $0x10] sm:$0xff]
        %v4114 = vld [vmem:[%s4110 + $0x18] sm:$0xff]
        %v4115 = vld [vmem:[%s4110 + $0x20] sm:$0xff]
        %v4116 = vld [vmem:[%s4110 + $0x28] sm:$0xff]
        %v4117 = vld [vmem:[%s4110 + $0x30] sm:$0xff]
        %v4118 = vld [vmem:[%s4110 + $0x38] sm:$0xff]
        %v4119 = vld [vmem:[%s4110 + $0x40] sm:$0xff]
        %v4120 = vld [vmem:[%s4110 + $0x48] sm:$0xff]
        %v4121 = vld [vmem:[%s4110 + $0x50] sm:$0xff]
        %v4122 = vld [vmem:[%s4110 + $0x58] sm:$0xff]
        %v4123 = vld [vmem:[%s4110 + $0x60] sm:$0xff]
        %v4124 = vld [vmem:[%s4110 + $0x68] sm:$0xff]
        %v4125 = vld [vmem:[%s4110 + $0x70] sm:$0xff]
        %v4126 = vld [vmem:[%s4110 + $0x78] sm:$0xff]
        %v4128 = vrot.slane %v3744, 1
        %v4145 = vunpack.c.l.b16 %v4111
        %v4146 = vunpack.c.h.b16 %v4111
        %v4147 = vunpack.c.l.b16 %v4112
        %v4148 = vunpack.c.h.b16 %v4112
        %v4149 = vunpack.c.l.b16 %v4113
        %v4150 = vunpack.c.h.b16 %v4113
        %v4151 = vunpack.c.l.b16 %v4114
        %v4152 = vunpack.c.h.b16 %v4114
        %v4153 = vunpack.c.l.b16 %v4115
        %v4154 = vunpack.c.h.b16 %v4115
        %v4155 = vunpack.c.l.b16 %v4116
        %v4156 = vunpack.c.h.b16 %v4116
        %v4157 = vunpack.c.l.b16 %v4117
        %v4158 = vunpack.c.h.b16 %v4117
        %v4159 = vunpack.c.l.b16 %v4118
        %v4160 = vunpack.c.h.b16 %v4118
        %v4161 = vunpack.c.l.b16 %v4119
        %v4162 = vunpack.c.h.b16 %v4119
        %v4163 = vunpack.c.l.b16 %v4120
        %v4164 = vunpack.c.h.b16 %v4120
        %v4165 = vunpack.c.l.b16 %v4121
        %v4166 = vunpack.c.h.b16 %v4121
        %v4167 = vunpack.c.l.b16 %v4122
        %v4168 = vunpack.c.h.b16 %v4122
        %v4169 = vunpack.c.l.b16 %v4123
        %v4170 = vunpack.c.h.b16 %v4123
        %v4171 = vunpack.c.l.b16 %v4124
        %v4172 = vunpack.c.h.b16 %v4124
        %v4173 = vunpack.c.l.b16 %v4125
        %v4174 = vunpack.c.h.b16 %v4125
        %v4175 = vunpack.c.l.b16 %v4126
        %v4176 = vunpack.c.h.b16 %v4126
        %v4177 = vpack.c.b16 %v4149, %v4145
        %v4178 = vpack.c.b16 %v4150, %v4146
        %v4179 = vpack.c.b16 %v4151, %v4147
        %v4180 = vpack.c.b16 %v4152, %v4148
        %v4181 = vpack.c.b16 %v4157, %v4153
        %v4182 = vpack.c.b16 %v4158, %v4154
        %v4183 = vpack.c.b16 %v4159, %v4155
        %v4184 = vpack.c.b16 %v4160, %v4156
        %v4185 = vpack.c.b16 %v4165, %v4161
        %v4186 = vpack.c.b16 %v4166, %v4162
        %v4187 = vpack.c.b16 %v4167, %v4163
        %v4188 = vpack.c.b16 %v4168, %v4164
        %v4189 = vpack.c.b16 %v4173, %v4169
        %v4190 = vpack.c.b16 %v4174, %v4170
        %v4191 = vpack.c.b16 %v4175, %v4171
        %v4192 = vpack.c.b16 %v4176, %v4172
        %v4210 = vsel %vm2763, %v4128, 0
        %4212 = vmatprep.subr.bf16.mxu0 %v4178
        %4213 = vmatpush1.bf16.msra.mxu0 %v4177
        %4214 = vmatprep.subr.bf16.mxu0 %v4182
        %4215 = vmatpush1.bf16.msra.mxu0 %v4181
        %4216 = vmatprep.subr.bf16.mxu0 %v4186
        %4217 = vmatpush1.bf16.msra.mxu0 %v4185
        %4218 = vmatprep.subr.bf16.mxu0 %v4190
        %4219 = vmatpush1.bf16.msra.mxu0 %v4189
        %4220 = vmatprep.subr.bf16.mxu0 0
        %4221 = vmatpush1.bf16.msra.mxu0 0
        %4222 = vmatprep.subr.bf16.mxu0 0
        %4223 = vmatpush1.bf16.msra.mxu0 0
        %4224 = vmatprep.subr.bf16.mxu0 0
        %4225 = vmatpush1.bf16.msra.mxu0 0
        %4226 = vmatprep.subr.bf16.mxu0 0
        %4227 = vmatpush1.bf16.msra.mxu0 0
        %4228 = vmatprep.subr.bf16.mxu0 0
        %4229 = vmatpush1.bf16.msra.mxu0 0
        %4230 = vmatprep.subr.bf16.mxu0 0
        %4231 = vmatpush1.bf16.msra.mxu0 0
        %4232 = vmatprep.subr.bf16.mxu0 0
        %4233 = vmatpush1.bf16.msra.mxu0 0
        %4234 = vmatprep.subr.bf16.mxu0 0
        %4235 = vmatpush1.bf16.msra.mxu0 0
        %4236 = vmatprep.subr.bf16.mxu0 0
        %4237 = vmatpush1.bf16.msra.mxu0 0
        %4238 = vmatprep.subr.bf16.mxu0 0
        %4239 = vmatpush1.bf16.msra.mxu0 0
        %4240 = vmatprep.subr.bf16.mxu0 0
        %4241 = vmatpush1.bf16.msra.mxu0 0
        %4242 = vmatprep.subr.bf16.mxu0 0
        %4243 = vmatpush1.bf16.msra.mxu0 0
        %4244 = vmatprep.mubr.bf16.mxu0 0
        %4245 = vmatmul.mubr.bf16.gmra.mrb[0].mxu0 %v4210
        %v4246 = vpop.f32.mrb[0].mxu0
        %v4247 = vadd.f32 0.0, %v4246
        %v4248 = vpop.f32.mrb[0].mxu0
        %v4249 = vadd.f32 0.0, %v4248
        %v4250 = vpop.f32.mrb[0].mxu0
        %v4251 = vpop.f32.mrb[0].mxu0
        %4252 = vdwg.mxu0
        %4253 = vmatprep.subr.bf16.mxu0 %v4180
        %4254 = vmatpush1.bf16.msra.mxu0 %v4179
        %4255 = vmatprep.subr.bf16.mxu0 %v4184
        %4256 = vmatpush1.bf16.msra.mxu0 %v4183
        %4257 = vmatprep.subr.bf16.mxu0 %v4188
        %4258 = vmatpush1.bf16.msra.mxu0 %v4187
        %4259 = vmatprep.subr.bf16.mxu0 %v4192
        %4260 = vmatpush1.bf16.msra.mxu0 %v4191
        %4261 = vmatprep.subr.bf16.mxu0 0
        %4262 = vmatpush1.bf16.msra.mxu0 0
        %4263 = vmatprep.subr.bf16.mxu0 0
        %4264 = vmatpush1.bf16.msra.mxu0 0
        %4265 = vmatprep.subr.bf16.mxu0 0
        %4266 = vmatpush1.bf16.msra.mxu0 0
        %4267 = vmatprep.subr.bf16.mxu0 0
        %4268 = vmatpush1.bf16.msra.mxu0 0
        %4269 = vmatprep.subr.bf16.mxu0 0
        %4270 = vmatpush1.bf16.msra.mxu0 0
        %4271 = vmatprep.subr.bf16.mxu0 0
        %4272 = vmatpush1.bf16.msra.mxu0 0
        %4273 = vmatprep.subr.bf16.mxu0 0
        %4274 = vmatpush1.bf16.msra.mxu0 0
        %4275 = vmatprep.subr.bf16.mxu0 0
        %4276 = vmatpush1.bf16.msra.mxu0 0
        %4277 = vmatprep.subr.bf16.mxu0 0
        %4278 = vmatpush1.bf16.msra.mxu0 0
        %4279 = vmatprep.subr.bf16.mxu0 0
        %4280 = vmatpush1.bf16.msra.mxu0 0
        %4281 = vmatprep.subr.bf16.mxu0 0
        %4282 = vmatpush1.bf16.msra.mxu0 0
        %4283 = vmatprep.subr.bf16.mxu0 0
        %4284 = vmatpush1.bf16.msra.mxu0 0
        %4285 = vmatprep.mubr.bf16.mxu0 0
        %4286 = vmatmul.mubr.bf16.gmra.mrb[0].mxu0 %v4210
        %v4287 = vpop.f32.mrb[0].mxu0
        %v4288 = vadd.f32 0.0, %v4287
        %v4289 = vpop.f32.mrb[0].mxu0
        %v4290 = vadd.f32 0.0, %v4289
        %v4291 = vpop.f32.mrb[0].mxu0
        %v4292 = vpop.f32.mrb[0].mxu0
        %4293 = vdwg.mxu0
        %v4294 = vadd.f32 %v4063, %v4247
        %v4295 = vadd.f32 %v4065, %v4249
        %v4296 = vadd.f32 %v4104, %v4288
        %v4297 = vadd.f32 %v4106, %v4290
        %s4298 = scalar_lea.vmem %s9, 384
        %v4299 = vld [vmem:[%s4298] sm:$0xff]
        %v4300 = vld [vmem:[%s4298 + $0x8] sm:$0xff]
        %v4301 = vld [vmem:[%s4298 + $0x10] sm:$0xff]
        %v4302 = vld [vmem:[%s4298 + $0x18] sm:$0xff]
        %v4303 = vld [vmem:[%s4298 + $0x20] sm:$0xff]
        %v4304 = vld [vmem:[%s4298 + $0x28] sm:$0xff]
        %v4305 = vld [vmem:[%s4298 + $0x30] sm:$0xff]
        %v4306 = vld [vmem:[%s4298 + $0x38] sm:$0xff]
        %v4307 = vld [vmem:[%s4298 + $0x40] sm:$0xff]
        %v4308 = vld [vmem:[%s4298 + $0x48] sm:$0xff]
        %v4309 = vld [vmem:[%s4298 + $0x50] sm:$0xff]
        %v4310 = vld [vmem:[%s4298 + $0x58] sm:$0xff]
        %v4311 = vld [vmem:[%s4298 + $0x60] sm:$0xff]
        %v4312 = vld [vmem:[%s4298 + $0x68] sm:$0xff]
        %v4313 = vld [vmem:[%s4298 + $0x70] sm:$0xff]
        %v4314 = vld [vmem:[%s4298 + $0x78] sm:$0xff]
        %v4315 = vrot.slane %v3779, 1
        %v4332 = vunpack.c.l.b16 %v4299
        %v4333 = vunpack.c.h.b16 %v4299
        %v4334 = vunpack.c.l.b16 %v4300
        %v4335 = vunpack.c.h.b16 %v4300
        %v4336 = vunpack.c.l.b16 %v4301
        %v4337 = vunpack.c.h.b16 %v4301
        %v4338 = vunpack.c.l.b16 %v4302
        %v4339 = vunpack.c.h.b16 %v4302
        %v4340 = vunpack.c.l.b16 %v4303
        %v4341 = vunpack.c.h.b16 %v4303
        %v4342 = vunpack.c.l.b16 %v4304
        %v4343 = vunpack.c.h.b16 %v4304
        %v4344 = vunpack.c.l.b16 %v4305
        %v4345 = vunpack.c.h.b16 %v4305
        %v4346 = vunpack.c.l.b16 %v4306
        %v4347 = vunpack.c.h.b16 %v4306
        %v4348 = vunpack.c.l.b16 %v4307
        %v4349 = vunpack.c.h.b16 %v4307
        %v4350 = vunpack.c.l.b16 %v4308
        %v4351 = vunpack.c.h.b16 %v4308
        %v4352 = vunpack.c.l.b16 %v4309
        %v4353 = vunpack.c.h.b16 %v4309
        %v4354 = vunpack.c.l.b16 %v4310
        %v4355 = vunpack.c.h.b16 %v4310
        %v4356 = vunpack.c.l.b16 %v4311
        %v4357 = vunpack.c.h.b16 %v4311
        %v4358 = vunpack.c.l.b16 %v4312
        %v4359 = vunpack.c.h.b16 %v4312
        %v4360 = vunpack.c.l.b16 %v4313
        %v4361 = vunpack.c.h.b16 %v4313
        %v4362 = vunpack.c.l.b16 %v4314
        %v4363 = vunpack.c.h.b16 %v4314
        %v4364 = vpack.c.b16 %v4336, %v4332
        %v4365 = vpack.c.b16 %v4337, %v4333
        %v4366 = vpack.c.b16 %v4338, %v4334
        %v4367 = vpack.c.b16 %v4339, %v4335
        %v4368 = vpack.c.b16 %v4344, %v4340
        %v4369 = vpack.c.b16 %v4345, %v4341
        %v4370 = vpack.c.b16 %v4346, %v4342
        %v4371 = vpack.c.b16 %v4347, %v4343
        %v4372 = vpack.c.b16 %v4352, %v4348
        %v4373 = vpack.c.b16 %v4353, %v4349
        %v4374 = vpack.c.b16 %v4354, %v4350
        %v4375 = vpack.c.b16 %v4355, %v4351
        %v4376 = vpack.c.b16 %v4360, %v4356
        %v4377 = vpack.c.b16 %v4361, %v4357
        %v4378 = vpack.c.b16 %v4362, %v4358
        %v4379 = vpack.c.b16 %v4363, %v4359
        %v4397 = vsel %vm2763, %v4315, 0
        %4399 = vmatprep.subr.bf16.mxu0 %v4365
        %4400 = vmatpush1.bf16.msra.mxu0 %v4364
        %4401 = vmatprep.subr.bf16.mxu0 %v4369
        %4402 = vmatpush1.bf16.msra.mxu0 %v4368
        %4403 = vmatprep.subr.bf16.mxu0 %v4373
        %4404 = vmatpush1.bf16.msra.mxu0 %v4372
        %4405 = vmatprep.subr.bf16.mxu0 %v4377
        %4406 = vmatpush1.bf16.msra.mxu0 %v4376
        %4407 = vmatprep.subr.bf16.mxu0 0
        %4408 = vmatpush1.bf16.msra.mxu0 0
        %4409 = vmatprep.subr.bf16.mxu0 0
        %4410 = vmatpush1.bf16.msra.mxu0 0
        %4411 = vmatprep.subr.bf16.mxu0 0
        %4412 = vmatpush1.bf16.msra.mxu0 0
        %4413 = vmatprep.subr.bf16.mxu0 0
        %4414 = vmatpush1.bf16.msra.mxu0 0
        %4415 = vmatprep.subr.bf16.mxu0 0
        %4416 = vmatpush1.bf16.msra.mxu0 0
        %4417 = vmatprep.subr.bf16.mxu0 0
        %4418 = vmatpush1.bf16.msra.mxu0 0
        %4419 = vmatprep.subr.bf16.mxu0 0
        %4420 = vmatpush1.bf16.msra.mxu0 0
        %4421 = vmatprep.subr.bf16.mxu0 0
        %4422 = vmatpush1.bf16.msra.mxu0 0
        %4423 = vmatprep.subr.bf16.mxu0 0
        %4424 = vmatpush1.bf16.msra.mxu0 0
        %4425 = vmatprep.subr.bf16.mxu0 0
        %4426 = vmatpush1.bf16.msra.mxu0 0
        %4427 = vmatprep.subr.bf16.mxu0 0
        %4428 = vmatpush1.bf16.msra.mxu0 0
        %4429 = vmatprep.subr.bf16.mxu0 0
        %4430 = vmatpush1.bf16.msra.mxu0 0
        %4431 = vmatprep.mubr.bf16.mxu0 0
        %4432 = vmatmul.mubr.bf16.gmra.mrb[0].mxu0 %v4397
        %v4433 = vpop.f32.mrb[0].mxu0
        %v4434 = vadd.f32 0.0, %v4433
        %v4435 = vpop.f32.mrb[0].mxu0
        %v4436 = vadd.f32 0.0, %v4435
        %v4437 = vpop.f32.mrb[0].mxu0
        %v4438 = vpop.f32.mrb[0].mxu0
        %4439 = vdwg.mxu0
        %4440 = vmatprep.subr.bf16.mxu0 %v4367
        %4441 = vmatpush1.bf16.msra.mxu0 %v4366
        %4442 = vmatprep.subr.bf16.mxu0 %v4371
        %4443 = vmatpush1.bf16.msra.mxu0 %v4370
        %4444 = vmatprep.subr.bf16.mxu0 %v4375
        %4445 = vmatpush1.bf16.msra.mxu0 %v4374
        %4446 = vmatprep.subr.bf16.mxu0 %v4379
        %4447 = vmatpush1.bf16.msra.mxu0 %v4378
        %4448 = vmatprep.subr.bf16.mxu0 0
        %4449 = vmatpush1.bf16.msra.mxu0 0
        %4450 = vmatprep.subr.bf16.mxu0 0
        %4451 = vmatpush1.bf16.msra.mxu0 0
        %4452 = vmatprep.subr.bf16.mxu0 0
        %4453 = vmatpush1.bf16.msra.mxu0 0
        %4454 = vmatprep.subr.bf16.mxu0 0
        %4455 = vmatpush1.bf16.msra.mxu0 0
        %4456 = vmatprep.subr.bf16.mxu0 0
        %4457 = vmatpush1.bf16.msra.mxu0 0
        %4458 = vmatprep.subr.bf16.mxu0 0
        %4459 = vmatpush1.bf16.msra.mxu0 0
        %4460 = vmatprep.subr.bf16.mxu0 0
        %4461 = vmatpush1.bf16.msra.mxu0 0
        %4462 = vmatprep.subr.bf16.mxu0 0
        %4463 = vmatpush1.bf16.msra.mxu0 0
        %4464 = vmatprep.subr.bf16.mxu0 0
        %4465 = vmatpush1.bf16.msra.mxu0 0
        %4466 = vmatprep.subr.bf16.mxu0 0
        %4467 = vmatpush1.bf16.msra.mxu0 0
        %4468 = vmatprep.subr.bf16.mxu0 0
        %4469 = vmatpush1.bf16.msra.mxu0 0
        %4470 = vmatprep.subr.bf16.mxu0 0
        %4471 = vmatpush1.bf16.msra.mxu0 0
        %4472 = vmatprep.mubr.bf16.mxu0 0
        %4473 = vmatmul.mubr.bf16.gmra.mrb[0].mxu0 %v4397
        %v4474 = vpop.f32.mrb[0].mxu0
        %v4475 = vadd.f32 0.0, %v4474
        %v4476 = vpop.f32.mrb[0].mxu0
        %v4477 = vadd.f32 0.0, %v4476
        %v4478 = vpop.f32.mrb[0].mxu0
        %v4479 = vpop.f32.mrb[0].mxu0
        %4480 = vdwg.mxu0
        %v4481 = vadd.f32 %v4294, %v4434
        %v4482 = vadd.f32 %v4295, %v4436
        %v4483 = vadd.f32 %v4296, %v4475
        %v4484 = vadd.f32 %v4297, %v4477
        %v4485 = vld [vmem:[%s10] sm:$0xf]
        %v4487 = vlaneseq
        %v4488 = vshrl.u32 %v4487, 7
        %v4489 = vsub.s32 0, %v4488
        %v4490 = vrot.slane %v4485, %v4489
        %v4491 = vlaneseq
        %v4492 = vshrl.u32 %v4491, 7
        %v4493 = vsub.s32 1, %v4492
        %v4494 = vrot.slane %v4485, %v4493
        %v4495 = vlaneseq
        %v4496 = vshrl.u32 %v4495, 7
        %v4497 = vsub.s32 2, %v4496
        %v4498 = vrot.slane %v4485, %v4497
        %v4499 = vlaneseq
        %v4500 = vshrl.u32 %v4499, 7
        %v4501 = vsub.s32 3, %v4500
        %v4502 = vrot.slane %v4485, %v4501
        %v4507 = vadd.f32 %v4481, %v4490
        %v4508 = vadd.f32 %v4482, %v4494
        %v4509 = vadd.f32 %v4483, %v4498
        %v4510 = vadd.f32 %v4484, %v4502
        %v4511 = vmax.f32 %v4507, 0.0
        %v4512 = vmax.f32 %v4508, 0.0
        %v4513 = vmax.f32 %v4509, 0.0
        %v4514 = vmax.f32 %v4510, 0.0
        %v4515 = vpack.c.bf16 %v4511, %v4511
        %v4516 = vpack.c.bf16 %v4512, %v4512
        %v4517 = vpack.c.bf16 %v4513, %v4513
        %v4518 = vpack.c.bf16 %v4514, %v4514
        %v4519 = vld [vmem:[%s11] sm:$0xf]
        %v4520 = vld [vmem:[%s11 + $0x4] sm:$0xf]
        %v4521 = vld [vmem:[%s11 + $0x8] sm:$0xf]
        %v4522 = vld [vmem:[%s11 + $0xc] sm:$0xf]
        %v4523 = vld [vmem:[%s11 + $0x10] sm:$0xf]
        %v4524 = vld [vmem:[%s11 + $0x14] sm:$0xf]
        %v4525 = vld [vmem:[%s11 + $0x18] sm:$0xf]
        %v4526 = vld [vmem:[%s11 + $0x1c] sm:$0xf]
        %v4527 = vld [vmem:[%s11 + $0x20] sm:$0xf]
        %v4528 = vld [vmem:[%s11 + $0x24] sm:$0xf]
        %v4529 = vld [vmem:[%s11 + $0x28] sm:$0xf]
        %v4530 = vld [vmem:[%s11 + $0x2c] sm:$0xf]
        %v4531 = vld [vmem:[%s11 + $0x30] sm:$0xf]
        %v4532 = vld [vmem:[%s11 + $0x34] sm:$0xf]
        %v4533 = vld [vmem:[%s11 + $0x38] sm:$0xf]
        %v4534 = vld [vmem:[%s11 + $0x3c] sm:$0xf]
        %v4535 = vld [vmem:[%s11 + $0x40] sm:$0xf]
        %v4536 = vld [vmem:[%s11 + $0x44] sm:$0xf]
        %v4537 = vld [vmem:[%s11 + $0x48] sm:$0xf]
        %v4538 = vld [vmem:[%s11 + $0x4c] sm:$0xf]
        %v4539 = vld [vmem:[%s11 + $0x50] sm:$0xf]
        %v4540 = vld [vmem:[%s11 + $0x54] sm:$0xf]
        %v4541 = vld [vmem:[%s11 + $0x58] sm:$0xf]
        %v4542 = vld [vmem:[%s11 + $0x5c] sm:$0xf]
        %v4543 = vld [vmem:[%s11 + $0x60] sm:$0xf]
        %v4544 = vld [vmem:[%s11 + $0x64] sm:$0xf]
        %v4545 = vld [vmem:[%s11 + $0x68] sm:$0xf]
        %v4546 = vld [vmem:[%s11 + $0x6c] sm:$0xf]
        %v4547 = vld [vmem:[%s11 + $0x70] sm:$0xf]
        %v4548 = vld [vmem:[%s11 + $0x74] sm:$0xf]
        %v4549 = vld [vmem:[%s11 + $0x78] sm:$0xf]
        %v4550 = vld [vmem:[%s11 + $0x7c] sm:$0xf]
        %v4551 = vld [vmem:[%s11 + $0x80] sm:$0xf]
        %v4552 = vld [vmem:[%s11 + $0x84] sm:$0xf]
        %v4553 = vld [vmem:[%s11 + $0x88] sm:$0xf]
        %v4554 = vld [vmem:[%s11 + $0x8c] sm:$0xf]
        %v4555 = vld [vmem:[%s11 + $0x90] sm:$0xf]
        %v4556 = vld [vmem:[%s11 + $0x94] sm:$0xf]
        %v4557 = vld [vmem:[%s11 + $0x98] sm:$0xf]
        %v4558 = vld [vmem:[%s11 + $0x9c] sm:$0xf]
        %v4559 = vld [vmem:[%s11 + $0xa0] sm:$0xf]
        %v4560 = vld [vmem:[%s11 + $0xa4] sm:$0xf]
        %v4561 = vld [vmem:[%s11 + $0xa8] sm:$0xf]
        %v4562 = vld [vmem:[%s11 + $0xac] sm:$0xf]
        %v4563 = vld [vmem:[%s11 + $0xb0] sm:$0xf]
        %v4564 = vld [vmem:[%s11 + $0xb4] sm:$0xf]
        %v4565 = vld [vmem:[%s11 + $0xb8] sm:$0xf]
        %v4566 = vld [vmem:[%s11 + $0xbc] sm:$0xf]
        %v4567 = vld [vmem:[%s11 + $0xc0] sm:$0xf]
        %v4568 = vld [vmem:[%s11 + $0xc4] sm:$0xf]
        %v4569 = vld [vmem:[%s11 + $0xc8] sm:$0xf]
        %v4570 = vld [vmem:[%s11 + $0xcc] sm:$0xf]
        %v4571 = vld [vmem:[%s11 + $0xd0] sm:$0xf]
        %v4572 = vld [vmem:[%s11 + $0xd4] sm:$0xf]
        %v4573 = vld [vmem:[%s11 + $0xd8] sm:$0xf]
        %v4574 = vld [vmem:[%s11 + $0xdc] sm:$0xf]
        %v4575 = vld [vmem:[%s11 + $0xe0] sm:$0xf]
        %v4576 = vld [vmem:[%s11 + $0xe4] sm:$0xf]
        %v4577 = vld [vmem:[%s11 + $0xe8] sm:$0xf]
        %v4578 = vld [vmem:[%s11 + $0xec] sm:$0xf]
        %v4579 = vld [vmem:[%s11 + $0xf0] sm:$0xf]
        %v4580 = vld [vmem:[%s11 + $0xf4] sm:$0xf]
        %v4581 = vld [vmem:[%s11 + $0xf8] sm:$0xf]
        %v4582 = vld [vmem:[%s11 + $0xfc] sm:$0xf]
        %v4583 = vld [vmem:[%s12] sm:$0x1]
        %v4648 = vunpack.c.l.b16 %v4519
        %v4649 = vunpack.c.l.b16 %v4520
        %v4650 = vunpack.c.l.b16 %v4521
        %v4651 = vunpack.c.l.b16 %v4522
        %v4652 = vunpack.c.l.b16 %v4523
        %v4653 = vunpack.c.l.b16 %v4524
        %v4654 = vunpack.c.l.b16 %v4525
        %v4655 = vunpack.c.l.b16 %v4526
        %v4656 = vunpack.c.l.b16 %v4527
        %v4657 = vunpack.c.l.b16 %v4528
        %v4658 = vunpack.c.l.b16 %v4529
        %v4659 = vunpack.c.l.b16 %v4530
        %v4660 = vunpack.c.l.b16 %v4531
        %v4661 = vunpack.c.l.b16 %v4532
        %v4662 = vunpack.c.l.b16 %v4533
        %v4663 = vunpack.c.l.b16 %v4534
        %v4664 = vunpack.c.l.b16 %v4535
        %v4665 = vunpack.c.l.b16 %v4536
        %v4666 = vunpack.c.l.b16 %v4537
        %v4667 = vunpack.c.l.b16 %v4538
        %v4668 = vunpack.c.l.b16 %v4539
        %v4669 = vunpack.c.l.b16 %v4540
        %v4670 = vunpack.c.l.b16 %v4541
        %v4671 = vunpack.c.l.b16 %v4542
        %v4672 = vunpack.c.l.b16 %v4543
        %v4673 = vunpack.c.l.b16 %v4544
        %v4674 = vunpack.c.l.b16 %v4545
        %v4675 = vunpack.c.l.b16 %v4546
        %v4676 = vunpack.c.l.b16 %v4547
        %v4677 = vunpack.c.l.b16 %v4548
        %v4678 = vunpack.c.l.b16 %v4549
        %v4679 = vunpack.c.l.b16 %v4550
        %v4680 = vunpack.c.l.b16 %v4551
        %v4681 = vunpack.c.l.b16 %v4552
        %v4682 = vunpack.c.l.b16 %v4553
        %v4683 = vunpack.c.l.b16 %v4554
        %v4684 = vunpack.c.l.b16 %v4555
        %v4685 = vunpack.c.l.b16 %v4556
        %v4686 = vunpack.c.l.b16 %v4557
        %v4687 = vunpack.c.l.b16 %v4558
        %v4688 = vunpack.c.l.b16 %v4559
        %v4689 = vunpack.c.l.b16 %v4560
        %v4690 = vunpack.c.l.b16 %v4561
        %v4691 = vunpack.c.l.b16 %v4562
        %v4692 = vunpack.c.l.b16 %v4563
        %v4693 = vunpack.c.l.b16 %v4564
        %v4694 = vunpack.c.l.b16 %v4565
        %v4695 = vunpack.c.l.b16 %v4566
        %v4696 = vunpack.c.l.b16 %v4567
        %v4697 = vunpack.c.l.b16 %v4568
        %v4698 = vunpack.c.l.b16 %v4569
        %v4699 = vunpack.c.l.b16 %v4570
        %v4700 = vunpack.c.l.b16 %v4571
        %v4701 = vunpack.c.l.b16 %v4572
        %v4702 = vunpack.c.l.b16 %v4573
        %v4703 = vunpack.c.l.b16 %v4574
        %v4704 = vunpack.c.l.b16 %v4575
        %v4705 = vunpack.c.l.b16 %v4576
        %v4706 = vunpack.c.l.b16 %v4577
        %v4707 = vunpack.c.l.b16 %v4578
        %v4708 = vunpack.c.l.b16 %v4579
        %v4709 = vunpack.c.l.b16 %v4580
        %v4710 = vunpack.c.l.b16 %v4581
        %v4711 = vunpack.c.l.b16 %v4582
        %v4712 = vpack.c.b16 %v4649, %v4648
        %v4713 = vpack.c.b16 %v4651, %v4650
        %v4714 = vpack.c.b16 %v4653, %v4652
        %v4715 = vpack.c.b16 %v4655, %v4654
        %v4716 = vpack.c.b16 %v4657, %v4656
        %v4717 = vpack.c.b16 %v4659, %v4658
        %v4718 = vpack.c.b16 %v4661, %v4660
        %v4719 = vpack.c.b16 %v4663, %v4662
        %v4720 = vpack.c.b16 %v4665, %v4664
        %v4721 = vpack.c.b16 %v4667, %v4666
        %v4722 = vpack.c.b16 %v4669, %v4668
        %v4723 = vpack.c.b16 %v4671, %v4670
        %v4724 = vpack.c.b16 %v4673, %v4672
        %v4725 = vpack.c.b16 %v4675, %v4674
        %v4726 = vpack.c.b16 %v4677, %v4676
        %v4727 = vpack.c.b16 %v4679, %v4678
        %v4728 = vpack.c.b16 %v4681, %v4680
        %v4729 = vpack.c.b16 %v4683, %v4682
        %v4730 = vpack.c.b16 %v4685, %v4684
        %v4731 = vpack.c.b16 %v4687, %v4686
        %v4732 = vpack.c.b16 %v4689, %v4688
        %v4733 = vpack.c.b16 %v4691, %v4690
        %v4734 = vpack.c.b16 %v4693, %v4692
        %v4735 = vpack.c.b16 %v4695, %v4694
        %v4736 = vpack.c.b16 %v4697, %v4696
        %v4737 = vpack.c.b16 %v4699, %v4698
        %v4738 = vpack.c.b16 %v4701, %v4700
        %v4739 = vpack.c.b16 %v4703, %v4702
        %v4740 = vpack.c.b16 %v4705, %v4704
        %v4741 = vpack.c.b16 %v4707, %v4706
        %v4742 = vpack.c.b16 %v4709, %v4708
        %v4743 = vpack.c.b16 %v4711, %v4710
        %4776 = vmatprep.subr.bf16.mxu0 0
        %4777 = vmatpush1.bf16.msra.mxu0 %v4712
        %4778 = vmatprep.subr.bf16.mxu0 0
        %4779 = vmatpush1.bf16.msra.mxu0 %v4713
        %4780 = vmatprep.subr.bf16.mxu0 0
        %4781 = vmatpush1.bf16.msra.mxu0 %v4714
        %4782 = vmatprep.subr.bf16.mxu0 0
        %4783 = vmatpush1.bf16.msra.mxu0 %v4715
        %4784 = vmatprep.subr.bf16.mxu0 0
        %4785 = vmatpush1.bf16.msra.mxu0 %v4716
        %4786 = vmatprep.subr.bf16.mxu0 0
        %4787 = vmatpush1.bf16.msra.mxu0 %v4717
        %4788 = vmatprep.subr.bf16.mxu0 0
        %4789 = vmatpush1.bf16.msra.mxu0 %v4718
        %4790 = vmatprep.subr.bf16.mxu0 0
        %4791 = vmatpush1.bf16.msra.mxu0 %v4719
        %4792 = vmatprep.subr.bf16.mxu0 0
        %4793 = vmatpush1.bf16.msra.mxu0 %v4720
        %4794 = vmatprep.subr.bf16.mxu0 0
        %4795 = vmatpush1.bf16.msra.mxu0 %v4721
        %4796 = vmatprep.subr.bf16.mxu0 0
        %4797 = vmatpush1.bf16.msra.mxu0 %v4722
        %4798 = vmatprep.subr.bf16.mxu0 0
        %4799 = vmatpush1.bf16.msra.mxu0 %v4723
        %4800 = vmatprep.subr.bf16.mxu0 0
        %4801 = vmatpush1.bf16.msra.mxu0 %v4724
        %4802 = vmatprep.subr.bf16.mxu0 0
        %4803 = vmatpush1.bf16.msra.mxu0 %v4725
        %4804 = vmatprep.subr.bf16.mxu0 0
        %4805 = vmatpush1.bf16.msra.mxu0 %v4726
        %4806 = vmatprep.subr.bf16.mxu0 0
        %4807 = vmatpush1.bf16.msra.mxu0 %v4727
        %4808 = vmatprep.mubr.bf16.mxu0 %v4516
        %4809 = vmatmul.mubr.bf16.gmra.mrb[0].mxu0 %v4515
        %v4810 = vpop.f32.mrb[0].mxu0
        %v4811 = vadd.f32 %v4583, %v4810
        %v4812 = vpop.f32.mrb[0].mxu0
        %v4813 = vpop.f32.mrb[0].mxu0
        %v4814 = vpop.f32.mrb[0].mxu0
        %4815 = vdwg.mxu0
        %4816 = vmatprep.subr.bf16.mxu0 0
        %4817 = vmatpush1.bf16.msra.mxu0 %v4728
        %4818 = vmatprep.subr.bf16.mxu0 0
        %4819 = vmatpush1.bf16.msra.mxu0 %v4729
        %4820 = vmatprep.subr.bf16.mxu0 0
        %4821 = vmatpush1.bf16.msra.mxu0 %v4730
        %4822 = vmatprep.subr.bf16.mxu0 0
        %4823 = vmatpush1.bf16.msra.mxu0 %v4731
        %4824 = vmatprep.subr.bf16.mxu0 0
        %4825 = vmatpush1.bf16.msra.mxu0 %v4732
        %4826 = vmatprep.subr.bf16.mxu0 0
        %4827 = vmatpush1.bf16.msra.mxu0 %v4733
        %4828 = vmatprep.subr.bf16.mxu0 0
        %4829 = vmatpush1.bf16.msra.mxu0 %v4734
        %4830 = vmatprep.subr.bf16.mxu0 0
        %4831 = vmatpush1.bf16.msra.mxu0 %v4735
        %4832 = vmatprep.subr.bf16.mxu0 0
        %4833 = vmatpush1.bf16.msra.mxu0 %v4736
        %4834 = vmatprep.subr.bf16.mxu0 0
        %4835 = vmatpush1.bf16.msra.mxu0 %v4737
        %4836 = vmatprep.subr.bf16.mxu0 0
        %4837 = vmatpush1.bf16.msra.mxu0 %v4738
        %4838 = vmatprep.subr.bf16.mxu0 0
        %4839 = vmatpush1.bf16.msra.mxu0 %v4739
        %4840 = vmatprep.subr.bf16.mxu0 0
        %4841 = vmatpush1.bf16.msra.mxu0 %v4740
        %4842 = vmatprep.subr.bf16.mxu0 0
        %4843 = vmatpush1.bf16.msra.mxu0 %v4741
        %4844 = vmatprep.subr.bf16.mxu0 0
        %4845 = vmatpush1.bf16.msra.mxu0 %v4742
        %4846 = vmatprep.subr.bf16.mxu0 0
        %4847 = vmatpush1.bf16.msra.mxu0 %v4743
        %4848 = vmatprep.mubr.bf16.mxu0 %v4518
        %4849 = vmatmul.mubr.bf16.gmra.mrb[0].mxu0 %v4517
        %v4850 = vpop.f32.mrb[0].mxu0
        %v4851 = vadd.f32 %v4811, %v4850
        %v4852 = vpop.f32.mrb[0].mxu0
        %v4853 = vpop.f32.mrb[0].mxu0
        %v4854 = vpop.f32.mrb[0].mxu0
        %4855 = vdwg.mxu0
        %4856 = vst [vmem:[%s432] sm:$0x1] %v4851
        %s4857 = sand.u32 %s313, 1
        %s4858 = scalar_lea.sflag [#allocation3], %s4857
        %s4859 = sand.u32 %s313, 1
        %s4860 = scalar_lea.vmem [#allocation2], %s4859
        // Predicated region
        $region73: #{dqn_forward.1} parent=71 // pred_check
          %p4861 = pneg %p323
        $region74: #{dqn_forward.1} parent=71 // pred_check_branch
          %4863 = sbr.rel (%p4861) target = $region76
        $region75: #{dqn_forward.1} parent=71 // pred_region
          %s4865 = ssub.s32 16, 16
          %4866 = vsyncadd %s4858, %s4865
          %s4867 = smul.addr %s27, 16
          %s4868 = scalar_lea.hbm %s13, %s4867
          %s4870 = sshll.u32 %s4860, 4
          %s4871 = int_to_ptr.vmem [resolvable:$true] %s4870
          %4873 = dma.vmem_to_hbm [thread:$0]  %s4871, 16, %s4868, %s4858
        $region76: #{dqn_forward.1} parent=71 // pred_fallthru
          _
      $region72: #{dqn_forward.1} parent=5 // pred_fallthru
        _
      %p4874 = scmp.le.s32.totalorder 2, %s22
      // Predicated region
      $region77: #{dqn_forward.1} parent=5 // pred_check
        %p4875 = pneg %p4874
      $region78: #{dqn_forward.1} parent=5 // pred_check_branch
        %4877 = sbr.rel (%p4875) target = $region80
      $region79: #{dqn_forward.1} parent=5 // pred_region
        %s4878 = ssub.s32 %s22, 2
        // Predicated region
        $region81: #{dqn_forward.1} parent=79 // pred_check
          %p4879 = pneg %p329
        $region82: #{dqn_forward.1} parent=79 // pred_check_branch
          %4881 = sbr.rel (%p4879) target = $region84
        $region83: #{dqn_forward.1} parent=79 // pred_region
          %s4882 = sand.u32 %s314, 1
          %s4883 = scalar_lea.sflag [#allocation3], %s4882
          %s4884 = sand.u32 %s314, 1
          %s4885 = scalar_lea.vmem [#allocation2], %s4884
          %4886 = dma.done %s4883, 16
        $region84: #{dqn_forward.1} parent=79 // pred_fallthru
          _
      $region80: #{dqn_forward.1} parent=5 // pred_fallthru
        _
    $region6: #{dqn_forward.1} parent=1 // loop_footer
      %s26 = sadd.s32 1, %s22
    $region7: #{dqn_forward.1} parent=1 // loop_footer_branch
      %21 = sbr.rel target = $region3
    $region8: #{dqn_forward.1} parent=1 // loop_exit
      _
    %4887 = vsyncpa [#allocation3], 1
    %s4888 = scalar_lea.sflag [#allocation3], 1
    %4889 = vsyncpa %s4888, 1

</llo_original>
